<compile_context>
chip_gen: v7x
topology: tpu7x:2x2x1
jax: 0.10.0
libtpu: 0.0.40
codegen_flags: <defaults>
</compile_context>

<pallas_src>
import jax
import jax.numpy as jnp
from jax.experimental import pallas as pl
from jax.experimental.pallas import tpu as pltpu

# --- small synthetic config (hidden_size=128, 4 heads, 2 layers, vocab=256) ---
B, S, D = 2, 16, 128       # batch, seq, hidden
H, HD = 4, 32              # heads, head_dim (H * HD == D)
F = 256                    # MLP intermediate size
V = 256                    # vocab size
L = 2                      # number of transformer layers
EPS = 1e-6
MASK_VALUE = -0.7 * float(jnp.finfo(jnp.float32).max)


def _rms_norm(x, w):
    var = jnp.mean(x * x, axis=-1, keepdims=True)
    return x * jax.lax.rsqrt(var + EPS) * w


def _rope(x, cos_full, sin_pos, sin_neg):
    """Per-head rotate_half RoPE applied full-width on (S, D).

    rotate_half within each head is expressed as two full-width lane rolls; the
    positions that would cross a head boundary are zeroed by the precomputed
    masked sin tables, so the result is exactly the per-head rotation.
    """
    x_p = pltpu.roll(x, HD // 2, 1)        # x[:, d - HD/2]
    x_m = pltpu.roll(x, D - HD // 2, 1)    # x[:, d + HD/2]
    return x * cos_full + x_p * sin_pos + x_m * sin_neg


# ---------------------------------------------------------------------------
# Single fused Pallas kernel: all L transformer blocks + final norm + lm_head
# for one batch element per grid step. Residual stream lives in vregs/VMEM.
# ---------------------------------------------------------------------------
def fused_kernel(x_ref, bias_ref, cos_ref, sinp_ref, sinn_ref,
                 ln1_ref, wqkv_ref, wo_ref, ln2_ref, wgu_ref, wd_ref,
                 fnorm_ref, wlm_ref, o_ref):
    x = x_ref[0]                      # (S, D) f32 residual stream
    bias = bias_ref[0]                # (1, S) additive attention mask bias
    cosf = cos_ref[...]
    sinp = sinp_ref[...]
    sinn = sinn_ref[...]

    for l in range(L):                # static unroll; all layer weights resident
        # ---- self attention (bidirectional: full attention + padding bias) ----
        h = _rms_norm(x, ln1_ref[l])
        qkv = jnp.dot(h.astype(jnp.bfloat16), wqkv_ref[l],
                      preferred_element_type=jnp.float32)       # (S, 3D)
        q = _rope(qkv[:, :D], cosf, sinp, sinn)                 # 1/sqrt(HD) folded into Wq
        k = _rope(qkv[:, D:2 * D], cosf, sinp, sinn)
        v = qkv[:, 2 * D:]

        attn_ctx = jnp.zeros((S, D), jnp.float32)
        for hh in range(H):           # static unroll over heads
            sl = slice(hh * HD, (hh + 1) * HD)
            s = jax.lax.dot_general(
                q[:, sl].astype(jnp.bfloat16), k[:, sl].astype(jnp.bfloat16),
                dimension_numbers=(((1,), (1,)), ((), ())),
                preferred_element_type=jnp.float32)             # (S, S)
            s = s + bias
            m = jnp.max(s, axis=-1, keepdims=True)
            p = jnp.exp(s - m)
            p = p * pl.reciprocal(jnp.sum(p, axis=-1, keepdims=True), approx=True)
            hv = jnp.dot(p.astype(jnp.bfloat16), v[:, sl].astype(jnp.bfloat16),
                         preferred_element_type=jnp.float32)    # (S, HD)
            # fold this head's output straight into the O-projection (no concat)
            attn_ctx = attn_ctx + jnp.dot(hv.astype(jnp.bfloat16),
                                          wo_ref[l, hh, :, :],
                                          preferred_element_type=jnp.float32)
        x = x + attn_ctx

        # ---- SwiGLU MLP ----
        h2 = _rms_norm(x, ln2_ref[l])
        gu = jnp.dot(h2.astype(jnp.bfloat16), wgu_ref[l],
                     preferred_element_type=jnp.float32)        # (S, 2F)
        g = gu[:, :F]
        u = gu[:, F:]
        mlp = g * jax.nn.sigmoid(g) * u                         # silu(g) * u
        x = x + jnp.dot(mlp.astype(jnp.bfloat16), wd_ref[l],
                        preferred_element_type=jnp.float32)

    # ---- final RMSNorm + lm_head projection ----
    hf = _rms_norm(x, fnorm_ref[...])
    o_ref[0] = jnp.dot(hf.astype(jnp.bfloat16), wlm_ref[...],
                       preferred_element_type=jnp.float32)


def _full_spec(shape):
    n = len(shape)
    return pl.BlockSpec(shape, lambda b, _n=n: (0,) * _n)


def fused_forward(x_embed, bias, cos_full, sin_pos, sin_neg, p):
    in_specs = [
        pl.BlockSpec((1, S, D), lambda b: (b, 0, 0)),    # x_embed
        pl.BlockSpec((1, 1, S), lambda b: (b, 0, 0)),    # additive mask bias
        _full_spec((S, D)), _full_spec((S, D)), _full_spec((S, D)),   # rope tables
        _full_spec((L, 1, D)),        # input RMSNorm weights (all layers)
        _full_spec((L, D, 3 * D)),    # fused q/k/v projection
        _full_spec((L, H, HD, D)),    # o-projection, split per head
        _full_spec((L, 1, D)),        # post-attn RMSNorm weights
        _full_spec((L, D, 2 * F)),    # fused gate/up projection
        _full_spec((L, F, D)),        # down projection
        _full_spec((1, D)),           # final RMSNorm weight
        _full_spec((D, V)),           # lm_head weight^T
    ]
    return pl.pallas_call(
        fused_kernel,
        out_shape=jax.ShapeDtypeStruct((B, S, V), jnp.float32),
        grid=(B,),
        in_specs=in_specs,
        out_specs=pl.BlockSpec((1, S, V), lambda b: (b, 0, 0)),
        compiler_params=pltpu.CompilerParams(
            dimension_semantics=("parallel",)),
    )(x_embed, bias, cos_full, sin_pos, sin_neg,
      p["ln1"], p["wqkv"], p["wo"], p["ln2"], p["wgu"], p["wd"],
      p["final_norm"], p["lm_head"])


def rope_tables_full():
    pos = jnp.arange(S, dtype=jnp.float32)
    inv = 1.0 / (10000.0 ** (jnp.arange(0, HD, 2, dtype=jnp.float32) / HD))
    freqs = pos[:, None] * inv[None, :]                 # (S, HD//2)
    emb = jnp.concatenate([freqs, freqs], axis=-1)      # (S, HD)
    cos = jnp.cos(emb)
    sin = jnp.sin(emb)
    cos_full = jnp.tile(cos, (1, H))                    # (S, D) per-head tiled
    sin_full = jnp.tile(sin, (1, H))
    first_half = (jnp.arange(D) % HD) < (HD // 2)       # (D,)
    sin_pos = jnp.where(first_half[None, :], 0.0, sin_full)   # pairs with roll(+HD/2)
    sin_neg = jnp.where(first_half[None, :], -sin_full, 0.0)  # pairs with roll(-HD/2)
    return cos_full, sin_pos, sin_neg


def init_params(key):
    kit = iter(jax.random.split(key, 7 * L + 2))

    def w(shape, scale=0.02):
        return (scale * jax.random.normal(next(kit), shape)).astype(jnp.float32)

    attn_scale = 1.0 / (HD ** 0.5)
    ln1, wqkv, wo, ln2, wgu, wd = [], [], [], [], [], []
    for _ in range(L):
        wq = w((D, D)) * attn_scale                     # fold 1/sqrt(HD) into Wq
        wk = w((D, D))
        wv = w((D, D))
        wqkv.append(jnp.concatenate([wq, wk, wv], axis=1))      # (D, 3D)
        wo.append(w((D, D)).reshape(H, HD, D))                  # per-head row blocks
        wg = w((D, F))
        wu = w((D, F))
        wgu.append(jnp.concatenate([wg, wu], axis=1))           # (D, 2F)
        wd.append(w((F, D)))
        ln1.append(jnp.ones((1, D), jnp.float32))
        ln2.append(jnp.ones((1, D), jnp.float32))
    return {
        "embed": w((V, D)),                                     # embed_tokens.weight (f32)
        "ln1": jnp.stack(ln1),                                  # (L, 1, D) f32
        "wqkv": jnp.stack(wqkv).astype(jnp.bfloat16),           # (L, D, 3D)
        "wo": jnp.stack(wo).astype(jnp.bfloat16),               # (L, H, HD, D)
        "ln2": jnp.stack(ln2),                                  # (L, 1, D) f32
        "wgu": jnp.stack(wgu).astype(jnp.bfloat16),             # (L, D, 2F)
        "wd": jnp.stack(wd).astype(jnp.bfloat16),               # (L, F, D)
        "final_norm": jnp.ones((1, D), jnp.float32),            # model.norm.weight
        "lm_head": w((D, V)).astype(jnp.bfloat16),              # lm_head.weight^T
    }


def diffusion_forward(params, task_ids, t=None, attention_mask=None):
    """Mirrors DiffusionModel.forward: embed -> denoise_model -> lm_head."""
    # TODO(synk): `t` is accepted but unused, exactly like the reference forward.
    if attention_mask is None:
        attention_mask = jnp.ones_like(task_ids)
    x = jnp.take(params["embed"], task_ids, axis=0)             # embedding gather (glue)
    bias = ((1.0 - attention_mask.astype(jnp.float32)) * MASK_VALUE)[:, None, :]
    cos_full, sin_pos, sin_neg = rope_tables_full()
    return fused_forward(x, bias, cos_full, sin_pos, sin_neg, params)


if __name__ == "__main__":
    key = jax.random.PRNGKey(0)
    pkey, ikey = jax.random.split(key)
    params = init_params(pkey)
    task_ids = jax.random.randint(ikey, (B, S), 0, V, dtype=jnp.int32)

    logits = diffusion_forward(params, task_ids)
    jax.block_until_ready(logits)
    assert logits.shape == (B, S, V) and logits.dtype == jnp.float32
    print("KERNEL_OK")
</pallas_src>

<mosaic_0001>
module attributes {stable_mosaic.version = 11 : i64} {
  func.func @fused_kernel(%arg0: i32, %arg1: memref<1x16x128xf32, #tpu.memory_space<vmem>>, %arg2: memref<1x1x16xf32, #tpu.memory_space<vmem>>, %arg3: memref<16x128xf32, #tpu.memory_space<vmem>>, %arg4: memref<16x128xf32, #tpu.memory_space<vmem>>, %arg5: memref<16x128xf32, #tpu.memory_space<vmem>>, %arg6: memref<2x1x128xf32, #tpu.memory_space<vmem>>, %arg7: memref<2x128x384xbf16, #tpu.memory_space<vmem>>, %arg8: memref<2x4x32x128xbf16, #tpu.memory_space<vmem>>, %arg9: memref<2x1x128xf32, #tpu.memory_space<vmem>>, %arg10: memref<2x128x512xbf16, #tpu.memory_space<vmem>>, %arg11: memref<2x256x128xbf16, #tpu.memory_space<vmem>>, %arg12: memref<1x128xf32, #tpu.memory_space<vmem>>, %arg13: memref<128x256xbf16, #tpu.memory_space<vmem>>, %arg14: memref<1x16x256xf32, #tpu.memory_space<vmem>>) attributes {dimension_semantics = [#tpu.dimension_semantics<parallel>], iteration_bounds = array<i64: 2>, scalar_prefetch = 0 : i64, scratch_operands = 0 : i64, tpu.core_type = #tpu.core_type<tc>, window_params = [{transform_indices = @transform_0, window_bounds = array<i64: 1, 16, 128>}, {transform_indices = @transform_1, window_bounds = array<i64: 1, 1, 16>}, {pipeline_mode = #tpu.pipeline_mode<synchronous>, transform_indices = @transform_2, window_bounds = array<i64: 16, 128>}, {pipeline_mode = #tpu.pipeline_mode<synchronous>, transform_indices = @transform_3, window_bounds = array<i64: 16, 128>}, {pipeline_mode = #tpu.pipeline_mode<synchronous>, transform_indices = @transform_4, window_bounds = array<i64: 16, 128>}, {pipeline_mode = #tpu.pipeline_mode<synchronous>, transform_indices = @transform_5, window_bounds = array<i64: 2, 1, 128>}, {pipeline_mode = #tpu.pipeline_mode<synchronous>, transform_indices = @transform_6, window_bounds = array<i64: 2, 128, 384>}, {pipeline_mode = #tpu.pipeline_mode<synchronous>, transform_indices = @transform_7, window_bounds = array<i64: 2, 4, 32, 128>}, {pipeline_mode = #tpu.pipeline_mode<synchronous>, transform_indices = @transform_8, window_bounds = array<i64: 2, 1, 128>}, {pipeline_mode = #tpu.pipeline_mode<synchronous>, transform_indices = @transform_9, window_bounds = array<i64: 2, 128, 512>}, {pipeline_mode = #tpu.pipeline_mode<synchronous>, transform_indices = @transform_10, window_bounds = array<i64: 2, 256, 128>}, {pipeline_mode = #tpu.pipeline_mode<synchronous>, transform_indices = @transform_11, window_bounds = array<i64: 1, 128>}, {pipeline_mode = #tpu.pipeline_mode<synchronous>, transform_indices = @transform_12, window_bounds = array<i64: 128, 256>}, {transform_indices = @transform_13, window_bounds = array<i64: 1, 16, 256>}]} {
    %c0 = arith.constant 0 : index
    %c0_0 = arith.constant 0 : index
    %c0_1 = arith.constant 0 : index
    %0 = vector.load %arg1[%c0, %c0_0, %c0_1] : memref<1x16x128xf32, #tpu.memory_space<vmem>>, vector<1x16x128xf32>
    %1 = vector.shape_cast %0 : vector<1x16x128xf32> to vector<16x128xf32>
    %c0_2 = arith.constant 0 : index
    %c0_3 = arith.constant 0 : index
    %c0_4 = arith.constant 0 : index
    %2 = vector.load %arg2[%c0_2, %c0_3, %c0_4] : memref<1x1x16xf32, #tpu.memory_space<vmem>>, vector<1x1x16xf32>
    %3 = vector.shape_cast %2 : vector<1x1x16xf32> to vector<1x16xf32>
    %c0_5 = arith.constant 0 : index
    %c0_6 = arith.constant 0 : index
    %4 = vector.load %arg3[%c0_5, %c0_6] : memref<16x128xf32, #tpu.memory_space<vmem>>, vector<16x128xf32>
    %c0_7 = arith.constant 0 : index
    %c0_8 = arith.constant 0 : index
    %5 = vector.load %arg4[%c0_7, %c0_8] : memref<16x128xf32, #tpu.memory_space<vmem>>, vector<16x128xf32>
    %c0_9 = arith.constant 0 : index
    %c0_10 = arith.constant 0 : index
    %6 = vector.load %arg5[%c0_9, %c0_10] : memref<16x128xf32, #tpu.memory_space<vmem>>, vector<16x128xf32>
    %c0_11 = arith.constant 0 : index
    %c0_12 = arith.constant 0 : index
    %c0_13 = arith.constant 0 : index
    %7 = vector.load %arg6[%c0_11, %c0_12, %c0_13] : memref<2x1x128xf32, #tpu.memory_space<vmem>>, vector<1x1x128xf32>
    %8 = vector.shape_cast %7 : vector<1x1x128xf32> to vector<1x128xf32>
    %9 = arith.mulf %1, %1 : vector<16x128xf32>
    %cst = arith.constant dense<0.000000e+00> : vector<16xf32>
    %10 = vector.multi_reduction <add>, %9, %cst [1] : vector<16x128xf32> to vector<16xf32>
    %11 = vector.shape_cast %10 : vector<16xf32> to vector<16x1xf32>
    %cst_14 = arith.constant 1.280000e+02 : f32
    %12 = vector.broadcast %cst_14 : f32 to vector<16x1xf32>
    %13 = arith.divf %11, %12 : vector<16x1xf32>
    %cst_15 = arith.constant 9.99999997E-7 : f32
    %14 = vector.broadcast %cst_15 : f32 to vector<16x1xf32>
    %15 = arith.addf %13, %14 : vector<16x1xf32>
    %16 = math.rsqrt %15 : vector<16x1xf32>
    %17 = vector.broadcast %16 : vector<16x1xf32> to vector<16x128xf32>
    %18 = arith.mulf %1, %17 : vector<16x128xf32>
    %19 = vector.broadcast %8 : vector<1x128xf32> to vector<16x128xf32>
    %20 = arith.mulf %18, %19 : vector<16x128xf32>
    %21 = arith.truncf %20 : vector<16x128xf32> to vector<16x128xbf16>
    %c0_16 = arith.constant 0 : index
    %c0_17 = arith.constant 0 : index
    %c0_18 = arith.constant 0 : index
    %22 = vector.load %arg7[%c0_16, %c0_17, %c0_18] : memref<2x128x384xbf16, #tpu.memory_space<vmem>>, vector<1x128x384xbf16>
    %23 = vector.shape_cast %22 : vector<1x128x384xbf16> to vector<128x384xbf16>
    %cst_19 = arith.constant dense<0.000000e+00> : vector<16x384xf32>
    %24 = tpu.matmul %21, %23, %cst_19 {dimension_numbers = #tpu.dot_dimension_numbers<[1], [0], [0], [1], [0, 0, 1, 1], [], []>} : vector<16x128xbf16>, vector<128x384xbf16>, vector<16x384xf32> -> vector<16x384xf32>
    %25 = vector.extract_strided_slice %24 {offsets = [0, 0], sizes = [16, 128], strides = [1, 1]} : vector<16x384xf32> to vector<16x128xf32>
    %c16_i32 = arith.constant 16 : i32
    %26 = tpu.dynamic_rotate %25 by %c16_i32 dim 1 : vector<16x128xf32>, i32 -> vector<16x128xf32>
    %c112_i32 = arith.constant 112 : i32
    %27 = tpu.dynamic_rotate %25 by %c112_i32 dim 1 : vector<16x128xf32>, i32 -> vector<16x128xf32>
    %28 = arith.mulf %25, %4 : vector<16x128xf32>
    %29 = arith.mulf %26, %5 : vector<16x128xf32>
    %30 = arith.addf %28, %29 : vector<16x128xf32>
    %31 = arith.mulf %27, %6 : vector<16x128xf32>
    %32 = arith.addf %30, %31 : vector<16x128xf32>
    %33 = vector.extract_strided_slice %24 {offsets = [0, 128], sizes = [16, 128], strides = [1, 1]} : vector<16x384xf32> to vector<16x128xf32>
    %c16_i32_20 = arith.constant 16 : i32
    %34 = tpu.dynamic_rotate %33 by %c16_i32_20 dim 1 : vector<16x128xf32>, i32 -> vector<16x128xf32>
    %c112_i32_21 = arith.constant 112 : i32
    %35 = tpu.dynamic_rotate %33 by %c112_i32_21 dim 1 : vector<16x128xf32>, i32 -> vector<16x128xf32>
    %36 = arith.mulf %33, %4 : vector<16x128xf32>
    %37 = arith.mulf %34, %5 : vector<16x128xf32>
    %38 = arith.addf %36, %37 : vector<16x128xf32>
    %39 = arith.mulf %35, %6 : vector<16x128xf32>
    %40 = arith.addf %38, %39 : vector<16x128xf32>
    %41 = vector.extract_strided_slice %24 {offsets = [0, 256], sizes = [16, 128], strides = [1, 1]} : vector<16x384xf32> to vector<16x128xf32>
    %cst_22 = arith.constant 0.000000e+00 : f32
    %42 = vector.broadcast %cst_22 : f32 to vector<16x128xf32>
    %43 = vector.extract_strided_slice %32 {offsets = [0, 0], sizes = [16, 32], strides = [1, 1]} : vector<16x128xf32> to vector<16x32xf32>
    %44 = arith.truncf %43 : vector<16x32xf32> to vector<16x32xbf16>
    %45 = vector.extract_strided_slice %40 {offsets = [0, 0], sizes = [16, 32], strides = [1, 1]} : vector<16x128xf32> to vector<16x32xf32>
    %46 = arith.truncf %45 : vector<16x32xf32> to vector<16x32xbf16>
    %cst_23 = arith.constant dense<0.000000e+00> : vector<16x16xf32>
    %47 = tpu.matmul %44, %46, %cst_23 {dimension_numbers = #tpu.dot_dimension_numbers<[1], [1], [0], [0], [0, 0, 1, 0], [], []>} : vector<16x32xbf16>, vector<16x32xbf16>, vector<16x16xf32> -> vector<16x16xf32>
    %48 = vector.broadcast %3 : vector<1x16xf32> to vector<16x16xf32>
    %49 = arith.addf %47, %48 : vector<16x16xf32>
    %cst_24 = arith.constant dense<0xFF800000> : vector<16xf32>
    %50 = vector.multi_reduction <maximumf>, %49, %cst_24 [1] : vector<16x16xf32> to vector<16xf32>
    %51 = vector.shape_cast %50 : vector<16xf32> to vector<16x1xf32>
    %52 = vector.broadcast %51 : vector<16x1xf32> to vector<16x16xf32>
    %53 = arith.subf %49, %52 : vector<16x16xf32>
    %54 = math.exp %53 : vector<16x16xf32>
    %cst_25 = arith.constant dense<0.000000e+00> : vector<16xf32>
    %55 = vector.multi_reduction <add>, %54, %cst_25 [1] : vector<16x16xf32> to vector<16xf32>
    %56 = vector.shape_cast %55 : vector<16xf32> to vector<16x1xf32>
    %57 = tpu.reciprocal %56 {approx = true} : vector<16x1xf32> -> vector<16x1xf32>
    %58 = vector.broadcast %57 : vector<16x1xf32> to vector<16x16xf32>
    %59 = arith.mulf %54, %58 : vector<16x16xf32>
    %60 = arith.truncf %59 : vector<16x16xf32> to vector<16x16xbf16>
    %61 = vector.extract_strided_slice %41 {offsets = [0, 0], sizes = [16, 32], strides = [1, 1]} : vector<16x128xf32> to vector<16x32xf32>
    %62 = arith.truncf %61 : vector<16x32xf32> to vector<16x32xbf16>
    %cst_26 = arith.constant dense<0.000000e+00> : vector<16x32xf32>
    %63 = tpu.matmul %60, %62, %cst_26 {dimension_numbers = #tpu.dot_dimension_numbers<[1], [0], [0], [1], [0, 0, 1, 1], [], []>} : vector<16x16xbf16>, vector<16x32xbf16>, vector<16x32xf32> -> vector<16x32xf32>
    %64 = arith.truncf %63 : vector<16x32xf32> to vector<16x32xbf16>
    %c0_27 = arith.constant 0 : index
    %c0_28 = arith.constant 0 : index
    %c0_29 = arith.constant 0 : index
    %c0_30 = arith.constant 0 : index
    %65 = vector.load %arg8[%c0_27, %c0_28, %c0_29, %c0_30] : memref<2x4x32x128xbf16, #tpu.memory_space<vmem>>, vector<1x1x32x128xbf16>
    %66 = vector.shape_cast %65 : vector<1x1x32x128xbf16> to vector<32x128xbf16>
    %cst_31 = arith.constant dense<0.000000e+00> : vector<16x128xf32>
    %67 = tpu.matmul %64, %66, %cst_31 {dimension_numbers = #tpu.dot_dimension_numbers<[1], [0], [0], [1], [0, 0, 1, 1], [], []>} : vector<16x32xbf16>, vector<32x128xbf16>, vector<16x128xf32> -> vector<16x128xf32>
    %68 = arith.addf %42, %67 : vector<16x128xf32>
    %69 = vector.extract_strided_slice %32 {offsets = [0, 32], sizes = [16, 32], strides = [1, 1]} : vector<16x128xf32> to vector<16x32xf32>
    %70 = arith.truncf %69 : vector<16x32xf32> to vector<16x32xbf16>
    %71 = vector.extract_strided_slice %40 {offsets = [0, 32], sizes = [16, 32], strides = [1, 1]} : vector<16x128xf32> to vector<16x32xf32>
    %72 = arith.truncf %71 : vector<16x32xf32> to vector<16x32xbf16>
    %cst_32 = arith.constant dense<0.000000e+00> : vector<16x16xf32>
    %73 = tpu.matmul %70, %72, %cst_32 {dimension_numbers = #tpu.dot_dimension_numbers<[1], [1], [0], [0], [0, 0, 1, 0], [], []>} : vector<16x32xbf16>, vector<16x32xbf16>, vector<16x16xf32> -> vector<16x16xf32>
    %74 = vector.broadcast %3 : vector<1x16xf32> to vector<16x16xf32>
    %75 = arith.addf %73, %74 : vector<16x16xf32>
    %cst_33 = arith.constant dense<0xFF800000> : vector<16xf32>
    %76 = vector.multi_reduction <maximumf>, %75, %cst_33 [1] : vector<16x16xf32> to vector<16xf32>
    %77 = vector.shape_cast %76 : vector<16xf32> to vector<16x1xf32>
    %78 = vector.broadcast %77 : vector<16x1xf32> to vector<16x16xf32>
    %79 = arith.subf %75, %78 : vector<16x16xf32>
    %80 = math.exp %79 : vector<16x16xf32>
    %cst_34 = arith.constant dense<0.000000e+00> : vector<16xf32>
    %81 = vector.multi_reduction <add>, %80, %cst_34 [1] : vector<16x16xf32> to vector<16xf32>
    %82 = vector.shape_cast %81 : vector<16xf32> to vector<16x1xf32>
    %83 = tpu.reciprocal %82 {approx = true} : vector<16x1xf32> -> vector<16x1xf32>
    %84 = vector.broadcast %83 : vector<16x1xf32> to vector<16x16xf32>
    %85 = arith.mulf %80, %84 : vector<16x16xf32>
    %86 = arith.truncf %85 : vector<16x16xf32> to vector<16x16xbf16>
    %87 = vector.extract_strided_slice %41 {offsets = [0, 32], sizes = [16, 32], strides = [1, 1]} : vector<16x128xf32> to vector<16x32xf32>
    %88 = arith.truncf %87 : vector<16x32xf32> to vector<16x32xbf16>
    %cst_35 = arith.constant dense<0.000000e+00> : vector<16x32xf32>
    %89 = tpu.matmul %86, %88, %cst_35 {dimension_numbers = #tpu.dot_dimension_numbers<[1], [0], [0], [1], [0, 0, 1, 1], [], []>} : vector<16x16xbf16>, vector<16x32xbf16>, vector<16x32xf32> -> vector<16x32xf32>
    %90 = arith.truncf %89 : vector<16x32xf32> to vector<16x32xbf16>
    %c0_36 = arith.constant 0 : index
    %c1 = arith.constant 1 : index
    %c0_37 = arith.constant 0 : index
    %c0_38 = arith.constant 0 : index
    %91 = vector.load %arg8[%c0_36, %c1, %c0_37, %c0_38] : memref<2x4x32x128xbf16, #tpu.memory_space<vmem>>, vector<1x1x32x128xbf16>
    %92 = vector.shape_cast %91 : vector<1x1x32x128xbf16> to vector<32x128xbf16>
    %cst_39 = arith.constant dense<0.000000e+00> : vector<16x128xf32>
    %93 = tpu.matmul %90, %92, %cst_39 {dimension_numbers = #tpu.dot_dimension_numbers<[1], [0], [0], [1], [0, 0, 1, 1], [], []>} : vector<16x32xbf16>, vector<32x128xbf16>, vector<16x128xf32> -> vector<16x128xf32>
    %94 = arith.addf %68, %93 : vector<16x128xf32>
    %95 = vector.extract_strided_slice %32 {offsets = [0, 64], sizes = [16, 32], strides = [1, 1]} : vector<16x128xf32> to vector<16x32xf32>
    %96 = arith.truncf %95 : vector<16x32xf32> to vector<16x32xbf16>
    %97 = vector.extract_strided_slice %40 {offsets = [0, 64], sizes = [16, 32], strides = [1, 1]} : vector<16x128xf32> to vector<16x32xf32>
    %98 = arith.truncf %97 : vector<16x32xf32> to vector<16x32xbf16>
    %cst_40 = arith.constant dense<0.000000e+00> : vector<16x16xf32>
    %99 = tpu.matmul %96, %98, %cst_40 {dimension_numbers = #tpu.dot_dimension_numbers<[1], [1], [0], [0], [0, 0, 1, 0], [], []>} : vector<16x32xbf16>, vector<16x32xbf16>, vector<16x16xf32> -> vector<16x16xf32>
    %100 = vector.broadcast %3 : vector<1x16xf32> to vector<16x16xf32>
    %101 = arith.addf %99, %100 : vector<16x16xf32>
    %cst_41 = arith.constant dense<0xFF800000> : vector<16xf32>
    %102 = vector.multi_reduction <maximumf>, %101, %cst_41 [1] : vector<16x16xf32> to vector<16xf32>
    %103 = vector.shape_cast %102 : vector<16xf32> to vector<16x1xf32>
    %104 = vector.broadcast %103 : vector<16x1xf32> to vector<16x16xf32>
    %105 = arith.subf %101, %104 : vector<16x16xf32>
    %106 = math.exp %105 : vector<16x16xf32>
    %cst_42 = arith.constant dense<0.000000e+00> : vector<16xf32>
    %107 = vector.multi_reduction <add>, %106, %cst_42 [1] : vector<16x16xf32> to vector<16xf32>
    %108 = vector.shape_cast %107 : vector<16xf32> to vector<16x1xf32>
    %109 = tpu.reciprocal %108 {approx = true} : vector<16x1xf32> -> vector<16x1xf32>
    %110 = vector.broadcast %109 : vector<16x1xf32> to vector<16x16xf32>
    %111 = arith.mulf %106, %110 : vector<16x16xf32>
    %112 = arith.truncf %111 : vector<16x16xf32> to vector<16x16xbf16>
    %113 = vector.extract_strided_slice %41 {offsets = [0, 64], sizes = [16, 32], strides = [1, 1]} : vector<16x128xf32> to vector<16x32xf32>
    %114 = arith.truncf %113 : vector<16x32xf32> to vector<16x32xbf16>
    %cst_43 = arith.constant dense<0.000000e+00> : vector<16x32xf32>
    %115 = tpu.matmul %112, %114, %cst_43 {dimension_numbers = #tpu.dot_dimension_numbers<[1], [0], [0], [1], [0, 0, 1, 1], [], []>} : vector<16x16xbf16>, vector<16x32xbf16>, vector<16x32xf32> -> vector<16x32xf32>
    %116 = arith.truncf %115 : vector<16x32xf32> to vector<16x32xbf16>
    %c0_44 = arith.constant 0 : index
    %c2 = arith.constant 2 : index
    %c0_45 = arith.constant 0 : index
    %c0_46 = arith.constant 0 : index
    %117 = vector.load %arg8[%c0_44, %c2, %c0_45, %c0_46] : memref<2x4x32x128xbf16, #tpu.memory_space<vmem>>, vector<1x1x32x128xbf16>
    %118 = vector.shape_cast %117 : vector<1x1x32x128xbf16> to vector<32x128xbf16>
    %cst_47 = arith.constant dense<0.000000e+00> : vector<16x128xf32>
    %119 = tpu.matmul %116, %118, %cst_47 {dimension_numbers = #tpu.dot_dimension_numbers<[1], [0], [0], [1], [0, 0, 1, 1], [], []>} : vector<16x32xbf16>, vector<32x128xbf16>, vector<16x128xf32> -> vector<16x128xf32>
    %120 = arith.addf %94, %119 : vector<16x128xf32>
    %121 = vector.extract_strided_slice %32 {offsets = [0, 96], sizes = [16, 32], strides = [1, 1]} : vector<16x128xf32> to vector<16x32xf32>
    %122 = arith.truncf %121 : vector<16x32xf32> to vector<16x32xbf16>
    %123 = vector.extract_strided_slice %40 {offsets = [0, 96], sizes = [16, 32], strides = [1, 1]} : vector<16x128xf32> to vector<16x32xf32>
    %124 = arith.truncf %123 : vector<16x32xf32> to vector<16x32xbf16>
    %cst_48 = arith.constant dense<0.000000e+00> : vector<16x16xf32>
    %125 = tpu.matmul %122, %124, %cst_48 {dimension_numbers = #tpu.dot_dimension_numbers<[1], [1], [0], [0], [0, 0, 1, 0], [], []>} : vector<16x32xbf16>, vector<16x32xbf16>, vector<16x16xf32> -> vector<16x16xf32>
    %126 = vector.broadcast %3 : vector<1x16xf32> to vector<16x16xf32>
    %127 = arith.addf %125, %126 : vector<16x16xf32>
    %cst_49 = arith.constant dense<0xFF800000> : vector<16xf32>
    %128 = vector.multi_reduction <maximumf>, %127, %cst_49 [1] : vector<16x16xf32> to vector<16xf32>
    %129 = vector.shape_cast %128 : vector<16xf32> to vector<16x1xf32>
    %130 = vector.broadcast %129 : vector<16x1xf32> to vector<16x16xf32>
    %131 = arith.subf %127, %130 : vector<16x16xf32>
    %132 = math.exp %131 : vector<16x16xf32>
    %cst_50 = arith.constant dense<0.000000e+00> : vector<16xf32>
    %133 = vector.multi_reduction <add>, %132, %cst_50 [1] : vector<16x16xf32> to vector<16xf32>
    %134 = vector.shape_cast %133 : vector<16xf32> to vector<16x1xf32>
    %135 = tpu.reciprocal %134 {approx = true} : vector<16x1xf32> -> vector<16x1xf32>
    %136 = vector.broadcast %135 : vector<16x1xf32> to vector<16x16xf32>
    %137 = arith.mulf %132, %136 : vector<16x16xf32>
    %138 = arith.truncf %137 : vector<16x16xf32> to vector<16x16xbf16>
    %139 = vector.extract_strided_slice %41 {offsets = [0, 96], sizes = [16, 32], strides = [1, 1]} : vector<16x128xf32> to vector<16x32xf32>
    %140 = arith.truncf %139 : vector<16x32xf32> to vector<16x32xbf16>
    %cst_51 = arith.constant dense<0.000000e+00> : vector<16x32xf32>
    %141 = tpu.matmul %138, %140, %cst_51 {dimension_numbers = #tpu.dot_dimension_numbers<[1], [0], [0], [1], [0, 0, 1, 1], [], []>} : vector<16x16xbf16>, vector<16x32xbf16>, vector<16x32xf32> -> vector<16x32xf32>
    %142 = arith.truncf %141 : vector<16x32xf32> to vector<16x32xbf16>
    %c0_52 = arith.constant 0 : index
    %c3 = arith.constant 3 : index
    %c0_53 = arith.constant 0 : index
    %c0_54 = arith.constant 0 : index
    %143 = vector.load %arg8[%c0_52, %c3, %c0_53, %c0_54] : memref<2x4x32x128xbf16, #tpu.memory_space<vmem>>, vector<1x1x32x128xbf16>
    %144 = vector.shape_cast %143 : vector<1x1x32x128xbf16> to vector<32x128xbf16>
    %cst_55 = arith.constant dense<0.000000e+00> : vector<16x128xf32>
    %145 = tpu.matmul %142, %144, %cst_55 {dimension_numbers = #tpu.dot_dimension_numbers<[1], [0], [0], [1], [0, 0, 1, 1], [], []>} : vector<16x32xbf16>, vector<32x128xbf16>, vector<16x128xf32> -> vector<16x128xf32>
    %146 = arith.addf %120, %145 : vector<16x128xf32>
    %147 = arith.addf %1, %146 : vector<16x128xf32>
    %c0_56 = arith.constant 0 : index
    %c0_57 = arith.constant 0 : index
    %c0_58 = arith.constant 0 : index
    %148 = vector.load %arg9[%c0_56, %c0_57, %c0_58] : memref<2x1x128xf32, #tpu.memory_space<vmem>>, vector<1x1x128xf32>
    %149 = vector.shape_cast %148 : vector<1x1x128xf32> to vector<1x128xf32>
    %150 = arith.mulf %147, %147 : vector<16x128xf32>
    %cst_59 = arith.constant dense<0.000000e+00> : vector<16xf32>
    %151 = vector.multi_reduction <add>, %150, %cst_59 [1] : vector<16x128xf32> to vector<16xf32>
    %152 = vector.shape_cast %151 : vector<16xf32> to vector<16x1xf32>
    %cst_60 = arith.constant 1.280000e+02 : f32
    %153 = vector.broadcast %cst_60 : f32 to vector<16x1xf32>
    %154 = arith.divf %152, %153 : vector<16x1xf32>
    %cst_61 = arith.constant 9.99999997E-7 : f32
    %155 = vector.broadcast %cst_61 : f32 to vector<16x1xf32>
    %156 = arith.addf %154, %155 : vector<16x1xf32>
    %157 = math.rsqrt %156 : vector<16x1xf32>
    %158 = vector.broadcast %157 : vector<16x1xf32> to vector<16x128xf32>
    %159 = arith.mulf %147, %158 : vector<16x128xf32>
    %160 = vector.broadcast %149 : vector<1x128xf32> to vector<16x128xf32>
    %161 = arith.mulf %159, %160 : vector<16x128xf32>
    %162 = arith.truncf %161 : vector<16x128xf32> to vector<16x128xbf16>
    %c0_62 = arith.constant 0 : index
    %c0_63 = arith.constant 0 : index
    %c0_64 = arith.constant 0 : index
    %163 = vector.load %arg10[%c0_62, %c0_63, %c0_64] : memref<2x128x512xbf16, #tpu.memory_space<vmem>>, vector<1x128x512xbf16>
    %164 = vector.shape_cast %163 : vector<1x128x512xbf16> to vector<128x512xbf16>
    %cst_65 = arith.constant dense<0.000000e+00> : vector<16x512xf32>
    %165 = tpu.matmul %162, %164, %cst_65 {dimension_numbers = #tpu.dot_dimension_numbers<[1], [0], [0], [1], [0, 0, 1, 1], [], []>} : vector<16x128xbf16>, vector<128x512xbf16>, vector<16x512xf32> -> vector<16x512xf32>
    %166 = vector.extract_strided_slice %165 {offsets = [0, 0], sizes = [16, 256], strides = [1, 1]} : vector<16x512xf32> to vector<16x256xf32>
    %167 = vector.extract_strided_slice %165 {offsets = [0, 256], sizes = [16, 256], strides = [1, 1]} : vector<16x512xf32> to vector<16x256xf32>
    %168 = arith.negf %166 : vector<16x256xf32>
    %169 = math.exp %168 : vector<16x256xf32>
    %cst_66 = arith.constant 1.000000e+00 : f32
    %170 = vector.broadcast %cst_66 : f32 to vector<16x256xf32>
    %171 = arith.addf %170, %169 : vector<16x256xf32>
    %172 = arith.divf %170, %171 : vector<16x256xf32>
    %173 = arith.mulf %166, %172 : vector<16x256xf32>
    %174 = arith.mulf %173, %167 : vector<16x256xf32>
    %175 = arith.truncf %174 : vector<16x256xf32> to vector<16x256xbf16>
    %c0_67 = arith.constant 0 : index
    %c0_68 = arith.constant 0 : index
    %c0_69 = arith.constant 0 : index
    %176 = vector.load %arg11[%c0_67, %c0_68, %c0_69] : memref<2x256x128xbf16, #tpu.memory_space<vmem>>, vector<1x256x128xbf16>
    %177 = vector.shape_cast %176 : vector<1x256x128xbf16> to vector<256x128xbf16>
    %cst_70 = arith.constant dense<0.000000e+00> : vector<16x128xf32>
    %178 = tpu.matmul %175, %177, %cst_70 {dimension_numbers = #tpu.dot_dimension_numbers<[1], [0], [0], [1], [0, 0, 1, 1], [], []>} : vector<16x256xbf16>, vector<256x128xbf16>, vector<16x128xf32> -> vector<16x128xf32>
    %179 = arith.addf %147, %178 : vector<16x128xf32>
    %c1_71 = arith.constant 1 : index
    %c0_72 = arith.constant 0 : index
    %c0_73 = arith.constant 0 : index
    %180 = vector.load %arg6[%c1_71, %c0_72, %c0_73] : memref<2x1x128xf32, #tpu.memory_space<vmem>>, vector<1x1x128xf32>
    %181 = vector.shape_cast %180 : vector<1x1x128xf32> to vector<1x128xf32>
    %182 = arith.mulf %179, %179 : vector<16x128xf32>
    %cst_74 = arith.constant dense<0.000000e+00> : vector<16xf32>
    %183 = vector.multi_reduction <add>, %182, %cst_74 [1] : vector<16x128xf32> to vector<16xf32>
    %184 = vector.shape_cast %183 : vector<16xf32> to vector<16x1xf32>
    %cst_75 = arith.constant 1.280000e+02 : f32
    %185 = vector.broadcast %cst_75 : f32 to vector<16x1xf32>
    %186 = arith.divf %184, %185 : vector<16x1xf32>
    %cst_76 = arith.constant 9.99999997E-7 : f32
    %187 = vector.broadcast %cst_76 : f32 to vector<16x1xf32>
    %188 = arith.addf %186, %187 : vector<16x1xf32>
    %189 = math.rsqrt %188 : vector<16x1xf32>
    %190 = vector.broadcast %189 : vector<16x1xf32> to vector<16x128xf32>
    %191 = arith.mulf %179, %190 : vector<16x128xf32>
    %192 = vector.broadcast %181 : vector<1x128xf32> to vector<16x128xf32>
    %193 = arith.mulf %191, %192 : vector<16x128xf32>
    %194 = arith.truncf %193 : vector<16x128xf32> to vector<16x128xbf16>
    %c1_77 = arith.constant 1 : index
    %c0_78 = arith.constant 0 : index
    %c0_79 = arith.constant 0 : index
    %195 = vector.load %arg7[%c1_77, %c0_78, %c0_79] : memref<2x128x384xbf16, #tpu.memory_space<vmem>>, vector<1x128x384xbf16>
    %196 = vector.shape_cast %195 : vector<1x128x384xbf16> to vector<128x384xbf16>
    %cst_80 = arith.constant dense<0.000000e+00> : vector<16x384xf32>
    %197 = tpu.matmul %194, %196, %cst_80 {dimension_numbers = #tpu.dot_dimension_numbers<[1], [0], [0], [1], [0, 0, 1, 1], [], []>} : vector<16x128xbf16>, vector<128x384xbf16>, vector<16x384xf32> -> vector<16x384xf32>
    %198 = vector.extract_strided_slice %197 {offsets = [0, 0], sizes = [16, 128], strides = [1, 1]} : vector<16x384xf32> to vector<16x128xf32>
    %c16_i32_81 = arith.constant 16 : i32
    %199 = tpu.dynamic_rotate %198 by %c16_i32_81 dim 1 : vector<16x128xf32>, i32 -> vector<16x128xf32>
    %c112_i32_82 = arith.constant 112 : i32
    %200 = tpu.dynamic_rotate %198 by %c112_i32_82 dim 1 : vector<16x128xf32>, i32 -> vector<16x128xf32>
    %201 = arith.mulf %198, %4 : vector<16x128xf32>
    %202 = arith.mulf %199, %5 : vector<16x128xf32>
    %203 = arith.addf %201, %202 : vector<16x128xf32>
    %204 = arith.mulf %200, %6 : vector<16x128xf32>
    %205 = arith.addf %203, %204 : vector<16x128xf32>
    %206 = vector.extract_strided_slice %197 {offsets = [0, 128], sizes = [16, 128], strides = [1, 1]} : vector<16x384xf32> to vector<16x128xf32>
    %c16_i32_83 = arith.constant 16 : i32
    %207 = tpu.dynamic_rotate %206 by %c16_i32_83 dim 1 : vector<16x128xf32>, i32 -> vector<16x128xf32>
    %c112_i32_84 = arith.constant 112 : i32
    %208 = tpu.dynamic_rotate %206 by %c112_i32_84 dim 1 : vector<16x128xf32>, i32 -> vector<16x128xf32>
    %209 = arith.mulf %206, %4 : vector<16x128xf32>
    %210 = arith.mulf %207, %5 : vector<16x128xf32>
    %211 = arith.addf %209, %210 : vector<16x128xf32>
    %212 = arith.mulf %208, %6 : vector<16x128xf32>
    %213 = arith.addf %211, %212 : vector<16x128xf32>
    %214 = vector.extract_strided_slice %197 {offsets = [0, 256], sizes = [16, 128], strides = [1, 1]} : vector<16x384xf32> to vector<16x128xf32>
    %cst_85 = arith.constant 0.000000e+00 : f32
    %215 = vector.broadcast %cst_85 : f32 to vector<16x128xf32>
    %216 = vector.extract_strided_slice %205 {offsets = [0, 0], sizes = [16, 32], strides = [1, 1]} : vector<16x128xf32> to vector<16x32xf32>
    %217 = arith.truncf %216 : vector<16x32xf32> to vector<16x32xbf16>
    %218 = vector.extract_strided_slice %213 {offsets = [0, 0], sizes = [16, 32], strides = [1, 1]} : vector<16x128xf32> to vector<16x32xf32>
    %219 = arith.truncf %218 : vector<16x32xf32> to vector<16x32xbf16>
    %cst_86 = arith.constant dense<0.000000e+00> : vector<16x16xf32>
    %220 = tpu.matmul %217, %219, %cst_86 {dimension_numbers = #tpu.dot_dimension_numbers<[1], [1], [0], [0], [0, 0, 1, 0], [], []>} : vector<16x32xbf16>, vector<16x32xbf16>, vector<16x16xf32> -> vector<16x16xf32>
    %221 = vector.broadcast %3 : vector<1x16xf32> to vector<16x16xf32>
    %222 = arith.addf %220, %221 : vector<16x16xf32>
    %cst_87 = arith.constant dense<0xFF800000> : vector<16xf32>
    %223 = vector.multi_reduction <maximumf>, %222, %cst_87 [1] : vector<16x16xf32> to vector<16xf32>
    %224 = vector.shape_cast %223 : vector<16xf32> to vector<16x1xf32>
    %225 = vector.broadcast %224 : vector<16x1xf32> to vector<16x16xf32>
    %226 = arith.subf %222, %225 : vector<16x16xf32>
    %227 = math.exp %226 : vector<16x16xf32>
    %cst_88 = arith.constant dense<0.000000e+00> : vector<16xf32>
    %228 = vector.multi_reduction <add>, %227, %cst_88 [1] : vector<16x16xf32> to vector<16xf32>
    %229 = vector.shape_cast %228 : vector<16xf32> to vector<16x1xf32>
    %230 = tpu.reciprocal %229 {approx = true} : vector<16x1xf32> -> vector<16x1xf32>
    %231 = vector.broadcast %230 : vector<16x1xf32> to vector<16x16xf32>
    %232 = arith.mulf %227, %231 : vector<16x16xf32>
    %233 = arith.truncf %232 : vector<16x16xf32> to vector<16x16xbf16>
    %234 = vector.extract_strided_slice %214 {offsets = [0, 0], sizes = [16, 32], strides = [1, 1]} : vector<16x128xf32> to vector<16x32xf32>
    %235 = arith.truncf %234 : vector<16x32xf32> to vector<16x32xbf16>
    %cst_89 = arith.constant dense<0.000000e+00> : vector<16x32xf32>
    %236 = tpu.matmul %233, %235, %cst_89 {dimension_numbers = #tpu.dot_dimension_numbers<[1], [0], [0], [1], [0, 0, 1, 1], [], []>} : vector<16x16xbf16>, vector<16x32xbf16>, vector<16x32xf32> -> vector<16x32xf32>
    %237 = arith.truncf %236 : vector<16x32xf32> to vector<16x32xbf16>
    %c1_90 = arith.constant 1 : index
    %c0_91 = arith.constant 0 : index
    %c0_92 = arith.constant 0 : index
    %c0_93 = arith.constant 0 : index
    %238 = vector.load %arg8[%c1_90, %c0_91, %c0_92, %c0_93] : memref<2x4x32x128xbf16, #tpu.memory_space<vmem>>, vector<1x1x32x128xbf16>
    %239 = vector.shape_cast %238 : vector<1x1x32x128xbf16> to vector<32x128xbf16>
    %cst_94 = arith.constant dense<0.000000e+00> : vector<16x128xf32>
    %240 = tpu.matmul %237, %239, %cst_94 {dimension_numbers = #tpu.dot_dimension_numbers<[1], [0], [0], [1], [0, 0, 1, 1], [], []>} : vector<16x32xbf16>, vector<32x128xbf16>, vector<16x128xf32> -> vector<16x128xf32>
    %241 = arith.addf %215, %240 : vector<16x128xf32>
    %242 = vector.extract_strided_slice %205 {offsets = [0, 32], sizes = [16, 32], strides = [1, 1]} : vector<16x128xf32> to vector<16x32xf32>
    %243 = arith.truncf %242 : vector<16x32xf32> to vector<16x32xbf16>
    %244 = vector.extract_strided_slice %213 {offsets = [0, 32], sizes = [16, 32], strides = [1, 1]} : vector<16x128xf32> to vector<16x32xf32>
    %245 = arith.truncf %244 : vector<16x32xf32> to vector<16x32xbf16>
    %cst_95 = arith.constant dense<0.000000e+00> : vector<16x16xf32>
    %246 = tpu.matmul %243, %245, %cst_95 {dimension_numbers = #tpu.dot_dimension_numbers<[1], [1], [0], [0], [0, 0, 1, 0], [], []>} : vector<16x32xbf16>, vector<16x32xbf16>, vector<16x16xf32> -> vector<16x16xf32>
    %247 = vector.broadcast %3 : vector<1x16xf32> to vector<16x16xf32>
    %248 = arith.addf %246, %247 : vector<16x16xf32>
    %cst_96 = arith.constant dense<0xFF800000> : vector<16xf32>
    %249 = vector.multi_reduction <maximumf>, %248, %cst_96 [1] : vector<16x16xf32> to vector<16xf32>
    %250 = vector.shape_cast %249 : vector<16xf32> to vector<16x1xf32>
    %251 = vector.broadcast %250 : vector<16x1xf32> to vector<16x16xf32>
    %252 = arith.subf %248, %251 : vector<16x16xf32>
    %253 = math.exp %252 : vector<16x16xf32>
    %cst_97 = arith.constant dense<0.000000e+00> : vector<16xf32>
    %254 = vector.multi_reduction <add>, %253, %cst_97 [1] : vector<16x16xf32> to vector<16xf32>
    %255 = vector.shape_cast %254 : vector<16xf32> to vector<16x1xf32>
    %256 = tpu.reciprocal %255 {approx = true} : vector<16x1xf32> -> vector<16x1xf32>
    %257 = vector.broadcast %256 : vector<16x1xf32> to vector<16x16xf32>
    %258 = arith.mulf %253, %257 : vector<16x16xf32>
    %259 = arith.truncf %258 : vector<16x16xf32> to vector<16x16xbf16>
    %260 = vector.extract_strided_slice %214 {offsets = [0, 32], sizes = [16, 32], strides = [1, 1]} : vector<16x128xf32> to vector<16x32xf32>
    %261 = arith.truncf %260 : vector<16x32xf32> to vector<16x32xbf16>
    %cst_98 = arith.constant dense<0.000000e+00> : vector<16x32xf32>
    %262 = tpu.matmul %259, %261, %cst_98 {dimension_numbers = #tpu.dot_dimension_numbers<[1], [0], [0], [1], [0, 0, 1, 1], [], []>} : vector<16x16xbf16>, vector<16x32xbf16>, vector<16x32xf32> -> vector<16x32xf32>
    %263 = arith.truncf %262 : vector<16x32xf32> to vector<16x32xbf16>
    %c1_99 = arith.constant 1 : index
    %c1_100 = arith.constant 1 : index
    %c0_101 = arith.constant 0 : index
    %c0_102 = arith.constant 0 : index
    %264 = vector.load %arg8[%c1_99, %c1_100, %c0_101, %c0_102] : memref<2x4x32x128xbf16, #tpu.memory_space<vmem>>, vector<1x1x32x128xbf16>
    %265 = vector.shape_cast %264 : vector<1x1x32x128xbf16> to vector<32x128xbf16>
    %cst_103 = arith.constant dense<0.000000e+00> : vector<16x128xf32>
    %266 = tpu.matmul %263, %265, %cst_103 {dimension_numbers = #tpu.dot_dimension_numbers<[1], [0], [0], [1], [0, 0, 1, 1], [], []>} : vector<16x32xbf16>, vector<32x128xbf16>, vector<16x128xf32> -> vector<16x128xf32>
    %267 = arith.addf %241, %266 : vector<16x128xf32>
    %268 = vector.extract_strided_slice %205 {offsets = [0, 64], sizes = [16, 32], strides = [1, 1]} : vector<16x128xf32> to vector<16x32xf32>
    %269 = arith.truncf %268 : vector<16x32xf32> to vector<16x32xbf16>
    %270 = vector.extract_strided_slice %213 {offsets = [0, 64], sizes = [16, 32], strides = [1, 1]} : vector<16x128xf32> to vector<16x32xf32>
    %271 = arith.truncf %270 : vector<16x32xf32> to vector<16x32xbf16>
    %cst_104 = arith.constant dense<0.000000e+00> : vector<16x16xf32>
    %272 = tpu.matmul %269, %271, %cst_104 {dimension_numbers = #tpu.dot_dimension_numbers<[1], [1], [0], [0], [0, 0, 1, 0], [], []>} : vector<16x32xbf16>, vector<16x32xbf16>, vector<16x16xf32> -> vector<16x16xf32>
    %273 = vector.broadcast %3 : vector<1x16xf32> to vector<16x16xf32>
    %274 = arith.addf %272, %273 : vector<16x16xf32>
    %cst_105 = arith.constant dense<0xFF800000> : vector<16xf32>
    %275 = vector.multi_reduction <maximumf>, %274, %cst_105 [1] : vector<16x16xf32> to vector<16xf32>
    %276 = vector.shape_cast %275 : vector<16xf32> to vector<16x1xf32>
    %277 = vector.broadcast %276 : vector<16x1xf32> to vector<16x16xf32>
    %278 = arith.subf %274, %277 : vector<16x16xf32>
    %279 = math.exp %278 : vector<16x16xf32>
    %cst_106 = arith.constant dense<0.000000e+00> : vector<16xf32>
    %280 = vector.multi_reduction <add>, %279, %cst_106 [1] : vector<16x16xf32> to vector<16xf32>
    %281 = vector.shape_cast %280 : vector<16xf32> to vector<16x1xf32>
    %282 = tpu.reciprocal %281 {approx = true} : vector<16x1xf32> -> vector<16x1xf32>
    %283 = vector.broadcast %282 : vector<16x1xf32> to vector<16x16xf32>
    %284 = arith.mulf %279, %283 : vector<16x16xf32>
    %285 = arith.truncf %284 : vector<16x16xf32> to vector<16x16xbf16>
    %286 = vector.extract_strided_slice %214 {offsets = [0, 64], sizes = [16, 32], strides = [1, 1]} : vector<16x128xf32> to vector<16x32xf32>
    %287 = arith.truncf %286 : vector<16x32xf32> to vector<16x32xbf16>
    %cst_107 = arith.constant dense<0.000000e+00> : vector<16x32xf32>
    %288 = tpu.matmul %285, %287, %cst_107 {dimension_numbers = #tpu.dot_dimension_numbers<[1], [0], [0], [1], [0, 0, 1, 1], [], []>} : vector<16x16xbf16>, vector<16x32xbf16>, vector<16x32xf32> -> vector<16x32xf32>
    %289 = arith.truncf %288 : vector<16x32xf32> to vector<16x32xbf16>
    %c1_108 = arith.constant 1 : index
    %c2_109 = arith.constant 2 : index
    %c0_110 = arith.constant 0 : index
    %c0_111 = arith.constant 0 : index
    %290 = vector.load %arg8[%c1_108, %c2_109, %c0_110, %c0_111] : memref<2x4x32x128xbf16, #tpu.memory_space<vmem>>, vector<1x1x32x128xbf16>
    %291 = vector.shape_cast %290 : vector<1x1x32x128xbf16> to vector<32x128xbf16>
    %cst_112 = arith.constant dense<0.000000e+00> : vector<16x128xf32>
    %292 = tpu.matmul %289, %291, %cst_112 {dimension_numbers = #tpu.dot_dimension_numbers<[1], [0], [0], [1], [0, 0, 1, 1], [], []>} : vector<16x32xbf16>, vector<32x128xbf16>, vector<16x128xf32> -> vector<16x128xf32>
    %293 = arith.addf %267, %292 : vector<16x128xf32>
    %294 = vector.extract_strided_slice %205 {offsets = [0, 96], sizes = [16, 32], strides = [1, 1]} : vector<16x128xf32> to vector<16x32xf32>
    %295 = arith.truncf %294 : vector<16x32xf32> to vector<16x32xbf16>
    %296 = vector.extract_strided_slice %213 {offsets = [0, 96], sizes = [16, 32], strides = [1, 1]} : vector<16x128xf32> to vector<16x32xf32>
    %297 = arith.truncf %296 : vector<16x32xf32> to vector<16x32xbf16>
    %cst_113 = arith.constant dense<0.000000e+00> : vector<16x16xf32>
    %298 = tpu.matmul %295, %297, %cst_113 {dimension_numbers = #tpu.dot_dimension_numbers<[1], [1], [0], [0], [0, 0, 1, 0], [], []>} : vector<16x32xbf16>, vector<16x32xbf16>, vector<16x16xf32> -> vector<16x16xf32>
    %299 = vector.broadcast %3 : vector<1x16xf32> to vector<16x16xf32>
    %300 = arith.addf %298, %299 : vector<16x16xf32>
    %cst_114 = arith.constant dense<0xFF800000> : vector<16xf32>
    %301 = vector.multi_reduction <maximumf>, %300, %cst_114 [1] : vector<16x16xf32> to vector<16xf32>
    %302 = vector.shape_cast %301 : vector<16xf32> to vector<16x1xf32>
    %303 = vector.broadcast %302 : vector<16x1xf32> to vector<16x16xf32>
    %304 = arith.subf %300, %303 : vector<16x16xf32>
    %305 = math.exp %304 : vector<16x16xf32>
    %cst_115 = arith.constant dense<0.000000e+00> : vector<16xf32>
    %306 = vector.multi_reduction <add>, %305, %cst_115 [1] : vector<16x16xf32> to vector<16xf32>
    %307 = vector.shape_cast %306 : vector<16xf32> to vector<16x1xf32>
    %308 = tpu.reciprocal %307 {approx = true} : vector<16x1xf32> -> vector<16x1xf32>
    %309 = vector.broadcast %308 : vector<16x1xf32> to vector<16x16xf32>
    %310 = arith.mulf %305, %309 : vector<16x16xf32>
    %311 = arith.truncf %310 : vector<16x16xf32> to vector<16x16xbf16>
    %312 = vector.extract_strided_slice %214 {offsets = [0, 96], sizes = [16, 32], strides = [1, 1]} : vector<16x128xf32> to vector<16x32xf32>
    %313 = arith.truncf %312 : vector<16x32xf32> to vector<16x32xbf16>
    %cst_116 = arith.constant dense<0.000000e+00> : vector<16x32xf32>
    %314 = tpu.matmul %311, %313, %cst_116 {dimension_numbers = #tpu.dot_dimension_numbers<[1], [0], [0], [1], [0, 0, 1, 1], [], []>} : vector<16x16xbf16>, vector<16x32xbf16>, vector<16x32xf32> -> vector<16x32xf32>
    %315 = arith.truncf %314 : vector<16x32xf32> to vector<16x32xbf16>
    %c1_117 = arith.constant 1 : index
    %c3_118 = arith.constant 3 : index
    %c0_119 = arith.constant 0 : index
    %c0_120 = arith.constant 0 : index
    %316 = vector.load %arg8[%c1_117, %c3_118, %c0_119, %c0_120] : memref<2x4x32x128xbf16, #tpu.memory_space<vmem>>, vector<1x1x32x128xbf16>
    %317 = vector.shape_cast %316 : vector<1x1x32x128xbf16> to vector<32x128xbf16>
    %cst_121 = arith.constant dense<0.000000e+00> : vector<16x128xf32>
    %318 = tpu.matmul %315, %317, %cst_121 {dimension_numbers = #tpu.dot_dimension_numbers<[1], [0], [0], [1], [0, 0, 1, 1], [], []>} : vector<16x32xbf16>, vector<32x128xbf16>, vector<16x128xf32> -> vector<16x128xf32>
    %319 = arith.addf %293, %318 : vector<16x128xf32>
    %320 = arith.addf %179, %319 : vector<16x128xf32>
    %c1_122 = arith.constant 1 : index
    %c0_123 = arith.constant 0 : index
    %c0_124 = arith.constant 0 : index
    %321 = vector.load %arg9[%c1_122, %c0_123, %c0_124] : memref<2x1x128xf32, #tpu.memory_space<vmem>>, vector<1x1x128xf32>
    %322 = vector.shape_cast %321 : vector<1x1x128xf32> to vector<1x128xf32>
    %323 = arith.mulf %320, %320 : vector<16x128xf32>
    %cst_125 = arith.constant dense<0.000000e+00> : vector<16xf32>
    %324 = vector.multi_reduction <add>, %323, %cst_125 [1] : vector<16x128xf32> to vector<16xf32>
    %325 = vector.shape_cast %324 : vector<16xf32> to vector<16x1xf32>
    %cst_126 = arith.constant 1.280000e+02 : f32
    %326 = vector.broadcast %cst_126 : f32 to vector<16x1xf32>
    %327 = arith.divf %325, %326 : vector<16x1xf32>
    %cst_127 = arith.constant 9.99999997E-7 : f32
    %328 = vector.broadcast %cst_127 : f32 to vector<16x1xf32>
    %329 = arith.addf %327, %328 : vector<16x1xf32>
    %330 = math.rsqrt %329 : vector<16x1xf32>
    %331 = vector.broadcast %330 : vector<16x1xf32> to vector<16x128xf32>
    %332 = arith.mulf %320, %331 : vector<16x128xf32>
    %333 = vector.broadcast %322 : vector<1x128xf32> to vector<16x128xf32>
    %334 = arith.mulf %332, %333 : vector<16x128xf32>
    %335 = arith.truncf %334 : vector<16x128xf32> to vector<16x128xbf16>
    %c1_128 = arith.constant 1 : index
    %c0_129 = arith.constant 0 : index
    %c0_130 = arith.constant 0 : index
    %336 = vector.load %arg10[%c1_128, %c0_129, %c0_130] : memref<2x128x512xbf16, #tpu.memory_space<vmem>>, vector<1x128x512xbf16>
    %337 = vector.shape_cast %336 : vector<1x128x512xbf16> to vector<128x512xbf16>
    %cst_131 = arith.constant dense<0.000000e+00> : vector<16x512xf32>
    %338 = tpu.matmul %335, %337, %cst_131 {dimension_numbers = #tpu.dot_dimension_numbers<[1], [0], [0], [1], [0, 0, 1, 1], [], []>} : vector<16x128xbf16>, vector<128x512xbf16>, vector<16x512xf32> -> vector<16x512xf32>
    %339 = vector.extract_strided_slice %338 {offsets = [0, 0], sizes = [16, 256], strides = [1, 1]} : vector<16x512xf32> to vector<16x256xf32>
    %340 = vector.extract_strided_slice %338 {offsets = [0, 256], sizes = [16, 256], strides = [1, 1]} : vector<16x512xf32> to vector<16x256xf32>
    %341 = arith.negf %339 : vector<16x256xf32>
    %342 = math.exp %341 : vector<16x256xf32>
    %cst_132 = arith.constant 1.000000e+00 : f32
    %343 = vector.broadcast %cst_132 : f32 to vector<16x256xf32>
    %344 = arith.addf %343, %342 : vector<16x256xf32>
    %345 = arith.divf %343, %344 : vector<16x256xf32>
    %346 = arith.mulf %339, %345 : vector<16x256xf32>
    %347 = arith.mulf %346, %340 : vector<16x256xf32>
    %348 = arith.truncf %347 : vector<16x256xf32> to vector<16x256xbf16>
    %c1_133 = arith.constant 1 : index
    %c0_134 = arith.constant 0 : index
    %c0_135 = arith.constant 0 : index
    %349 = vector.load %arg11[%c1_133, %c0_134, %c0_135] : memref<2x256x128xbf16, #tpu.memory_space<vmem>>, vector<1x256x128xbf16>
    %350 = vector.shape_cast %349 : vector<1x256x128xbf16> to vector<256x128xbf16>
    %cst_136 = arith.constant dense<0.000000e+00> : vector<16x128xf32>
    %351 = tpu.matmul %348, %350, %cst_136 {dimension_numbers = #tpu.dot_dimension_numbers<[1], [0], [0], [1], [0, 0, 1, 1], [], []>} : vector<16x256xbf16>, vector<256x128xbf16>, vector<16x128xf32> -> vector<16x128xf32>
    %352 = arith.addf %320, %351 : vector<16x128xf32>
    %c0_137 = arith.constant 0 : index
    %c0_138 = arith.constant 0 : index
    %353 = vector.load %arg12[%c0_137, %c0_138] : memref<1x128xf32, #tpu.memory_space<vmem>>, vector<1x128xf32>
    %354 = arith.mulf %352, %352 : vector<16x128xf32>
    %cst_139 = arith.constant dense<0.000000e+00> : vector<16xf32>
    %355 = vector.multi_reduction <add>, %354, %cst_139 [1] : vector<16x128xf32> to vector<16xf32>
    %356 = vector.shape_cast %355 : vector<16xf32> to vector<16x1xf32>
    %cst_140 = arith.constant 1.280000e+02 : f32
    %357 = vector.broadcast %cst_140 : f32 to vector<16x1xf32>
    %358 = arith.divf %356, %357 : vector<16x1xf32>
    %cst_141 = arith.constant 9.99999997E-7 : f32
    %359 = vector.broadcast %cst_141 : f32 to vector<16x1xf32>
    %360 = arith.addf %358, %359 : vector<16x1xf32>
    %361 = math.rsqrt %360 : vector<16x1xf32>
    %362 = vector.broadcast %361 : vector<16x1xf32> to vector<16x128xf32>
    %363 = arith.mulf %352, %362 : vector<16x128xf32>
    %364 = vector.broadcast %353 : vector<1x128xf32> to vector<16x128xf32>
    %365 = arith.mulf %363, %364 : vector<16x128xf32>
    %366 = arith.truncf %365 : vector<16x128xf32> to vector<16x128xbf16>
    %c0_142 = arith.constant 0 : index
    %c0_143 = arith.constant 0 : index
    %367 = vector.load %arg13[%c0_142, %c0_143] : memref<128x256xbf16, #tpu.memory_space<vmem>>, vector<128x256xbf16>
    %cst_144 = arith.constant dense<0.000000e+00> : vector<16x256xf32>
    %368 = tpu.matmul %366, %367, %cst_144 {dimension_numbers = #tpu.dot_dimension_numbers<[1], [0], [0], [1], [0, 0, 1, 1], [], []>} : vector<16x128xbf16>, vector<128x256xbf16>, vector<16x256xf32> -> vector<16x256xf32>
    %c0_145 = arith.constant 0 : index
    %c0_146 = arith.constant 0 : index
    %c0_147 = arith.constant 0 : index
    %369 = vector.load %arg14[%c0_145, %c0_146, %c0_147] : memref<1x16x256xf32, #tpu.memory_space<vmem>>, vector<1x16x256xf32>
    %370 = vector.shape_cast %369 : vector<1x16x256xf32> to vector<16x256xf32>
    %371 = vector.shape_cast %368 : vector<16x256xf32> to vector<1x16x256xf32>
    tpu.vector_store %arg14[%c0_145, %c0_146, %c0_147], %371 {strides = array<i32>} : memref<1x16x256xf32, #tpu.memory_space<vmem>>, vector<1x16x256xf32>,
    return
  }
  func.func @transform_0(%arg0: i32) -> (i32, i32, i32) {
    %c0_i32 = arith.constant 0 : i32
    %c0_i32_0 = arith.constant 0 : i32
    %c0_i32_1 = arith.constant 0 : i32
    return %arg0, %c0_i32, %c0_i32_0 : i32, i32, i32
  }
  func.func @transform_1(%arg0: i32) -> (i32, i32, i32) {
    %c0_i32 = arith.constant 0 : i32
    %c0_i32_0 = arith.constant 0 : i32
    %c0_i32_1 = arith.constant 0 : i32
    return %arg0, %c0_i32, %c0_i32_0 : i32, i32, i32
  }
  func.func @transform_2(%arg0: i32) -> (i32, i32) {
    %c0_i32 = arith.constant 0 : i32
    %c0_i32_0 = arith.constant 0 : i32
    %c0_i32_1 = arith.constant 0 : i32
    return %c0_i32, %c0_i32_0 : i32, i32
  }
  func.func @transform_3(%arg0: i32) -> (i32, i32) {
    %c0_i32 = arith.constant 0 : i32
    %c0_i32_0 = arith.constant 0 : i32
    %c0_i32_1 = arith.constant 0 : i32
    return %c0_i32, %c0_i32_0 : i32, i32
  }
  func.func @transform_4(%arg0: i32) -> (i32, i32) {
    %c0_i32 = arith.constant 0 : i32
    %c0_i32_0 = arith.constant 0 : i32
    %c0_i32_1 = arith.constant 0 : i32
    return %c0_i32, %c0_i32_0 : i32, i32
  }
  func.func @transform_5(%arg0: i32) -> (i32, i32, i32) {
    %c0_i32 = arith.constant 0 : i32
    %c0_i32_0 = arith.constant 0 : i32
    %c0_i32_1 = arith.constant 0 : i32
    %c0_i32_2 = arith.constant 0 : i32
    return %c0_i32, %c0_i32_0, %c0_i32_1 : i32, i32, i32
  }
  func.func @transform_6(%arg0: i32) -> (i32, i32, i32) {
    %c0_i32 = arith.constant 0 : i32
    %c0_i32_0 = arith.constant 0 : i32
    %c0_i32_1 = arith.constant 0 : i32
    %c0_i32_2 = arith.constant 0 : i32
    return %c0_i32, %c0_i32_0, %c0_i32_1 : i32, i32, i32
  }
  func.func @transform_7(%arg0: i32) -> (i32, i32, i32, i32) {
    %c0_i32 = arith.constant 0 : i32
    %c0_i32_0 = arith.constant 0 : i32
    %c0_i32_1 = arith.constant 0 : i32
    %c0_i32_2 = arith.constant 0 : i32
    %c0_i32_3 = arith.constant 0 : i32
    return %c0_i32, %c0_i32_0, %c0_i32_1, %c0_i32_2 : i32, i32, i32, i32
  }
  func.func @transform_8(%arg0: i32) -> (i32, i32, i32) {
    %c0_i32 = arith.constant 0 : i32
    %c0_i32_0 = arith.constant 0 : i32
    %c0_i32_1 = arith.constant 0 : i32
    %c0_i32_2 = arith.constant 0 : i32
    return %c0_i32, %c0_i32_0, %c0_i32_1 : i32, i32, i32
  }
  func.func @transform_9(%arg0: i32) -> (i32, i32, i32) {
    %c0_i32 = arith.constant 0 : i32
    %c0_i32_0 = arith.constant 0 : i32
    %c0_i32_1 = arith.constant 0 : i32
    %c0_i32_2 = arith.constant 0 : i32
    return %c0_i32, %c0_i32_0, %c0_i32_1 : i32, i32, i32
  }
  func.func @transform_10(%arg0: i32) -> (i32, i32, i32) {
    %c0_i32 = arith.constant 0 : i32
    %c0_i32_0 = arith.constant 0 : i32
    %c0_i32_1 = arith.constant 0 : i32
    %c0_i32_2 = arith.constant 0 : i32
    return %c0_i32, %c0_i32_0, %c0_i32_1 : i32, i32, i32
  }
  func.func @transform_11(%arg0: i32) -> (i32, i32) {
    %c0_i32 = arith.constant 0 : i32
    %c0_i32_0 = arith.constant 0 : i32
    %c0_i32_1 = arith.constant 0 : i32
    return %c0_i32, %c0_i32_0 : i32, i32
  }
  func.func @transform_12(%arg0: i32) -> (i32, i32) {
    %c0_i32 = arith.constant 0 : i32
    %c0_i32_0 = arith.constant 0 : i32
    %c0_i32_1 = arith.constant 0 : i32
    return %c0_i32, %c0_i32_0 : i32, i32
  }
  func.func @transform_13(%arg0: i32) -> (i32, i32, i32) {
    %c0_i32 = arith.constant 0 : i32
    %c0_i32_0 = arith.constant 0 : i32
    %c0_i32_1 = arith.constant 0 : i32
    return %arg0, %c0_i32, %c0_i32_0 : i32, i32, i32
  }
}

</mosaic_0001>

<llo_original>
// kernel: tpu_custom_call.1
$region0: #{tpu_custom_call.1}
  #allocation0 [shape = 'u32[]', space=smem, size = 0x4, offset = 0x4, fixed_abs, tag = 'smem constant byte address 0x4 - core index']
  #allocation1 [shape = 'u32[144,128]{1,0:T(1,128)}', space=vmem, size = 0x12000, scoped, tag = 'internal scratch']
  %s0 = inlined_call_operand.hbm [shape: f32[2,16,128], index: 0, kind: input, shape index: {}]
  %s1 = inlined_call_operand.vmem [shape: f32[2,1,16], index: 1, kind: input, shape index: {}]
  %s2 = inlined_call_operand.hbm [shape: f32[16,128], index: 2, kind: input, shape index: {}]
  %s3 = inlined_call_operand.hbm [shape: f32[16,128], index: 3, kind: input, shape index: {}]
  %s4 = inlined_call_operand.hbm [shape: f32[16,128], index: 4, kind: input, shape index: {}]
  %s5 = inlined_call_operand.vmem [shape: f32[2,1,128], index: 5, kind: input, shape index: {}]
  %s6 = inlined_call_operand.hbm [shape: bf16[2,128,384], index: 6, kind: input, shape index: {}]
  %s7 = inlined_call_operand.hbm [shape: bf16[2,4,32,128], index: 7, kind: input, shape index: {}]
  %s8 = inlined_call_operand.vmem [shape: f32[2,1,128], index: 8, kind: input, shape index: {}]
  %s9 = inlined_call_operand.hbm [shape: bf16[2,128,512], index: 9, kind: input, shape index: {}]
  %s10 = inlined_call_operand.hbm [shape: bf16[2,256,128], index: 10, kind: input, shape index: {}]
  %s11 = inlined_call_operand.vmem [shape: f32[1,128], index: 11, kind: input, shape index: {}]
  %s12 = inlined_call_operand.hbm [shape: bf16[128,256], index: 12, kind: input, shape index: {}]
  %s13 = inlined_call_operand.hbm [shape: f32[2,16,256], index: 13, kind: output, shape index: {}]
  %s14 = sld [smem:[#allocation0]]
  $region121: #{tpu_custom_call.1} parent=0
    _
  %s16 = ssub.s32 1, %s14
  %s17 = scalar_select 0, %s16, %s14
  $region1: #{tpu_custom_call.1} parent=0
    #allocation2 [shape = 'u8[16384]{0}', space=vmem, size = 0x4000, scoped, tag = 'input window, operand 0']
    #allocation3 [shape = 's32[2]{0}', space=sflag, size = 0x8, scoped, tag = 'scoped memory for tpu_custom_call.1']
    #allocation4 [shape = 's32[2]{0}', space=sflag, size = 0x8, scoped, tag = 'scoped memory for tpu_custom_call.1']
    #allocation5 [shape = 'u8[8192]{0}', space=vmem, size = 0x2000, scoped, tag = 'input window, operand 2, single buffered']
    #allocation6 [shape = 's32[1]{0}', space=sflag, size = 0x4, scoped, tag = 'scoped memory for tpu_custom_call.1']
    #allocation7 [shape = 'u8[8192]{0}', space=vmem, size = 0x2000, scoped, tag = 'input window, operand 3, single buffered']
    #allocation8 [shape = 'u8[8192]{0}', space=vmem, size = 0x2000, scoped, tag = 'input window, operand 4, single buffered']
    #allocation9 [shape = 's32[1]{0}', space=sflag, size = 0x4, scoped, tag = 'scoped memory for tpu_custom_call.1']
    #allocation10 [shape = 'u8[196608]{0}', space=vmem, size = 0x30000, scoped, tag = 'input window, operand 6, single buffered']
    #allocation11 [shape = 'u8[65536]{0}', space=vmem, size = 0x10000, scoped, tag = 'input window, operand 7, single buffered']
    #allocation12 [shape = 's32[1]{0}', space=sflag, size = 0x4, scoped, tag = 'scoped memory for tpu_custom_call.1']
    #allocation13 [shape = 'u8[262144]{0}', space=vmem, size = 0x40000, scoped, tag = 'input window, operand 9, single buffered']
    #allocation14 [shape = 'u8[131072]{0}', space=vmem, size = 0x20000, scoped, tag = 'input window, operand 10, single buffered']
    #allocation15 [shape = 's32[1]{0}', space=sflag, size = 0x4, scoped, tag = 'scoped memory for tpu_custom_call.1']
    #allocation16 [shape = 'u8[65536]{0}', space=vmem, size = 0x10000, scoped, tag = 'input window, operand 12, single buffered']
    #allocation17 [shape = 'u8[32768]{0}', space=vmem, size = 0x8000, scoped, tag = 'output window, operand 0']
    %18 = vsyncpa [#allocation3], 0
    %s19 = scalar_lea.sflag [#allocation3], 1
    %20 = vsyncpa %s19, 0
    %21 = vsyncpa [#allocation6], 0
    %22 = vsyncpa [#allocation9], 0
    %23 = vsyncpa [#allocation12], 0
    %24 = vsyncpa [#allocation15], 0
    %25 = vsyncpa [#allocation4], 0
    %s26 = scalar_lea.sflag [#allocation4], 1
    %27 = vsyncpa %s26, 0
    loop: start=0, step=1, limit=4
    $region2: #{tpu_custom_call.1} parent=1 // loop_pre_header
      _
    $region3: #{tpu_custom_call.1} parent=1 // loop_header
      %s29 = sphi 0, %s33
      %p30 = scmp.ge.s32.totalorder %s29, 4
      %s39 = sphi 0, %s41
      %s42 = sphi 0, %s39
      %s43 = sphi 0, %s42
      %s59 = sphi 0, %s43
      %s65 = sphi 0, %s67
      %s68 = sphi 0, %s65
      %s69 = sphi 0, %s68
      %s85 = sphi 0, %s69
      %s89 = sphi 0, %s89
      %s91 = sphi 0, %s89
      %s92 = sphi 0, %s91
      %s106 = sphi 0, %s92
      %s110 = sphi 0, %s110
      %s112 = sphi 0, %s110
      %s113 = sphi 0, %s112
      %s127 = sphi 0, %s113
      %s131 = sphi 0, %s131
      %s133 = sphi 0, %s131
      %s134 = sphi 0, %s133
      %s148 = sphi 0, %s134
      %s152 = sphi 0, %s152
      %s154 = sphi 0, %s152
      %s155 = sphi 0, %s154
      %s169 = sphi 0, %s155
      %s173 = sphi 0, %s173
      %s175 = sphi 0, %s173
      %s176 = sphi 0, %s175
      %s190 = sphi 0, %s176
      %s194 = sphi 0, %s194
      %s196 = sphi 0, %s194
      %s197 = sphi 0, %s196
      %s211 = sphi 0, %s197
      %s215 = sphi 0, %s215
      %s217 = sphi 0, %s215
      %s218 = sphi 0, %s217
      %s232 = sphi 0, %s218
      %s236 = sphi 0, %s236
      %s238 = sphi 0, %s236
      %s239 = sphi 0, %s238
      %s253 = sphi 0, %s239
      %s257 = sphi 0, %s257
      %s259 = sphi 0, %s257
      %s260 = sphi 0, %s259
      %s274 = sphi 0, %s260
      %s278 = sphi 0, %s278
      %s280 = sphi 0, %s278
      %s281 = sphi 0, %s280
      %s295 = sphi 0, %s281
      %s299 = sphi 0, %s299
      %s301 = sphi 0, %s299
      %s302 = sphi 0, %s301
      %s316 = sphi 0, %s302
      %s322 = sphi 0, %s324
      %s325 = sphi 0, %s322
      %s326 = sphi 0, %s325
      %s342 = sphi 0, %s326
    $region4: #{tpu_custom_call.1} parent=1 // loop_header_branch
      %32 = sbr.rel (%p30) target = $region8
    $region5: #{tpu_custom_call.1} parent=1 // loop_body
      %s34 = ssub.s32 %s29, 1
      %s35 = ssub.s32 %s29, 2
      %s36 = sadd.s32 %s29, 1
      %s37 = ssub.s32 %s29, %s36
      %p38 = scmp.eq.s32.totalorder %s37, 0
      %s40 = sadd.s32 %s39, 1
      %s41 = scalar_select %p38, %s39, %s40
      %p44 = pneg %p38
      %p45 = scmp.eq.s32.totalorder %s29, 1
      %p46 = por %p44, %p45
      %p47 = scmp.ne.s32.totalorder %s39, %s42
      %p48 = scmp.eq.s32.totalorder %s29, 0
      %p49 = por %p47, %p48
      %p50 = scmp.ne.s32.totalorder %s39, %s42
      %p51 = scmp.eq.s32.totalorder %s34, 1
      %p52 = por %p50, %p51
      %p53 = scmp.ne.s32.totalorder %s42, %s43
      %p54 = scmp.eq.s32.totalorder %s34, 0
      %p55 = por %p53, %p54
      %p56 = scmp.ne.s32.totalorder %s42, %s43
      %p57 = scmp.eq.s32.totalorder %s35, 1
      %p58 = por %p56, %p57
      %p60 = scmp.ne.s32.totalorder %s43, %s59
      %p61 = scmp.eq.s32.totalorder %s35, 0
      %p62 = por %p60, %p61
      %s63 = ssub.s32 %s29, %s36
      %p64 = scmp.eq.s32.totalorder %s63, 0
      %s66 = sadd.s32 %s65, 1
      %s67 = scalar_select %p64, %s65, %s66
      %p70 = pneg %p64
      %p71 = scmp.eq.s32.totalorder %s29, 1
      %p72 = por %p70, %p71
      %p73 = scmp.ne.s32.totalorder %s65, %s68
      %p74 = scmp.eq.s32.totalorder %s29, 0
      %p75 = por %p73, %p74
      %p76 = scmp.ne.s32.totalorder %s65, %s68
      %p77 = scmp.eq.s32.totalorder %s34, 1
      %p78 = por %p76, %p77
      %p79 = scmp.ne.s32.totalorder %s68, %s69
      %p80 = scmp.eq.s32.totalorder %s34, 0
      %p81 = por %p79, %p80
      %p82 = scmp.ne.s32.totalorder %s68, %s69
      %p83 = scmp.eq.s32.totalorder %s35, 1
      %p84 = por %p82, %p83
      %p86 = scmp.ne.s32.totalorder %s69, %s85
      %p87 = scmp.eq.s32.totalorder %s35, 0
      %p88 = por %p86, %p87
      %s90 = sadd.s32 %s89, 1
      %p93 = scmp.eq.s32.totalorder %s29, 1
      %p94 = scmp.ne.s32.totalorder %s89, %s91
      %p95 = scmp.eq.s32.totalorder %s29, 0
      %p96 = por %p94, %p95
      %p97 = scmp.ne.s32.totalorder %s89, %s91
      %p98 = scmp.eq.s32.totalorder %s34, 1
      %p99 = por %p97, %p98
      %p100 = scmp.ne.s32.totalorder %s91, %s92
      %p101 = scmp.eq.s32.totalorder %s34, 0
      %p102 = por %p100, %p101
      %p103 = scmp.ne.s32.totalorder %s91, %s92
      %p104 = scmp.eq.s32.totalorder %s35, 1
      %p105 = por %p103, %p104
      %p107 = scmp.ne.s32.totalorder %s92, %s106
      %p108 = scmp.eq.s32.totalorder %s35, 0
      %p109 = por %p107, %p108
      %s111 = sadd.s32 %s110, 1
      %p114 = scmp.eq.s32.totalorder %s29, 1
      %p115 = scmp.ne.s32.totalorder %s110, %s112
      %p116 = scmp.eq.s32.totalorder %s29, 0
      %p117 = por %p115, %p116
      %p118 = scmp.ne.s32.totalorder %s110, %s112
      %p119 = scmp.eq.s32.totalorder %s34, 1
      %p120 = por %p118, %p119
      %p121 = scmp.ne.s32.totalorder %s112, %s113
      %p122 = scmp.eq.s32.totalorder %s34, 0
      %p123 = por %p121, %p122
      %p124 = scmp.ne.s32.totalorder %s112, %s113
      %p125 = scmp.eq.s32.totalorder %s35, 1
      %p126 = por %p124, %p125
      %p128 = scmp.ne.s32.totalorder %s113, %s127
      %p129 = scmp.eq.s32.totalorder %s35, 0
      %p130 = por %p128, %p129
      %s132 = sadd.s32 %s131, 1
      %p135 = scmp.eq.s32.totalorder %s29, 1
      %p136 = scmp.ne.s32.totalorder %s131, %s133
      %p137 = scmp.eq.s32.totalorder %s29, 0
      %p138 = por %p136, %p137
      %p139 = scmp.ne.s32.totalorder %s131, %s133
      %p140 = scmp.eq.s32.totalorder %s34, 1
      %p141 = por %p139, %p140
      %p142 = scmp.ne.s32.totalorder %s133, %s134
      %p143 = scmp.eq.s32.totalorder %s34, 0
      %p144 = por %p142, %p143
      %p145 = scmp.ne.s32.totalorder %s133, %s134
      %p146 = scmp.eq.s32.totalorder %s35, 1
      %p147 = por %p145, %p146
      %p149 = scmp.ne.s32.totalorder %s134, %s148
      %p150 = scmp.eq.s32.totalorder %s35, 0
      %p151 = por %p149, %p150
      %s153 = sadd.s32 %s152, 1
      %p156 = scmp.eq.s32.totalorder %s29, 1
      %p157 = scmp.ne.s32.totalorder %s152, %s154
      %p158 = scmp.eq.s32.totalorder %s29, 0
      %p159 = por %p157, %p158
      %p160 = scmp.ne.s32.totalorder %s152, %s154
      %p161 = scmp.eq.s32.totalorder %s34, 1
      %p162 = por %p160, %p161
      %p163 = scmp.ne.s32.totalorder %s154, %s155
      %p164 = scmp.eq.s32.totalorder %s34, 0
      %p165 = por %p163, %p164
      %p166 = scmp.ne.s32.totalorder %s154, %s155
      %p167 = scmp.eq.s32.totalorder %s35, 1
      %p168 = por %p166, %p167
      %p170 = scmp.ne.s32.totalorder %s155, %s169
      %p171 = scmp.eq.s32.totalorder %s35, 0
      %p172 = por %p170, %p171
      %s174 = sadd.s32 %s173, 1
      %p177 = scmp.eq.s32.totalorder %s29, 1
      %p178 = scmp.ne.s32.totalorder %s173, %s175
      %p179 = scmp.eq.s32.totalorder %s29, 0
      %p180 = por %p178, %p179
      %p181 = scmp.ne.s32.totalorder %s173, %s175
      %p182 = scmp.eq.s32.totalorder %s34, 1
      %p183 = por %p181, %p182
      %p184 = scmp.ne.s32.totalorder %s175, %s176
      %p185 = scmp.eq.s32.totalorder %s34, 0
      %p186 = por %p184, %p185
      %p187 = scmp.ne.s32.totalorder %s175, %s176
      %p188 = scmp.eq.s32.totalorder %s35, 1
      %p189 = por %p187, %p188
      %p191 = scmp.ne.s32.totalorder %s176, %s190
      %p192 = scmp.eq.s32.totalorder %s35, 0
      %p193 = por %p191, %p192
      %s195 = sadd.s32 %s194, 1
      %p198 = scmp.eq.s32.totalorder %s29, 1
      %p199 = scmp.ne.s32.totalorder %s194, %s196
      %p200 = scmp.eq.s32.totalorder %s29, 0
      %p201 = por %p199, %p200
      %p202 = scmp.ne.s32.totalorder %s194, %s196
      %p203 = scmp.eq.s32.totalorder %s34, 1
      %p204 = por %p202, %p203
      %p205 = scmp.ne.s32.totalorder %s196, %s197
      %p206 = scmp.eq.s32.totalorder %s34, 0
      %p207 = por %p205, %p206
      %p208 = scmp.ne.s32.totalorder %s196, %s197
      %p209 = scmp.eq.s32.totalorder %s35, 1
      %p210 = por %p208, %p209
      %p212 = scmp.ne.s32.totalorder %s197, %s211
      %p213 = scmp.eq.s32.totalorder %s35, 0
      %p214 = por %p212, %p213
      %s216 = sadd.s32 %s215, 1
      %p219 = scmp.eq.s32.totalorder %s29, 1
      %p220 = scmp.ne.s32.totalorder %s215, %s217
      %p221 = scmp.eq.s32.totalorder %s29, 0
      %p222 = por %p220, %p221
      %p223 = scmp.ne.s32.totalorder %s215, %s217
      %p224 = scmp.eq.s32.totalorder %s34, 1
      %p225 = por %p223, %p224
      %p226 = scmp.ne.s32.totalorder %s217, %s218
      %p227 = scmp.eq.s32.totalorder %s34, 0
      %p228 = por %p226, %p227
      %p229 = scmp.ne.s32.totalorder %s217, %s218
      %p230 = scmp.eq.s32.totalorder %s35, 1
      %p231 = por %p229, %p230
      %p233 = scmp.ne.s32.totalorder %s218, %s232
      %p234 = scmp.eq.s32.totalorder %s35, 0
      %p235 = por %p233, %p234
      %s237 = sadd.s32 %s236, 1
      %p240 = scmp.eq.s32.totalorder %s29, 1
      %p241 = scmp.ne.s32.totalorder %s236, %s238
      %p242 = scmp.eq.s32.totalorder %s29, 0
      %p243 = por %p241, %p242
      %p244 = scmp.ne.s32.totalorder %s236, %s238
      %p245 = scmp.eq.s32.totalorder %s34, 1
      %p246 = por %p244, %p245
      %p247 = scmp.ne.s32.totalorder %s238, %s239
      %p248 = scmp.eq.s32.totalorder %s34, 0
      %p249 = por %p247, %p248
      %p250 = scmp.ne.s32.totalorder %s238, %s239
      %p251 = scmp.eq.s32.totalorder %s35, 1
      %p252 = por %p250, %p251
      %p254 = scmp.ne.s32.totalorder %s239, %s253
      %p255 = scmp.eq.s32.totalorder %s35, 0
      %p256 = por %p254, %p255
      %s258 = sadd.s32 %s257, 1
      %p261 = scmp.eq.s32.totalorder %s29, 1
      %p262 = scmp.ne.s32.totalorder %s257, %s259
      %p263 = scmp.eq.s32.totalorder %s29, 0
      %p264 = por %p262, %p263
      %p265 = scmp.ne.s32.totalorder %s257, %s259
      %p266 = scmp.eq.s32.totalorder %s34, 1
      %p267 = por %p265, %p266
      %p268 = scmp.ne.s32.totalorder %s259, %s260
      %p269 = scmp.eq.s32.totalorder %s34, 0
      %p270 = por %p268, %p269
      %p271 = scmp.ne.s32.totalorder %s259, %s260
      %p272 = scmp.eq.s32.totalorder %s35, 1
      %p273 = por %p271, %p272
      %p275 = scmp.ne.s32.totalorder %s260, %s274
      %p276 = scmp.eq.s32.totalorder %s35, 0
      %p277 = por %p275, %p276
      %s279 = sadd.s32 %s278, 1
      %p282 = scmp.eq.s32.totalorder %s29, 1
      %p283 = scmp.ne.s32.totalorder %s278, %s280
      %p284 = scmp.eq.s32.totalorder %s29, 0
      %p285 = por %p283, %p284
      %p286 = scmp.ne.s32.totalorder %s278, %s280
      %p287 = scmp.eq.s32.totalorder %s34, 1
      %p288 = por %p286, %p287
      %p289 = scmp.ne.s32.totalorder %s280, %s281
      %p290 = scmp.eq.s32.totalorder %s34, 0
      %p291 = por %p289, %p290
      %p292 = scmp.ne.s32.totalorder %s280, %s281
      %p293 = scmp.eq.s32.totalorder %s35, 1
      %p294 = por %p292, %p293
      %p296 = scmp.ne.s32.totalorder %s281, %s295
      %p297 = scmp.eq.s32.totalorder %s35, 0
      %p298 = por %p296, %p297
      %s300 = sadd.s32 %s299, 1
      %p303 = scmp.eq.s32.totalorder %s29, 1
      %p304 = scmp.ne.s32.totalorder %s299, %s301
      %p305 = scmp.eq.s32.totalorder %s29, 0
      %p306 = por %p304, %p305
      %p307 = scmp.ne.s32.totalorder %s299, %s301
      %p308 = scmp.eq.s32.totalorder %s34, 1
      %p309 = por %p307, %p308
      %p310 = scmp.ne.s32.totalorder %s301, %s302
      %p311 = scmp.eq.s32.totalorder %s34, 0
      %p312 = por %p310, %p311
      %p313 = scmp.ne.s32.totalorder %s301, %s302
      %p314 = scmp.eq.s32.totalorder %s35, 1
      %p315 = por %p313, %p314
      %p317 = scmp.ne.s32.totalorder %s302, %s316
      %p318 = scmp.eq.s32.totalorder %s35, 0
      %p319 = por %p317, %p318
      %s320 = ssub.s32 %s29, %s36
      %p321 = scmp.eq.s32.totalorder %s320, 0
      %s323 = sadd.s32 %s322, 1
      %s324 = scalar_select %p321, %s322, %s323
      %p327 = pneg %p321
      %p328 = scmp.eq.s32.totalorder %s29, 1
      %p329 = por %p327, %p328
      %p330 = scmp.ne.s32.totalorder %s322, %s325
      %p331 = scmp.eq.s32.totalorder %s29, 0
      %p332 = por %p330, %p331
      %p333 = scmp.ne.s32.totalorder %s322, %s325
      %p334 = scmp.eq.s32.totalorder %s34, 1
      %p335 = por %p333, %p334
      %p336 = scmp.ne.s32.totalorder %s325, %s326
      %p337 = scmp.eq.s32.totalorder %s34, 0
      %p338 = por %p336, %p337
      %p339 = scmp.ne.s32.totalorder %s325, %s326
      %p340 = scmp.eq.s32.totalorder %s35, 1
      %p341 = por %p339, %p340
      %p343 = scmp.ne.s32.totalorder %s326, %s342
      %p344 = scmp.eq.s32.totalorder %s35, 0
      %p345 = por %p343, %p344
      %p346 = scmp.le.s32.totalorder 1, %s29
      %p347 = scmp.lt.s32.totalorder %s29, 3
      %p348 = pnand %p346, %p347
      %p349 = pneg %p348
      // Predicated region
      $region9: #{tpu_custom_call.1} parent=5 // pred_check
        _
      $region10: #{tpu_custom_call.1} parent=5 // pred_check_branch
        %351 = sbr.rel (%p348) target = $region12
      $region11: #{tpu_custom_call.1} parent=5 // pred_region
        %s352 = ssub.s32 %s29, 1
        // Predicated region
        $region13: #{tpu_custom_call.1} parent=11 // pred_check
          %p353 = pneg %p102
        $region14: #{tpu_custom_call.1} parent=11 // pred_check_branch
          %355 = sbr.rel (%p353) target = $region16
        $region15: #{tpu_custom_call.1} parent=11 // pred_region
          %s357 = ssub.s32 256, 256
          %358 = vsyncadd [#allocation6], %s357
          %s359 = sshll.u32 [#allocation5], 4
          %s360 = int_to_ptr.vmem [resolvable:$true] %s359
          %365 = dma.hbm_to_vmem [thread:$0]  %s2, 256, %s360, [#allocation6], 128, 128, 8
        $region16: #{tpu_custom_call.1} parent=11 // pred_fallthru
          _
        // Predicated region
        $region17: #{tpu_custom_call.1} parent=11 // pred_check
          %p366 = pneg %p123
        $region18: #{tpu_custom_call.1} parent=11 // pred_check_branch
          %368 = sbr.rel (%p366) target = $region20
        $region19: #{tpu_custom_call.1} parent=11 // pred_region
          %s370 = ssub.s32 256, 256
          %371 = vsyncadd [#allocation6], %s370
          %s372 = sshll.u32 [#allocation7], 4
          %s373 = int_to_ptr.vmem [resolvable:$true] %s372
          %378 = dma.hbm_to_vmem [thread:$0]  %s3, 256, %s373, [#allocation6], 128, 128, 8
        $region20: #{tpu_custom_call.1} parent=11 // pred_fallthru
          _
        // Predicated region
        $region21: #{tpu_custom_call.1} parent=11 // pred_check
          %p379 = pneg %p144
        $region22: #{tpu_custom_call.1} parent=11 // pred_check_branch
          %381 = sbr.rel (%p379) target = $region24
        $region23: #{tpu_custom_call.1} parent=11 // pred_region
          %s383 = ssub.s32 256, 256
          %384 = vsyncadd [#allocation9], %s383
          %s385 = sshll.u32 [#allocation8], 4
          %s386 = int_to_ptr.vmem [resolvable:$true] %s385
          %391 = dma.hbm_to_vmem [thread:$0]  %s4, 256, %s386, [#allocation9], 128, 128, 8
        $region24: #{tpu_custom_call.1} parent=11 // pred_fallthru
          _
        // Predicated region
        $region25: #{tpu_custom_call.1} parent=11 // pred_check
          %p392 = pneg %p165
        $region26: #{tpu_custom_call.1} parent=11 // pred_check_branch
          %394 = sbr.rel (%p392) target = $region28
        $region27: #{tpu_custom_call.1} parent=11 // pred_region
          _
        $region28: #{tpu_custom_call.1} parent=11 // pred_fallthru
          _
        // Predicated region
        $region29: #{tpu_custom_call.1} parent=11 // pred_check
          %p395 = pneg %p186
        $region30: #{tpu_custom_call.1} parent=11 // pred_check_branch
          %397 = sbr.rel (%p395) target = $region32
        $region31: #{tpu_custom_call.1} parent=11 // pred_region
          %s399 = ssub.s32 6144, 6144
          %400 = vsyncadd [#allocation9], %s399
          %s401 = sshll.u32 [#allocation10], 4
          %s402 = int_to_ptr.vmem [resolvable:$true] %s401
          %407 = dma.hbm_to_vmem [thread:$0]  %s6, 6144, %s402, [#allocation9], 192, 192, 12
        $region32: #{tpu_custom_call.1} parent=11 // pred_fallthru
          _
        // Predicated region
        $region33: #{tpu_custom_call.1} parent=11 // pred_check
          %p408 = pneg %p207
        $region34: #{tpu_custom_call.1} parent=11 // pred_check_branch
          %410 = sbr.rel (%p408) target = $region36
        $region35: #{tpu_custom_call.1} parent=11 // pred_region
          %s412 = ssub.s32 2048, 2048
          %413 = vsyncadd [#allocation12], %s412
          %s414 = sshll.u32 [#allocation11], 4
          %s415 = int_to_ptr.vmem [resolvable:$true] %s414
          %420 = dma.hbm_to_vmem [thread:$0]  %s7, 2048, %s415, [#allocation12], 64, 64, 4
        $region36: #{tpu_custom_call.1} parent=11 // pred_fallthru
          _
        // Predicated region
        $region37: #{tpu_custom_call.1} parent=11 // pred_check
          %p421 = pneg %p228
        $region38: #{tpu_custom_call.1} parent=11 // pred_check_branch
          %423 = sbr.rel (%p421) target = $region40
        $region39: #{tpu_custom_call.1} parent=11 // pred_region
          _
        $region40: #{tpu_custom_call.1} parent=11 // pred_fallthru
          _
        // Predicated region
        $region41: #{tpu_custom_call.1} parent=11 // pred_check
          %p424 = pneg %p249
        $region42: #{tpu_custom_call.1} parent=11 // pred_check_branch
          %426 = sbr.rel (%p424) target = $region44
        $region43: #{tpu_custom_call.1} parent=11 // pred_region
          %s428 = ssub.s32 8192, 8192
          %429 = vsyncadd [#allocation12], %s428
          %s430 = sshll.u32 [#allocation13], 4
          %s431 = int_to_ptr.vmem [resolvable:$true] %s430
          %436 = dma.hbm_to_vmem [thread:$0]  %s9, 8192, %s431, [#allocation12], 256, 256, 16
        $region44: #{tpu_custom_call.1} parent=11 // pred_fallthru
          _
        // Predicated region
        $region45: #{tpu_custom_call.1} parent=11 // pred_check
          %p437 = pneg %p270
        $region46: #{tpu_custom_call.1} parent=11 // pred_check_branch
          %439 = sbr.rel (%p437) target = $region48
        $region47: #{tpu_custom_call.1} parent=11 // pred_region
          %s441 = ssub.s32 4096, 4096
          %442 = vsyncadd [#allocation15], %s441
          %s443 = sshll.u32 [#allocation14], 4
          %s444 = int_to_ptr.vmem [resolvable:$true] %s443
          %449 = dma.hbm_to_vmem [thread:$0]  %s10, 4096, %s444, [#allocation15], 64, 64, 4
        $region48: #{tpu_custom_call.1} parent=11 // pred_fallthru
          _
        // Predicated region
        $region49: #{tpu_custom_call.1} parent=11 // pred_check
          %p450 = pneg %p291
        $region50: #{tpu_custom_call.1} parent=11 // pred_check_branch
          %452 = sbr.rel (%p450) target = $region52
        $region51: #{tpu_custom_call.1} parent=11 // pred_region
          _
        $region52: #{tpu_custom_call.1} parent=11 // pred_fallthru
          _
        // Predicated region
        $region53: #{tpu_custom_call.1} parent=11 // pred_check
          %p453 = pneg %p312
        $region54: #{tpu_custom_call.1} parent=11 // pred_check_branch
          %455 = sbr.rel (%p453) target = $region56
        $region55: #{tpu_custom_call.1} parent=11 // pred_region
          %s457 = ssub.s32 2048, 2048
          %458 = vsyncadd [#allocation15], %s457
          %s459 = sshll.u32 [#allocation16], 4
          %s460 = int_to_ptr.vmem [resolvable:$true] %s459
          %465 = dma.hbm_to_vmem [thread:$0]  %s12, 2048, %s460, [#allocation15], 128, 128, 8
        $region56: #{tpu_custom_call.1} parent=11 // pred_fallthru
          _
      $region12: #{tpu_custom_call.1} parent=5 // pred_fallthru
        _
      %p466 = scmp.lt.s32.totalorder %s29, 2
      // Predicated region
      $region57: #{tpu_custom_call.1} parent=5 // pred_check
        %p467 = pneg %p466
      $region58: #{tpu_custom_call.1} parent=5 // pred_check_branch
        %469 = sbr.rel (%p467) target = $region60
      $region59: #{tpu_custom_call.1} parent=5 // pred_region
        // Predicated region
        $region61: #{tpu_custom_call.1} parent=59 // pred_check
          %p470 = pneg %p49
        $region62: #{tpu_custom_call.1} parent=59 // pred_check_branch
          %472 = sbr.rel (%p470) target = $region64
        $region63: #{tpu_custom_call.1} parent=59 // pred_region
          %s473 = sand.u32 %s39, 1
          %s474 = scalar_lea.sflag [#allocation3], %s473
          %s475 = sand.u32 %s39, 1
          %s476 = smul.addr %s475, 16
          %s477 = scalar_lea.vmem [#allocation2], %s476
          %s479 = ssub.s32 256, 256
          %480 = vsyncadd %s474, %s479
          %s481 = smul.addr %s29, 2
          %s482 = smul.addr %s481, 128
          %s483 = scalar_lea.hbm %s0, %s482
          %s484 = sshll.u32 %s477, 4
          %s485 = int_to_ptr.vmem [resolvable:$true] %s484
          %490 = dma.hbm_to_vmem [thread:$0]  %s483, 256, %s485, %s474, 128, 128, 8
        $region64: #{tpu_custom_call.1} parent=59 // pred_fallthru
          _
        // Predicated region
        $region65: #{tpu_custom_call.1} parent=59 // pred_check
          %p491 = pneg %p75
        $region66: #{tpu_custom_call.1} parent=59 // pred_check_branch
          %493 = sbr.rel (%p491) target = $region68
        $region67: #{tpu_custom_call.1} parent=59 // pred_region
          %p494 = scmp.lt.s32.totalorder %s29, 1
          %s495 = scalar_select %p494, %s29, 1
          %s496 = scalar_lea.vmem %s1, %s495
        $region68: #{tpu_custom_call.1} parent=59 // pred_fallthru
          _
      $region60: #{tpu_custom_call.1} parent=5 // pred_fallthru
        _
      %p497 = scmp.le.s32.totalorder 1, %s29
      %p498 = scmp.lt.s32.totalorder %s29, 3
      %p499 = pnand %p497, %p498
      %p500 = pneg %p499
      // Predicated region
      $region69: #{tpu_custom_call.1} parent=5 // pred_check
        _
      $region70: #{tpu_custom_call.1} parent=5 // pred_check_branch
        %502 = sbr.rel (%p499) target = $region72
      $region71: #{tpu_custom_call.1} parent=5 // pred_region
        %s503 = ssub.s32 %s29, 1
        %s504 = sand.u32 %s42, 1
        %s505 = scalar_lea.sflag [#allocation3], %s504
        %s506 = sand.u32 %s42, 1
        %s507 = smul.addr %s506, 16
        %s508 = scalar_lea.vmem [#allocation2], %s507
        // Predicated region
        $region73: #{tpu_custom_call.1} parent=71 // pred_check
          %p509 = pneg %p55
        $region74: #{tpu_custom_call.1} parent=71 // pred_check_branch
          %511 = sbr.rel (%p509) target = $region76
        $region75: #{tpu_custom_call.1} parent=71 // pred_region
          %512 = dma.done %s505, 256
        $region76: #{tpu_custom_call.1} parent=71 // pred_fallthru
          _
        // Predicated region
        $region77: #{tpu_custom_call.1} parent=71 // pred_check
          %p513 = pneg %p102
        $region78: #{tpu_custom_call.1} parent=71 // pred_check_branch
          %515 = sbr.rel (%p513) target = $region80
        $region79: #{tpu_custom_call.1} parent=71 // pred_region
          %516 = dma.done [#allocation6], 256
        $region80: #{tpu_custom_call.1} parent=71 // pred_fallthru
          _
        // Predicated region
        $region81: #{tpu_custom_call.1} parent=71 // pred_check
          %p517 = pneg %p123
        $region82: #{tpu_custom_call.1} parent=71 // pred_check_branch
          %519 = sbr.rel (%p517) target = $region84
        $region83: #{tpu_custom_call.1} parent=71 // pred_region
          %520 = dma.done [#allocation6], 256
        $region84: #{tpu_custom_call.1} parent=71 // pred_fallthru
          _
        // Predicated region
        $region85: #{tpu_custom_call.1} parent=71 // pred_check
          %p521 = pneg %p144
        $region86: #{tpu_custom_call.1} parent=71 // pred_check_branch
          %523 = sbr.rel (%p521) target = $region88
        $region87: #{tpu_custom_call.1} parent=71 // pred_region
          %524 = dma.done [#allocation9], 256
        $region88: #{tpu_custom_call.1} parent=71 // pred_fallthru
          _
        // Predicated region
        $region89: #{tpu_custom_call.1} parent=71 // pred_check
          %p525 = pneg %p186
        $region90: #{tpu_custom_call.1} parent=71 // pred_check_branch
          %527 = sbr.rel (%p525) target = $region92
        $region91: #{tpu_custom_call.1} parent=71 // pred_region
          %528 = dma.done [#allocation9], 6144
        $region92: #{tpu_custom_call.1} parent=71 // pred_fallthru
          _
        // Predicated region
        $region93: #{tpu_custom_call.1} parent=71 // pred_check
          %p529 = pneg %p207
        $region94: #{tpu_custom_call.1} parent=71 // pred_check_branch
          %531 = sbr.rel (%p529) target = $region96
        $region95: #{tpu_custom_call.1} parent=71 // pred_region
          %532 = dma.done [#allocation12], 2048
        $region96: #{tpu_custom_call.1} parent=71 // pred_fallthru
          _
        // Predicated region
        $region97: #{tpu_custom_call.1} parent=71 // pred_check
          %p533 = pneg %p249
        $region98: #{tpu_custom_call.1} parent=71 // pred_check_branch
          %535 = sbr.rel (%p533) target = $region100
        $region99: #{tpu_custom_call.1} parent=71 // pred_region
          %536 = dma.done [#allocation12], 8192
        $region100: #{tpu_custom_call.1} parent=71 // pred_fallthru
          _
        // Predicated region
        $region101: #{tpu_custom_call.1} parent=71 // pred_check
          %p537 = pneg %p270
        $region102: #{tpu_custom_call.1} parent=71 // pred_check_branch
          %539 = sbr.rel (%p537) target = $region104
        $region103: #{tpu_custom_call.1} parent=71 // pred_region
          %540 = dma.done [#allocation15], 4096
        $region104: #{tpu_custom_call.1} parent=71 // pred_fallthru
          _
        // Predicated region
        $region105: #{tpu_custom_call.1} parent=71 // pred_check
          %p541 = pneg %p312
        $region106: #{tpu_custom_call.1} parent=71 // pred_check_branch
          %543 = sbr.rel (%p541) target = $region108
        $region107: #{tpu_custom_call.1} parent=71 // pred_region
          %544 = dma.done [#allocation15], 2048
        $region108: #{tpu_custom_call.1} parent=71 // pred_fallthru
          _
        %s545 = sand.u32 %s42, 1
        %s546 = scalar_lea.sflag [#allocation3], %s545
        %s547 = sand.u32 %s42, 1
        %s548 = smul.addr %s547, 16
        %s549 = scalar_lea.vmem [#allocation2], %s548
        %p550 = pneg %p55
        %p551 = pneg %p52
        %p552 = scmp.lt.s32.totalorder %s34, 1
        %s553 = scalar_select %p552, %s34, 1
        %s554 = scalar_lea.vmem %s1, %s553
        %p555 = pneg %p81
        %p556 = pneg %p78
        %p557 = pneg %p102
        %p558 = pneg %p99
        %p559 = pneg %p123
        %p560 = pneg %p120
        %p561 = pneg %p144
        %p562 = pneg %p141
        %p563 = pneg %p165
        %p564 = pneg %p162
        %p565 = pneg %p186
        %p566 = pneg %p183
        %p567 = pneg %p207
        %p568 = pneg %p204
        %p569 = pneg %p228
        %p570 = pneg %p225
        %p571 = pneg %p249
        %p572 = pneg %p246
        %p573 = pneg %p270
        %p574 = pneg %p267
        %p575 = pneg %p291
        %p576 = pneg %p288
        %p577 = pneg %p312
        %p578 = pneg %p309
        %p579 = pneg %p338
        %p580 = pneg %p335
        %s581 = sand.u32 %s325, 1
        %s582 = scalar_lea.sflag [#allocation4], %s581
        %s583 = sand.u32 %s325, 1
        %s584 = smul.addr %s583, 32
        %s585 = scalar_lea.vmem [#allocation17], %s584
        %p586 = scmp.lt.s32.totalorder %s34, 1
        %s587 = scalar_select %p586, %s34, 1
        %s588 = scalar_lea.vmem %s1, %s587
        %v590 = vld [vmem:[%s508] sm:$0xff]
        %v591 = vld [vmem:[%s508 + $0x8] sm:$0xff]
        %v592 = vld [vmem:[%s588] sm:$0x1]
        %v593 = vld [vmem:[#allocation5] sm:$0xff]
        %v594 = vld [vmem:[#allocation5 + $0x8] sm:$0xff]
        %v595 = vld [vmem:[#allocation7] sm:$0xff]
        %v596 = vld [vmem:[#allocation7 + $0x8] sm:$0xff]
        %v597 = vld [vmem:[#allocation8] sm:$0xff]
        %v598 = vld [vmem:[#allocation8 + $0x8] sm:$0xff]
        %v599 = vld [vmem:[%s5] sm:$0x1]
        %v600 = vmul.f32 %v590, %v590
        %v601 = vmul.f32 %v591, %v591
        %602 = vadd.xlane.f32.xlu0 %v600
        %v603 = vpop.xlane.xlu0 %602
        %604 = vadd.xlane.f32.xlu0 %v601
        %v605 = vpop.xlane.xlu0 %604
        %v606 = vrcp.pop 128.0
        %v607 = vmul.f32 %v603, %v606
        %v608 = vmul.f32 %v605, %v606
        %v609 = vadd.f32 %v607, 1e-06
        %v610 = vadd.f32 %v608, 1e-06
        %v611 = vrsqrt.pop %v609
        %v612 = vrsqrt.pop %v610
        %v613 = vmul.f32 %v590, %v611
        %v614 = vmul.f32 %v591, %v612
        %v616 = vlaneseq
        %v617 = vshrl.u32 %v616, 7
        %v618 = vsub.s32 0, %v617
        %v619 = vrot.slane %v599, %v618
        %v621 = vmul.f32 %v613, %v619
        %v622 = vmul.f32 %v614, %v619
        %v623 = vpack.c.bf16 %v622, %v621
        %v624 = vld [vmem:[#allocation10] sm:$0xff]
        %v625 = vld [vmem:[#allocation10 + $0x8] sm:$0xf]
        %v626 = vld [vmem:[#allocation10 + $0xc] sm:$0xff]
        %v627 = vld [vmem:[#allocation10 + $0x14] sm:$0xf]
        %v628 = vld [vmem:[#allocation10 + $0x18] sm:$0xff]
        %v629 = vld [vmem:[#allocation10 + $0x20] sm:$0xf]
        %v630 = vld [vmem:[#allocation10 + $0x24] sm:$0xff]
        %v631 = vld [vmem:[#allocation10 + $0x2c] sm:$0xf]
        %v632 = vld [vmem:[#allocation10 + $0x30] sm:$0xff]
        %v633 = vld [vmem:[#allocation10 + $0x38] sm:$0xf]
        %v634 = vld [vmem:[#allocation10 + $0x3c] sm:$0xff]
        %v635 = vld [vmem:[#allocation10 + $0x44] sm:$0xf]
        %v636 = vld [vmem:[#allocation10 + $0x48] sm:$0xff]
        %v637 = vld [vmem:[#allocation10 + $0x50] sm:$0xf]
        %v638 = vld [vmem:[#allocation10 + $0x54] sm:$0xff]
        %v639 = vld [vmem:[#allocation10 + $0x5c] sm:$0xf]
        %v640 = vld [vmem:[#allocation10 + $0x60] sm:$0xff]
        %v641 = vld [vmem:[#allocation10 + $0x68] sm:$0xf]
        %v642 = vld [vmem:[#allocation10 + $0x6c] sm:$0xff]
        %v643 = vld [vmem:[#allocation10 + $0x74] sm:$0xf]
        %v644 = vld [vmem:[#allocation10 + $0x78] sm:$0xff]
        %v645 = vld [vmem:[#allocation10 + $0x80] sm:$0xf]
        %v646 = vld [vmem:[#allocation10 + $0x84] sm:$0xff]
        %v647 = vld [vmem:[#allocation10 + $0x8c] sm:$0xf]
        %v648 = vld [vmem:[#allocation10 + $0x90] sm:$0xff]
        %v649 = vld [vmem:[#allocation10 + $0x98] sm:$0xf]
        %v650 = vld [vmem:[#allocation10 + $0x9c] sm:$0xff]
        %v651 = vld [vmem:[#allocation10 + $0xa4] sm:$0xf]
        %v652 = vld [vmem:[#allocation10 + $0xa8] sm:$0xff]
        %v653 = vld [vmem:[#allocation10 + $0xb0] sm:$0xf]
        %v654 = vld [vmem:[#allocation10 + $0xb4] sm:$0xff]
        %v655 = vld [vmem:[#allocation10 + $0xbc] sm:$0xf]
        %v688 = vunpack.c.l.b16 %v624
        %v689 = vunpack.c.h.b16 %v624
        %v690 = vunpack.c.l.b16 %v625
        %v691 = vunpack.c.l.b16 %v626
        %v692 = vunpack.c.h.b16 %v626
        %v693 = vunpack.c.l.b16 %v627
        %v694 = vunpack.c.l.b16 %v628
        %v695 = vunpack.c.h.b16 %v628
        %v696 = vunpack.c.l.b16 %v629
        %v697 = vunpack.c.l.b16 %v630
        %v698 = vunpack.c.h.b16 %v630
        %v699 = vunpack.c.l.b16 %v631
        %v700 = vunpack.c.l.b16 %v632
        %v701 = vunpack.c.h.b16 %v632
        %v702 = vunpack.c.l.b16 %v633
        %v703 = vunpack.c.l.b16 %v634
        %v704 = vunpack.c.h.b16 %v634
        %v705 = vunpack.c.l.b16 %v635
        %v706 = vunpack.c.l.b16 %v636
        %v707 = vunpack.c.h.b16 %v636
        %v708 = vunpack.c.l.b16 %v637
        %v709 = vunpack.c.l.b16 %v638
        %v710 = vunpack.c.h.b16 %v638
        %v711 = vunpack.c.l.b16 %v639
        %v712 = vunpack.c.l.b16 %v640
        %v713 = vunpack.c.h.b16 %v640
        %v714 = vunpack.c.l.b16 %v641
        %v715 = vunpack.c.l.b16 %v642
        %v716 = vunpack.c.h.b16 %v642
        %v717 = vunpack.c.l.b16 %v643
        %v718 = vunpack.c.l.b16 %v644
        %v719 = vunpack.c.h.b16 %v644
        %v720 = vunpack.c.l.b16 %v645
        %v721 = vunpack.c.l.b16 %v646
        %v722 = vunpack.c.h.b16 %v646
        %v723 = vunpack.c.l.b16 %v647
        %v724 = vunpack.c.l.b16 %v648
        %v725 = vunpack.c.h.b16 %v648
        %v726 = vunpack.c.l.b16 %v649
        %v727 = vunpack.c.l.b16 %v650
        %v728 = vunpack.c.h.b16 %v650
        %v729 = vunpack.c.l.b16 %v651
        %v730 = vunpack.c.l.b16 %v652
        %v731 = vunpack.c.h.b16 %v652
        %v732 = vunpack.c.l.b16 %v653
        %v733 = vunpack.c.l.b16 %v654
        %v734 = vunpack.c.h.b16 %v654
        %v735 = vunpack.c.l.b16 %v655
        %v736 = vpack.c.b16 %v691, %v688
        %v737 = vpack.c.b16 %v692, %v689
        %v738 = vpack.c.b16 %v693, %v690
        %v739 = vpack.c.b16 %v697, %v694
        %v740 = vpack.c.b16 %v698, %v695
        %v741 = vpack.c.b16 %v699, %v696
        %v742 = vpack.c.b16 %v703, %v700
        %v743 = vpack.c.b16 %v704, %v701
        %v744 = vpack.c.b16 %v705, %v702
        %v745 = vpack.c.b16 %v709, %v706
        %v746 = vpack.c.b16 %v710, %v707
        %v747 = vpack.c.b16 %v711, %v708
        %v748 = vpack.c.b16 %v715, %v712
        %v749 = vpack.c.b16 %v716, %v713
        %v750 = vpack.c.b16 %v717, %v714
        %v751 = vpack.c.b16 %v721, %v718
        %v752 = vpack.c.b16 %v722, %v719
        %v753 = vpack.c.b16 %v723, %v720
        %v754 = vpack.c.b16 %v727, %v724
        %v755 = vpack.c.b16 %v728, %v725
        %v756 = vpack.c.b16 %v729, %v726
        %v757 = vpack.c.b16 %v733, %v730
        %v758 = vpack.c.b16 %v734, %v731
        %v759 = vpack.c.b16 %v735, %v732
        %784 = vmatprep.subr.bf16.mxu0 %v737
        %785 = vmatpush1.bf16.msra.mxu0 %v736
        %786 = vmatprep.subr.bf16.mxu0 %v740
        %787 = vmatpush1.bf16.msra.mxu0 %v739
        %788 = vmatprep.subr.bf16.mxu0 %v743
        %789 = vmatpush1.bf16.msra.mxu0 %v742
        %790 = vmatprep.subr.bf16.mxu0 %v746
        %791 = vmatpush1.bf16.msra.mxu0 %v745
        %792 = vmatprep.subr.bf16.mxu0 %v749
        %793 = vmatpush1.bf16.msra.mxu0 %v748
        %794 = vmatprep.subr.bf16.mxu0 %v752
        %795 = vmatpush1.bf16.msra.mxu0 %v751
        %796 = vmatprep.subr.bf16.mxu0 %v755
        %797 = vmatpush1.bf16.msra.mxu0 %v754
        %798 = vmatprep.subr.bf16.mxu0 %v758
        %799 = vmatpush1.bf16.msra.mxu0 %v757
        %800 = vmatprep.subr.bf16.mxu0 0
        %801 = vmatpush1.bf16.msra.mxu0 0
        %802 = vmatprep.subr.bf16.mxu0 0
        %803 = vmatpush1.bf16.msra.mxu0 0
        %804 = vmatprep.subr.bf16.mxu0 0
        %805 = vmatpush1.bf16.msra.mxu0 0
        %806 = vmatprep.subr.bf16.mxu0 0
        %807 = vmatpush1.bf16.msra.mxu0 0
        %808 = vmatprep.subr.bf16.mxu0 0
        %809 = vmatpush1.bf16.msra.mxu0 0
        %810 = vmatprep.subr.bf16.mxu0 0
        %811 = vmatpush1.bf16.msra.mxu0 0
        %812 = vmatprep.subr.bf16.mxu0 0
        %813 = vmatpush1.bf16.msra.mxu0 0
        %814 = vmatprep.subr.bf16.mxu0 0
        %815 = vmatpush1.bf16.msra.mxu0 0
        %816 = vmatprep.mubr.bf16.mxu0 0
        %817 = vmatmul.mubr.bf16.gmra.mrb[0].mxu0 %v623
        %v818 = vpop.f32.mrb[0].mxu0
        %v819 = vadd.f32 0.0, %v818
        %v820 = vpop.f32.mrb[0].mxu0
        %v821 = vadd.f32 0.0, %v820
        %v822 = vpop.f32.mrb[0].mxu0
        %v823 = vadd.f32 0.0, %v822
        %v824 = vpop.f32.mrb[0].mxu0
        %v825 = vadd.f32 0.0, %v824
        %826 = vdwg.mxu0
        %827 = vmatprep.subr.bf16.mxu0 0
        %828 = vmatpush1.bf16.msra.mxu0 %v738
        %829 = vmatprep.subr.bf16.mxu0 0
        %830 = vmatpush1.bf16.msra.mxu0 %v741
        %831 = vmatprep.subr.bf16.mxu0 0
        %832 = vmatpush1.bf16.msra.mxu0 %v744
        %833 = vmatprep.subr.bf16.mxu0 0
        %834 = vmatpush1.bf16.msra.mxu0 %v747
        %835 = vmatprep.subr.bf16.mxu0 0
        %836 = vmatpush1.bf16.msra.mxu0 %v750
        %837 = vmatprep.subr.bf16.mxu0 0
        %838 = vmatpush1.bf16.msra.mxu0 %v753
        %839 = vmatprep.subr.bf16.mxu0 0
        %840 = vmatpush1.bf16.msra.mxu0 %v756
        %841 = vmatprep.subr.bf16.mxu0 0
        %842 = vmatpush1.bf16.msra.mxu0 %v759
        %843 = vmatprep.subr.bf16.mxu0 0
        %844 = vmatpush1.bf16.msra.mxu0 0
        %845 = vmatprep.subr.bf16.mxu0 0
        %846 = vmatpush1.bf16.msra.mxu0 0
        %847 = vmatprep.subr.bf16.mxu0 0
        %848 = vmatpush1.bf16.msra.mxu0 0
        %849 = vmatprep.subr.bf16.mxu0 0
        %850 = vmatpush1.bf16.msra.mxu0 0
        %851 = vmatprep.subr.bf16.mxu0 0
        %852 = vmatpush1.bf16.msra.mxu0 0
        %853 = vmatprep.subr.bf16.mxu0 0
        %854 = vmatpush1.bf16.msra.mxu0 0
        %855 = vmatprep.subr.bf16.mxu0 0
        %856 = vmatpush1.bf16.msra.mxu0 0
        %857 = vmatprep.subr.bf16.mxu0 0
        %858 = vmatpush1.bf16.msra.mxu0 0
        %859 = vmatprep.mubr.bf16.mxu0 0
        %860 = vmatmul.mubr.bf16.gmra.mrb[0].mxu0 %v623
        %v861 = vpop.f32.mrb[0].mxu0
        %v862 = vadd.f32 0.0, %v861
        %v863 = vpop.f32.mrb[0].mxu0
        %v864 = vpop.f32.mrb[0].mxu0
        %v865 = vadd.f32 0.0, %v864
        %v866 = vpop.f32.mrb[0].mxu0
        %867 = vdwg.mxu0
        %868 = vrot.lane.b32.xlu0 %v819, 16
        %v869 = vpop.permute.xlu0 %868
        %870 = vrot.lane.b32.xlu0 %v823, 16
        %v871 = vpop.permute.xlu0 %870
        %872 = vrot.lane.b32.xlu0 %v819, 112
        %v873 = vpop.permute.xlu0 %872
        %874 = vrot.lane.b32.xlu0 %v823, 112
        %v875 = vpop.permute.xlu0 %874
        %v876 = vmul.f32 %v819, %v593
        %v877 = vmul.f32 %v823, %v594
        %v878 = vmul.f32 %v869, %v595
        %v879 = vmul.f32 %v871, %v596
        %v880 = vadd.f32 %v876, %v878
        %v881 = vadd.f32 %v877, %v879
        %v882 = vmul.f32 %v873, %v597
        %v883 = vmul.f32 %v875, %v598
        %v884 = vadd.f32 %v880, %v882
        %v885 = vadd.f32 %v881, %v883
        %886 = vrot.lane.b32.xlu0 %v821, 16
        %v887 = vpop.permute.xlu0 %886
        %888 = vrot.lane.b32.xlu0 %v825, 16
        %v889 = vpop.permute.xlu0 %888
        %890 = vrot.lane.b32.xlu0 %v821, 112
        %v891 = vpop.permute.xlu0 %890
        %892 = vrot.lane.b32.xlu0 %v825, 112
        %v893 = vpop.permute.xlu0 %892
        %v894 = vmul.f32 %v821, %v593
        %v895 = vmul.f32 %v825, %v594
        %v896 = vmul.f32 %v887, %v595
        %v897 = vmul.f32 %v889, %v596
        %v898 = vadd.f32 %v894, %v896
        %v899 = vadd.f32 %v895, %v897
        %v900 = vmul.f32 %v891, %v597
        %v901 = vmul.f32 %v893, %v598
        %v902 = vadd.f32 %v898, %v900
        %v903 = vadd.f32 %v899, %v901
        %v904 = vpack.c.bf16 %v885, %v884
        %v905 = vpack.c.bf16 %v903, %v902
        %v907 = vlaneseq
        %v908 = vshrl.u32 %v907, 7
        %v909 = vsub.s32 0, %v908
        %v910 = vrot.slane %v592, %v909
        %vm912 = vcmask 261120
        %v914 = vsel %vm912, %v904, 0
        %v917 = vsel %vm912, %v905, 0
        %919 = vmatprep.subr.bf16.mxu0 0
        %920 = vmatpush1.bf16.xpose.msra.mxu0 %v917
        %921 = vmatprep.subr.bf16.mxu0 0
        %922 = vmatpush1.bf16.xpose.msra.mxu0 0
        %923 = vmatprep.subr.bf16.mxu0 0
        %924 = vmatpush1.bf16.xpose.msra.mxu0 0
        %925 = vmatprep.subr.bf16.mxu0 0
        %926 = vmatpush1.bf16.xpose.msra.mxu0 0
        %927 = vmatprep.subr.bf16.mxu0 0
        %928 = vmatpush1.bf16.xpose.msra.mxu0 0
        %929 = vmatprep.subr.bf16.mxu0 0
        %930 = vmatpush1.bf16.xpose.msra.mxu0 0
        %931 = vmatprep.subr.bf16.mxu0 0
        %932 = vmatpush1.bf16.xpose.msra.mxu0 0
        %933 = vmatprep.subr.bf16.mxu0 0
        %934 = vmatpush1.bf16.xpose.msra.mxu0 0
        %935 = vmatprep.subr.bf16.mxu0 0
        %936 = vmatpush1.bf16.xpose.msra.mxu0 0
        %937 = vmatprep.subr.bf16.mxu0 0
        %938 = vmatpush1.bf16.xpose.msra.mxu0 0
        %939 = vmatprep.subr.bf16.mxu0 0
        %940 = vmatpush1.bf16.xpose.msra.mxu0 0
        %941 = vmatprep.subr.bf16.mxu0 0
        %942 = vmatpush1.bf16.xpose.msra.mxu0 0
        %943 = vmatprep.subr.bf16.mxu0 0
        %944 = vmatpush1.bf16.xpose.msra.mxu0 0
        %945 = vmatprep.subr.bf16.mxu0 0
        %946 = vmatpush1.bf16.xpose.msra.mxu0 0
        %947 = vmatprep.subr.bf16.mxu0 0
        %948 = vmatpush1.bf16.xpose.msra.mxu0 0
        %949 = vmatprep.subr.bf16.mxu0 0
        %950 = vmatpush1.bf16.xpose.msra.mxu0 0
        %951 = vmatprep.mubr.bf16.mxu0 0
        %952 = vmatmul.mubr.bf16.gmra.mrb[0].mxu0 %v914
        %v953 = vpop.f32.mrb[0].mxu0
        %v954 = vadd.f32 %v910, %v953
        %v955 = vpop.f32.mrb[0].mxu0
        %v956 = vpop.f32.mrb[0].mxu0
        %v957 = vadd.f32 %v910, %v956
        %v958 = vpop.f32.mrb[0].mxu0
        %959 = vdwg.mxu0
        %vm960 = vcmask 130048
        %v961 = vsel %vm960, %v954, -inf
        %962 = vmax.xlane.f32.xlu0 %v961
        %v963 = vpop.xlane.xlu0 %962
        %v964 = vsel %vm960, %v957, -inf
        %965 = vmax.xlane.f32.xlu0 %v964
        %v966 = vpop.xlane.xlu0 %965
        %v967 = vsub.f32 %v954, %v963
        %v968 = vsub.f32 %v957, %v966
        %v969 = vmul.f32 %v967, 1.442695
        %v970 = vpow.pop %v969
        %v971 = vmul.f32 %v968, 1.442695
        %v972 = vpow.pop %v971
        %v973 = vsel %vm960, %v970, 0.0
        %974 = vadd.xlane.f32.xlu0 %v973
        %v975 = vpop.xlane.xlu0 %974
        %v976 = vsel %vm960, %v972, 0.0
        %977 = vadd.xlane.f32.xlu0 %v976
        %v978 = vpop.xlane.xlu0 %977
        %v979 = vrcp.pop %v975
        %v980 = vrcp.pop %v978
        %v981 = vmul.f32 %v970, %v979
        %v982 = vmul.f32 %v972, %v980
        %v983 = vpack.c.bf16 %v982, %v981
        %v984 = vpack.c.bf16 %v865, %v862
        %v986 = vsel %vm960, %v983, 0
        %988 = vmatprep.subr.bf16.mxu0 0
        %989 = vmatpush1.bf16.msra.mxu0 %v984
        %990 = vmatprep.subr.bf16.mxu0 0
        %991 = vmatpush1.bf16.msra.mxu0 0
        %992 = vmatprep.subr.bf16.mxu0 0
        %993 = vmatpush1.bf16.msra.mxu0 0
        %994 = vmatprep.subr.bf16.mxu0 0
        %995 = vmatpush1.bf16.msra.mxu0 0
        %996 = vmatprep.subr.bf16.mxu0 0
        %997 = vmatpush1.bf16.msra.mxu0 0
        %998 = vmatprep.subr.bf16.mxu0 0
        %999 = vmatpush1.bf16.msra.mxu0 0
        %1000 = vmatprep.subr.bf16.mxu0 0
        %1001 = vmatpush1.bf16.msra.mxu0 0
        %1002 = vmatprep.subr.bf16.mxu0 0
        %1003 = vmatpush1.bf16.msra.mxu0 0
        %1004 = vmatprep.subr.bf16.mxu0 0
        %1005 = vmatpush1.bf16.msra.mxu0 0
        %1006 = vmatprep.subr.bf16.mxu0 0
        %1007 = vmatpush1.bf16.msra.mxu0 0
        %1008 = vmatprep.subr.bf16.mxu0 0
        %1009 = vmatpush1.bf16.msra.mxu0 0
        %1010 = vmatprep.subr.bf16.mxu0 0
        %1011 = vmatpush1.bf16.msra.mxu0 0
        %1012 = vmatprep.subr.bf16.mxu0 0
        %1013 = vmatpush1.bf16.msra.mxu0 0
        %1014 = vmatprep.subr.bf16.mxu0 0
        %1015 = vmatpush1.bf16.msra.mxu0 0
        %1016 = vmatprep.subr.bf16.mxu0 0
        %1017 = vmatpush1.bf16.msra.mxu0 0
        %1018 = vmatprep.subr.bf16.mxu0 0
        %1019 = vmatpush1.bf16.msra.mxu0 0
        %1020 = vmatprep.mubr.bf16.mxu0 0
        %1021 = vmatmul.mubr.bf16.gmra.mrb[0].mxu0 %v986
        %v1022 = vpop.f32.mrb[0].mxu0
        %v1023 = vadd.f32 0.0, %v1022
        %v1024 = vpop.f32.mrb[0].mxu0
        %v1025 = vpop.f32.mrb[0].mxu0
        %v1026 = vadd.f32 0.0, %v1025
        %v1027 = vpop.f32.mrb[0].mxu0
        %1028 = vdwg.mxu0
        %v1029 = vpack.c.bf16 %v1026, %v1023
        %v1030 = vld [vmem:[#allocation11] sm:$0xf]
        %v1031 = vld [vmem:[#allocation11 + $0x4] sm:$0xf]
        %v1032 = vld [vmem:[#allocation11 + $0x8] sm:$0xf]
        %v1033 = vld [vmem:[#allocation11 + $0xc] sm:$0xf]
        %1035 = vrot.lane.b32.xlu0 %v904, 96
        %v1036 = vpop.permute.xlu0 %1035
        %1038 = vrot.lane.b32.xlu0 %v905, 96
        %v1039 = vpop.permute.xlu0 %1038
        %v1041 = vsel %vm912, %v1036, 0
        %v1044 = vsel %vm912, %v1039, 0
        %1046 = vmatprep.subr.bf16.mxu0 0
        %1047 = vmatpush1.bf16.xpose.msra.mxu0 %v1044
        %1048 = vmatprep.subr.bf16.mxu0 0
        %1049 = vmatpush1.bf16.xpose.msra.mxu0 0
        %1050 = vmatprep.subr.bf16.mxu0 0
        %1051 = vmatpush1.bf16.xpose.msra.mxu0 0
        %1052 = vmatprep.subr.bf16.mxu0 0
        %1053 = vmatpush1.bf16.xpose.msra.mxu0 0
        %1054 = vmatprep.subr.bf16.mxu0 0
        %1055 = vmatpush1.bf16.xpose.msra.mxu0 0
        %1056 = vmatprep.subr.bf16.mxu0 0
        %1057 = vmatpush1.bf16.xpose.msra.mxu0 0
        %1058 = vmatprep.subr.bf16.mxu0 0
        %1059 = vmatpush1.bf16.xpose.msra.mxu0 0
        %1060 = vmatprep.subr.bf16.mxu0 0
        %1061 = vmatpush1.bf16.xpose.msra.mxu0 0
        %1062 = vmatprep.subr.bf16.mxu0 0
        %1063 = vmatpush1.bf16.xpose.msra.mxu0 0
        %1064 = vmatprep.subr.bf16.mxu0 0
        %1065 = vmatpush1.bf16.xpose.msra.mxu0 0
        %1066 = vmatprep.subr.bf16.mxu0 0
        %1067 = vmatpush1.bf16.xpose.msra.mxu0 0
        %1068 = vmatprep.subr.bf16.mxu0 0
        %1069 = vmatpush1.bf16.xpose.msra.mxu0 0
        %1070 = vmatprep.subr.bf16.mxu0 0
        %1071 = vmatpush1.bf16.xpose.msra.mxu0 0
        %1072 = vmatprep.subr.bf16.mxu0 0
        %1073 = vmatpush1.bf16.xpose.msra.mxu0 0
        %1074 = vmatprep.subr.bf16.mxu0 0
        %1075 = vmatpush1.bf16.xpose.msra.mxu0 0
        %1076 = vmatprep.subr.bf16.mxu0 0
        %1077 = vmatpush1.bf16.xpose.msra.mxu0 0
        %1078 = vmatprep.mubr.bf16.mxu0 0
        %1079 = vmatmul.mubr.bf16.gmra.mrb[0].mxu0 %v1041
        %v1080 = vpop.f32.mrb[0].mxu0
        %v1081 = vadd.f32 %v910, %v1080
        %v1082 = vpop.f32.mrb[0].mxu0
        %v1083 = vpop.f32.mrb[0].mxu0
        %v1084 = vadd.f32 %v910, %v1083
        %v1085 = vpop.f32.mrb[0].mxu0
        %1086 = vdwg.mxu0
        %v1087 = vsel %vm960, %v1081, -inf
        %1088 = vmax.xlane.f32.xlu0 %v1087
        %v1089 = vpop.xlane.xlu0 %1088
        %v1090 = vsel %vm960, %v1084, -inf
        %1091 = vmax.xlane.f32.xlu0 %v1090
        %v1092 = vpop.xlane.xlu0 %1091
        %v1093 = vsub.f32 %v1081, %v1089
        %v1094 = vsub.f32 %v1084, %v1092
        %v1095 = vmul.f32 %v1093, 1.442695
        %v1096 = vpow.pop %v1095
        %v1097 = vmul.f32 %v1094, 1.442695
        %v1098 = vpow.pop %v1097
        %v1099 = vsel %vm960, %v1096, 0.0
        %1100 = vadd.xlane.f32.xlu0 %v1099
        %v1101 = vpop.xlane.xlu0 %1100
        %v1102 = vsel %vm960, %v1098, 0.0
        %1103 = vadd.xlane.f32.xlu0 %v1102
        %v1104 = vpop.xlane.xlu0 %1103
        %v1105 = vrcp.pop %v1101
        %v1106 = vrcp.pop %v1104
        %v1107 = vmul.f32 %v1096, %v1105
        %v1108 = vmul.f32 %v1098, %v1106
        %v1109 = vpack.c.bf16 %v1108, %v1107
        %1111 = vrot.lane.b32.xlu0 %v984, 96
        %v1112 = vpop.permute.xlu0 %1111
        %v1115 = vsel %vm960, %v1109, 0
        %1117 = vmatprep.subr.bf16.mxu0 0
        %1118 = vmatpush1.bf16.msra.mxu0 %v1112
        %1119 = vmatprep.subr.bf16.mxu0 0
        %1120 = vmatpush1.bf16.msra.mxu0 0
        %1121 = vmatprep.subr.bf16.mxu0 0
        %1122 = vmatpush1.bf16.msra.mxu0 0
        %1123 = vmatprep.subr.bf16.mxu0 0
        %1124 = vmatpush1.bf16.msra.mxu0 0
        %1125 = vmatprep.subr.bf16.mxu0 0
        %1126 = vmatpush1.bf16.msra.mxu0 0
        %1127 = vmatprep.subr.bf16.mxu0 0
        %1128 = vmatpush1.bf16.msra.mxu0 0
        %1129 = vmatprep.subr.bf16.mxu0 0
        %1130 = vmatpush1.bf16.msra.mxu0 0
        %1131 = vmatprep.subr.bf16.mxu0 0
        %1132 = vmatpush1.bf16.msra.mxu0 0
        %1133 = vmatprep.subr.bf16.mxu0 0
        %1134 = vmatpush1.bf16.msra.mxu0 0
        %1135 = vmatprep.subr.bf16.mxu0 0
        %1136 = vmatpush1.bf16.msra.mxu0 0
        %1137 = vmatprep.subr.bf16.mxu0 0
        %1138 = vmatpush1.bf16.msra.mxu0 0
        %1139 = vmatprep.subr.bf16.mxu0 0
        %1140 = vmatpush1.bf16.msra.mxu0 0
        %1141 = vmatprep.subr.bf16.mxu0 0
        %1142 = vmatpush1.bf16.msra.mxu0 0
        %1143 = vmatprep.subr.bf16.mxu0 0
        %1144 = vmatpush1.bf16.msra.mxu0 0
        %1145 = vmatprep.subr.bf16.mxu0 0
        %1146 = vmatpush1.bf16.msra.mxu0 0
        %1147 = vmatprep.subr.bf16.mxu0 0
        %1148 = vmatpush1.bf16.msra.mxu0 0
        %1149 = vmatprep.mubr.bf16.mxu0 0
        %1150 = vmatmul.mubr.bf16.gmra.mrb[0].mxu0 %v1115
        %v1151 = vpop.f32.mrb[0].mxu0
        %v1152 = vadd.f32 0.0, %v1151
        %v1153 = vpop.f32.mrb[0].mxu0
        %v1154 = vpop.f32.mrb[0].mxu0
        %v1155 = vadd.f32 0.0, %v1154
        %v1156 = vpop.f32.mrb[0].mxu0
        %1157 = vdwg.mxu0
        %v1158 = vpack.c.bf16 %v1155, %v1152
        %s1159 = scalar_lea.vmem [#allocation11], 16
        %v1160 = vld [vmem:[%s1159] sm:$0xf]
        %v1161 = vld [vmem:[%s1159 + $0x4] sm:$0xf]
        %v1162 = vld [vmem:[%s1159 + $0x8] sm:$0xf]
        %v1163 = vld [vmem:[%s1159 + $0xc] sm:$0xf]
        %v1168 = vunpack.c.l.b16 %v1160
        %v1169 = vunpack.c.l.b16 %v1161
        %v1170 = vunpack.c.l.b16 %v1162
        %v1171 = vunpack.c.l.b16 %v1163
        %v1172 = vpack.c.b16 %v1169, %v1168
        %v1173 = vpack.c.b16 %v1171, %v1170
        %v1177 = vsel %vm912, %v1158, 0
        %1179 = vmatprep.subr.bf16.mxu0 0
        %1180 = vmatpush1.bf16.msra.mxu0 %v1172
        %1181 = vmatprep.subr.bf16.mxu0 0
        %1182 = vmatpush1.bf16.msra.mxu0 %v1173
        %1183 = vmatprep.subr.bf16.mxu0 0
        %1184 = vmatpush1.bf16.msra.mxu0 0
        %1185 = vmatprep.subr.bf16.mxu0 0
        %1186 = vmatpush1.bf16.msra.mxu0 0
        %1187 = vmatprep.subr.bf16.mxu0 0
        %1188 = vmatpush1.bf16.msra.mxu0 0
        %1189 = vmatprep.subr.bf16.mxu0 0
        %1190 = vmatpush1.bf16.msra.mxu0 0
        %1191 = vmatprep.subr.bf16.mxu0 0
        %1192 = vmatpush1.bf16.msra.mxu0 0
        %1193 = vmatprep.subr.bf16.mxu0 0
        %1194 = vmatpush1.bf16.msra.mxu0 0
        %1195 = vmatprep.subr.bf16.mxu0 0
        %1196 = vmatpush1.bf16.msra.mxu0 0
        %1197 = vmatprep.subr.bf16.mxu0 0
        %1198 = vmatpush1.bf16.msra.mxu0 0
        %1199 = vmatprep.subr.bf16.mxu0 0
        %1200 = vmatpush1.bf16.msra.mxu0 0
        %1201 = vmatprep.subr.bf16.mxu0 0
        %1202 = vmatpush1.bf16.msra.mxu0 0
        %1203 = vmatprep.subr.bf16.mxu0 0
        %1204 = vmatpush1.bf16.msra.mxu0 0
        %1205 = vmatprep.subr.bf16.mxu0 0
        %1206 = vmatpush1.bf16.msra.mxu0 0
        %1207 = vmatprep.subr.bf16.mxu0 0
        %1208 = vmatpush1.bf16.msra.mxu0 0
        %1209 = vmatprep.subr.bf16.mxu0 0
        %1210 = vmatpush1.bf16.msra.mxu0 0
        %1211 = vmatprep.mubr.bf16.mxu0 0
        %1212 = vmatmul.mubr.bf16.gmra.mrb[0].mxu0 %v1177
        %v1213 = vpop.f32.mrb[0].mxu0
        %v1214 = vadd.f32 0.0, %v1213
        %v1215 = vpop.f32.mrb[0].mxu0
        %v1216 = vpop.f32.mrb[0].mxu0
        %v1217 = vadd.f32 0.0, %v1216
        %v1218 = vpop.f32.mrb[0].mxu0
        %1219 = vdwg.mxu0
        %v1224 = vunpack.c.l.b16 %v1030
        %v1225 = vunpack.c.l.b16 %v1031
        %v1226 = vunpack.c.l.b16 %v1032
        %v1227 = vunpack.c.l.b16 %v1033
        %v1228 = vpack.c.b16 %v1225, %v1224
        %v1229 = vpack.c.b16 %v1227, %v1226
        %v1233 = vsel %vm912, %v1029, 0
        %1235 = vmatprep.subr.bf16.mxu0 0
        %1236 = vmatpush1.bf16.msra.mxu0 %v1228
        %1237 = vmatprep.subr.bf16.mxu0 0
        %1238 = vmatpush1.bf16.msra.mxu0 %v1229
        %1239 = vmatprep.subr.bf16.mxu0 0
        %1240 = vmatpush1.bf16.msra.mxu0 0
        %1241 = vmatprep.subr.bf16.mxu0 0
        %1242 = vmatpush1.bf16.msra.mxu0 0
        %1243 = vmatprep.subr.bf16.mxu0 0
        %1244 = vmatpush1.bf16.msra.mxu0 0
        %1245 = vmatprep.subr.bf16.mxu0 0
        %1246 = vmatpush1.bf16.msra.mxu0 0
        %1247 = vmatprep.subr.bf16.mxu0 0
        %1248 = vmatpush1.bf16.msra.mxu0 0
        %1249 = vmatprep.subr.bf16.mxu0 0
        %1250 = vmatpush1.bf16.msra.mxu0 0
        %1251 = vmatprep.subr.bf16.mxu0 0
        %1252 = vmatpush1.bf16.msra.mxu0 0
        %1253 = vmatprep.subr.bf16.mxu0 0
        %1254 = vmatpush1.bf16.msra.mxu0 0
        %1255 = vmatprep.subr.bf16.mxu0 0
        %1256 = vmatpush1.bf16.msra.mxu0 0
        %1257 = vmatprep.subr.bf16.mxu0 0
        %1258 = vmatpush1.bf16.msra.mxu0 0
        %1259 = vmatprep.subr.bf16.mxu0 0
        %1260 = vmatpush1.bf16.msra.mxu0 0
        %1261 = vmatprep.subr.bf16.mxu0 0
        %1262 = vmatpush1.bf16.msra.mxu0 0
        %1263 = vmatprep.subr.bf16.mxu0 0
        %1264 = vmatpush1.bf16.msra.mxu0 0
        %1265 = vmatprep.subr.bf16.mxu0 0
        %1266 = vmatpush1.bf16.msra.mxu0 0
        %1267 = vmatprep.mubr.bf16.mxu0 0
        %1268 = vmatmul.mubr.bf16.gmra.mrb[0].mxu0 %v1233
        %v1269 = vpop.f32.mrb[0].mxu0
        %v1270 = vadd.f32 %v1214, %v1269
        %v1271 = vpop.f32.mrb[0].mxu0
        %v1272 = vpop.f32.mrb[0].mxu0
        %v1273 = vadd.f32 %v1217, %v1272
        %v1274 = vpop.f32.mrb[0].mxu0
        %1275 = vdwg.mxu0
        %1276 = vrot.lane.b32.xlu0 %v904, 64
        %v1277 = vpop.permute.xlu0 %1276
        %1278 = vrot.lane.b32.xlu0 %v905, 64
        %v1279 = vpop.permute.xlu0 %1278
        %v1281 = vsel %vm912, %v1277, 0
        %v1284 = vsel %vm912, %v1279, 0
        %1286 = vmatprep.subr.bf16.mxu0 0
        %1287 = vmatpush1.bf16.xpose.msra.mxu0 %v1284
        %1288 = vmatprep.subr.bf16.mxu0 0
        %1289 = vmatpush1.bf16.xpose.msra.mxu0 0
        %1290 = vmatprep.subr.bf16.mxu0 0
        %1291 = vmatpush1.bf16.xpose.msra.mxu0 0
        %1292 = vmatprep.subr.bf16.mxu0 0
        %1293 = vmatpush1.bf16.xpose.msra.mxu0 0
        %1294 = vmatprep.subr.bf16.mxu0 0
        %1295 = vmatpush1.bf16.xpose.msra.mxu0 0
        %1296 = vmatprep.subr.bf16.mxu0 0
        %1297 = vmatpush1.bf16.xpose.msra.mxu0 0
        %1298 = vmatprep.subr.bf16.mxu0 0
        %1299 = vmatpush1.bf16.xpose.msra.mxu0 0
        %1300 = vmatprep.subr.bf16.mxu0 0
        %1301 = vmatpush1.bf16.xpose.msra.mxu0 0
        %1302 = vmatprep.subr.bf16.mxu0 0
        %1303 = vmatpush1.bf16.xpose.msra.mxu0 0
        %1304 = vmatprep.subr.bf16.mxu0 0
        %1305 = vmatpush1.bf16.xpose.msra.mxu0 0
        %1306 = vmatprep.subr.bf16.mxu0 0
        %1307 = vmatpush1.bf16.xpose.msra.mxu0 0
        %1308 = vmatprep.subr.bf16.mxu0 0
        %1309 = vmatpush1.bf16.xpose.msra.mxu0 0
        %1310 = vmatprep.subr.bf16.mxu0 0
        %1311 = vmatpush1.bf16.xpose.msra.mxu0 0
        %1312 = vmatprep.subr.bf16.mxu0 0
        %1313 = vmatpush1.bf16.xpose.msra.mxu0 0
        %1314 = vmatprep.subr.bf16.mxu0 0
        %1315 = vmatpush1.bf16.xpose.msra.mxu0 0
        %1316 = vmatprep.subr.bf16.mxu0 0
        %1317 = vmatpush1.bf16.xpose.msra.mxu0 0
        %1318 = vmatprep.mubr.bf16.mxu0 0
        %1319 = vmatmul.mubr.bf16.gmra.mrb[0].mxu0 %v1281
        %v1320 = vpop.f32.mrb[0].mxu0
        %v1321 = vadd.f32 %v910, %v1320
        %v1322 = vpop.f32.mrb[0].mxu0
        %v1323 = vpop.f32.mrb[0].mxu0
        %v1324 = vadd.f32 %v910, %v1323
        %v1325 = vpop.f32.mrb[0].mxu0
        %1326 = vdwg.mxu0
        %v1327 = vsel %vm960, %v1321, -inf
        %1328 = vmax.xlane.f32.xlu0 %v1327
        %v1329 = vpop.xlane.xlu0 %1328
        %v1330 = vsel %vm960, %v1324, -inf
        %1331 = vmax.xlane.f32.xlu0 %v1330
        %v1332 = vpop.xlane.xlu0 %1331
        %v1333 = vsub.f32 %v1321, %v1329
        %v1334 = vsub.f32 %v1324, %v1332
        %v1335 = vmul.f32 %v1333, 1.442695
        %v1336 = vpow.pop %v1335
        %v1337 = vmul.f32 %v1334, 1.442695
        %v1338 = vpow.pop %v1337
        %v1339 = vsel %vm960, %v1336, 0.0
        %1340 = vadd.xlane.f32.xlu0 %v1339
        %v1341 = vpop.xlane.xlu0 %1340
        %v1342 = vsel %vm960, %v1338, 0.0
        %1343 = vadd.xlane.f32.xlu0 %v1342
        %v1344 = vpop.xlane.xlu0 %1343
        %v1345 = vrcp.pop %v1341
        %v1346 = vrcp.pop %v1344
        %v1347 = vmul.f32 %v1336, %v1345
        %v1348 = vmul.f32 %v1338, %v1346
        %v1349 = vpack.c.bf16 %v1348, %v1347
        %1350 = vrot.lane.b32.xlu0 %v984, 64
        %v1351 = vpop.permute.xlu0 %1350
        %v1354 = vsel %vm960, %v1349, 0
        %1356 = vmatprep.subr.bf16.mxu0 0
        %1357 = vmatpush1.bf16.msra.mxu0 %v1351
        %1358 = vmatprep.subr.bf16.mxu0 0
        %1359 = vmatpush1.bf16.msra.mxu0 0
        %1360 = vmatprep.subr.bf16.mxu0 0
        %1361 = vmatpush1.bf16.msra.mxu0 0
        %1362 = vmatprep.subr.bf16.mxu0 0
        %1363 = vmatpush1.bf16.msra.mxu0 0
        %1364 = vmatprep.subr.bf16.mxu0 0
        %1365 = vmatpush1.bf16.msra.mxu0 0
        %1366 = vmatprep.subr.bf16.mxu0 0
        %1367 = vmatpush1.bf16.msra.mxu0 0
        %1368 = vmatprep.subr.bf16.mxu0 0
        %1369 = vmatpush1.bf16.msra.mxu0 0
        %1370 = vmatprep.subr.bf16.mxu0 0
        %1371 = vmatpush1.bf16.msra.mxu0 0
        %1372 = vmatprep.subr.bf16.mxu0 0
        %1373 = vmatpush1.bf16.msra.mxu0 0
        %1374 = vmatprep.subr.bf16.mxu0 0
        %1375 = vmatpush1.bf16.msra.mxu0 0
        %1376 = vmatprep.subr.bf16.mxu0 0
        %1377 = vmatpush1.bf16.msra.mxu0 0
        %1378 = vmatprep.subr.bf16.mxu0 0
        %1379 = vmatpush1.bf16.msra.mxu0 0
        %1380 = vmatprep.subr.bf16.mxu0 0
        %1381 = vmatpush1.bf16.msra.mxu0 0
        %1382 = vmatprep.subr.bf16.mxu0 0
        %1383 = vmatpush1.bf16.msra.mxu0 0
        %1384 = vmatprep.subr.bf16.mxu0 0
        %1385 = vmatpush1.bf16.msra.mxu0 0
        %1386 = vmatprep.subr.bf16.mxu0 0
        %1387 = vmatpush1.bf16.msra.mxu0 0
        %1388 = vmatprep.mubr.bf16.mxu0 0
        %1389 = vmatmul.mubr.bf16.gmra.mrb[0].mxu0 %v1354
        %v1390 = vpop.f32.mrb[0].mxu0
        %v1391 = vadd.f32 0.0, %v1390
        %v1392 = vpop.f32.mrb[0].mxu0
        %v1393 = vpop.f32.mrb[0].mxu0
        %v1394 = vadd.f32 0.0, %v1393
        %v1395 = vpop.f32.mrb[0].mxu0
        %1396 = vdwg.mxu0
        %v1397 = vpack.c.bf16 %v1394, %v1391
        %s1398 = scalar_lea.vmem [#allocation11], 32
        %v1399 = vld [vmem:[%s1398] sm:$0xf]
        %v1400 = vld [vmem:[%s1398 + $0x4] sm:$0xf]
        %v1401 = vld [vmem:[%s1398 + $0x8] sm:$0xf]
        %v1402 = vld [vmem:[%s1398 + $0xc] sm:$0xf]
        %v1407 = vunpack.c.l.b16 %v1399
        %v1408 = vunpack.c.l.b16 %v1400
        %v1409 = vunpack.c.l.b16 %v1401
        %v1410 = vunpack.c.l.b16 %v1402
        %v1411 = vpack.c.b16 %v1408, %v1407
        %v1412 = vpack.c.b16 %v1410, %v1409
        %v1416 = vsel %vm912, %v1397, 0
        %1418 = vmatprep.subr.bf16.mxu0 0
        %1419 = vmatpush1.bf16.msra.mxu0 %v1411
        %1420 = vmatprep.subr.bf16.mxu0 0
        %1421 = vmatpush1.bf16.msra.mxu0 %v1412
        %1422 = vmatprep.subr.bf16.mxu0 0
        %1423 = vmatpush1.bf16.msra.mxu0 0
        %1424 = vmatprep.subr.bf16.mxu0 0
        %1425 = vmatpush1.bf16.msra.mxu0 0
        %1426 = vmatprep.subr.bf16.mxu0 0
        %1427 = vmatpush1.bf16.msra.mxu0 0
        %1428 = vmatprep.subr.bf16.mxu0 0
        %1429 = vmatpush1.bf16.msra.mxu0 0
        %1430 = vmatprep.subr.bf16.mxu0 0
        %1431 = vmatpush1.bf16.msra.mxu0 0
        %1432 = vmatprep.subr.bf16.mxu0 0
        %1433 = vmatpush1.bf16.msra.mxu0 0
        %1434 = vmatprep.subr.bf16.mxu0 0
        %1435 = vmatpush1.bf16.msra.mxu0 0
        %1436 = vmatprep.subr.bf16.mxu0 0
        %1437 = vmatpush1.bf16.msra.mxu0 0
        %1438 = vmatprep.subr.bf16.mxu0 0
        %1439 = vmatpush1.bf16.msra.mxu0 0
        %1440 = vmatprep.subr.bf16.mxu0 0
        %1441 = vmatpush1.bf16.msra.mxu0 0
        %1442 = vmatprep.subr.bf16.mxu0 0
        %1443 = vmatpush1.bf16.msra.mxu0 0
        %1444 = vmatprep.subr.bf16.mxu0 0
        %1445 = vmatpush1.bf16.msra.mxu0 0
        %1446 = vmatprep.subr.bf16.mxu0 0
        %1447 = vmatpush1.bf16.msra.mxu0 0
        %1448 = vmatprep.subr.bf16.mxu0 0
        %1449 = vmatpush1.bf16.msra.mxu0 0
        %1450 = vmatprep.mubr.bf16.mxu0 0
        %1451 = vmatmul.mubr.bf16.gmra.mrb[0].mxu0 %v1416
        %v1452 = vpop.f32.mrb[0].mxu0
        %v1453 = vadd.f32 0.0, %v1452
        %v1454 = vpop.f32.mrb[0].mxu0
        %v1455 = vpop.f32.mrb[0].mxu0
        %v1456 = vadd.f32 0.0, %v1455
        %v1457 = vpop.f32.mrb[0].mxu0
        %1458 = vdwg.mxu0
        %v1459 = vadd.f32 %v1270, %v1453
        %v1460 = vadd.f32 %v1273, %v1456
        %1461 = vrot.lane.b32.xlu0 %v904, 32
        %v1462 = vpop.permute.xlu0 %1461
        %1463 = vrot.lane.b32.xlu0 %v905, 32
        %v1464 = vpop.permute.xlu0 %1463
        %v1466 = vsel %vm912, %v1462, 0
        %v1469 = vsel %vm912, %v1464, 0
        %1471 = vmatprep.subr.bf16.mxu0 0
        %1472 = vmatpush1.bf16.xpose.msra.mxu0 %v1469
        %1473 = vmatprep.subr.bf16.mxu0 0
        %1474 = vmatpush1.bf16.xpose.msra.mxu0 0
        %1475 = vmatprep.subr.bf16.mxu0 0
        %1476 = vmatpush1.bf16.xpose.msra.mxu0 0
        %1477 = vmatprep.subr.bf16.mxu0 0
        %1478 = vmatpush1.bf16.xpose.msra.mxu0 0
        %1479 = vmatprep.subr.bf16.mxu0 0
        %1480 = vmatpush1.bf16.xpose.msra.mxu0 0
        %1481 = vmatprep.subr.bf16.mxu0 0
        %1482 = vmatpush1.bf16.xpose.msra.mxu0 0
        %1483 = vmatprep.subr.bf16.mxu0 0
        %1484 = vmatpush1.bf16.xpose.msra.mxu0 0
        %1485 = vmatprep.subr.bf16.mxu0 0
        %1486 = vmatpush1.bf16.xpose.msra.mxu0 0
        %1487 = vmatprep.subr.bf16.mxu0 0
        %1488 = vmatpush1.bf16.xpose.msra.mxu0 0
        %1489 = vmatprep.subr.bf16.mxu0 0
        %1490 = vmatpush1.bf16.xpose.msra.mxu0 0
        %1491 = vmatprep.subr.bf16.mxu0 0
        %1492 = vmatpush1.bf16.xpose.msra.mxu0 0
        %1493 = vmatprep.subr.bf16.mxu0 0
        %1494 = vmatpush1.bf16.xpose.msra.mxu0 0
        %1495 = vmatprep.subr.bf16.mxu0 0
        %1496 = vmatpush1.bf16.xpose.msra.mxu0 0
        %1497 = vmatprep.subr.bf16.mxu0 0
        %1498 = vmatpush1.bf16.xpose.msra.mxu0 0
        %1499 = vmatprep.subr.bf16.mxu0 0
        %1500 = vmatpush1.bf16.xpose.msra.mxu0 0
        %1501 = vmatprep.subr.bf16.mxu0 0
        %1502 = vmatpush1.bf16.xpose.msra.mxu0 0
        %1503 = vmatprep.mubr.bf16.mxu0 0
        %1504 = vmatmul.mubr.bf16.gmra.mrb[0].mxu0 %v1466
        %v1505 = vpop.f32.mrb[0].mxu0
        %v1506 = vadd.f32 %v910, %v1505
        %v1507 = vpop.f32.mrb[0].mxu0
        %v1508 = vpop.f32.mrb[0].mxu0
        %v1509 = vadd.f32 %v910, %v1508
        %v1510 = vpop.f32.mrb[0].mxu0
        %1511 = vdwg.mxu0
        %v1512 = vsel %vm960, %v1506, -inf
        %1513 = vmax.xlane.f32.xlu0 %v1512
        %v1514 = vpop.xlane.xlu0 %1513
        %v1515 = vsel %vm960, %v1509, -inf
        %1516 = vmax.xlane.f32.xlu0 %v1515
        %v1517 = vpop.xlane.xlu0 %1516
        %v1518 = vsub.f32 %v1506, %v1514
        %v1519 = vsub.f32 %v1509, %v1517
        %v1520 = vmul.f32 %v1518, 1.442695
        %v1521 = vpow.pop %v1520
        %v1522 = vmul.f32 %v1519, 1.442695
        %v1523 = vpow.pop %v1522
        %v1524 = vsel %vm960, %v1521, 0.0
        %1525 = vadd.xlane.f32.xlu0 %v1524
        %v1526 = vpop.xlane.xlu0 %1525
        %v1527 = vsel %vm960, %v1523, 0.0
        %1528 = vadd.xlane.f32.xlu0 %v1527
        %v1529 = vpop.xlane.xlu0 %1528
        %v1530 = vrcp.pop %v1526
        %v1531 = vrcp.pop %v1529
        %v1532 = vmul.f32 %v1521, %v1530
        %v1533 = vmul.f32 %v1523, %v1531
        %v1534 = vpack.c.bf16 %v1533, %v1532
        %1535 = vrot.lane.b32.xlu0 %v984, 32
        %v1536 = vpop.permute.xlu0 %1535
        %v1539 = vsel %vm960, %v1534, 0
        %1541 = vmatprep.subr.bf16.mxu0 0
        %1542 = vmatpush1.bf16.msra.mxu0 %v1536
        %1543 = vmatprep.subr.bf16.mxu0 0
        %1544 = vmatpush1.bf16.msra.mxu0 0
        %1545 = vmatprep.subr.bf16.mxu0 0
        %1546 = vmatpush1.bf16.msra.mxu0 0
        %1547 = vmatprep.subr.bf16.mxu0 0
        %1548 = vmatpush1.bf16.msra.mxu0 0
        %1549 = vmatprep.subr.bf16.mxu0 0
        %1550 = vmatpush1.bf16.msra.mxu0 0
        %1551 = vmatprep.subr.bf16.mxu0 0
        %1552 = vmatpush1.bf16.msra.mxu0 0
        %1553 = vmatprep.subr.bf16.mxu0 0
        %1554 = vmatpush1.bf16.msra.mxu0 0
        %1555 = vmatprep.subr.bf16.mxu0 0
        %1556 = vmatpush1.bf16.msra.mxu0 0
        %1557 = vmatprep.subr.bf16.mxu0 0
        %1558 = vmatpush1.bf16.msra.mxu0 0
        %1559 = vmatprep.subr.bf16.mxu0 0
        %1560 = vmatpush1.bf16.msra.mxu0 0
        %1561 = vmatprep.subr.bf16.mxu0 0
        %1562 = vmatpush1.bf16.msra.mxu0 0
        %1563 = vmatprep.subr.bf16.mxu0 0
        %1564 = vmatpush1.bf16.msra.mxu0 0
        %1565 = vmatprep.subr.bf16.mxu0 0
        %1566 = vmatpush1.bf16.msra.mxu0 0
        %1567 = vmatprep.subr.bf16.mxu0 0
        %1568 = vmatpush1.bf16.msra.mxu0 0
        %1569 = vmatprep.subr.bf16.mxu0 0
        %1570 = vmatpush1.bf16.msra.mxu0 0
        %1571 = vmatprep.subr.bf16.mxu0 0
        %1572 = vmatpush1.bf16.msra.mxu0 0
        %1573 = vmatprep.mubr.bf16.mxu0 0
        %1574 = vmatmul.mubr.bf16.gmra.mrb[0].mxu0 %v1539
        %v1575 = vpop.f32.mrb[0].mxu0
        %v1576 = vadd.f32 0.0, %v1575
        %v1577 = vpop.f32.mrb[0].mxu0
        %v1578 = vpop.f32.mrb[0].mxu0
        %v1579 = vadd.f32 0.0, %v1578
        %v1580 = vpop.f32.mrb[0].mxu0
        %1581 = vdwg.mxu0
        %v1582 = vpack.c.bf16 %v1579, %v1576
        %s1583 = scalar_lea.vmem [#allocation11], 48
        %v1584 = vld [vmem:[%s1583] sm:$0xf]
        %v1585 = vld [vmem:[%s1583 + $0x4] sm:$0xf]
        %v1586 = vld [vmem:[%s1583 + $0x8] sm:$0xf]
        %v1587 = vld [vmem:[%s1583 + $0xc] sm:$0xf]
        %v1592 = vunpack.c.l.b16 %v1584
        %v1593 = vunpack.c.l.b16 %v1585
        %v1594 = vunpack.c.l.b16 %v1586
        %v1595 = vunpack.c.l.b16 %v1587
        %v1596 = vpack.c.b16 %v1593, %v1592
        %v1597 = vpack.c.b16 %v1595, %v1594
        %v1601 = vsel %vm912, %v1582, 0
        %1603 = vmatprep.subr.bf16.mxu0 0
        %1604 = vmatpush1.bf16.msra.mxu0 %v1596
        %1605 = vmatprep.subr.bf16.mxu0 0
        %1606 = vmatpush1.bf16.msra.mxu0 %v1597
        %1607 = vmatprep.subr.bf16.mxu0 0
        %1608 = vmatpush1.bf16.msra.mxu0 0
        %1609 = vmatprep.subr.bf16.mxu0 0
        %1610 = vmatpush1.bf16.msra.mxu0 0
        %1611 = vmatprep.subr.bf16.mxu0 0
        %1612 = vmatpush1.bf16.msra.mxu0 0
        %1613 = vmatprep.subr.bf16.mxu0 0
        %1614 = vmatpush1.bf16.msra.mxu0 0
        %1615 = vmatprep.subr.bf16.mxu0 0
        %1616 = vmatpush1.bf16.msra.mxu0 0
        %1617 = vmatprep.subr.bf16.mxu0 0
        %1618 = vmatpush1.bf16.msra.mxu0 0
        %1619 = vmatprep.subr.bf16.mxu0 0
        %1620 = vmatpush1.bf16.msra.mxu0 0
        %1621 = vmatprep.subr.bf16.mxu0 0
        %1622 = vmatpush1.bf16.msra.mxu0 0
        %1623 = vmatprep.subr.bf16.mxu0 0
        %1624 = vmatpush1.bf16.msra.mxu0 0
        %1625 = vmatprep.subr.bf16.mxu0 0
        %1626 = vmatpush1.bf16.msra.mxu0 0
        %1627 = vmatprep.subr.bf16.mxu0 0
        %1628 = vmatpush1.bf16.msra.mxu0 0
        %1629 = vmatprep.subr.bf16.mxu0 0
        %1630 = vmatpush1.bf16.msra.mxu0 0
        %1631 = vmatprep.subr.bf16.mxu0 0
        %1632 = vmatpush1.bf16.msra.mxu0 0
        %1633 = vmatprep.subr.bf16.mxu0 0
        %1634 = vmatpush1.bf16.msra.mxu0 0
        %1635 = vmatprep.mubr.bf16.mxu0 0
        %1636 = vmatmul.mubr.bf16.gmra.mrb[0].mxu0 %v1601
        %v1637 = vpop.f32.mrb[0].mxu0
        %v1638 = vadd.f32 0.0, %v1637
        %v1639 = vpop.f32.mrb[0].mxu0
        %v1640 = vpop.f32.mrb[0].mxu0
        %v1641 = vadd.f32 0.0, %v1640
        %v1642 = vpop.f32.mrb[0].mxu0
        %1643 = vdwg.mxu0
        %v1644 = vadd.f32 %v1459, %v1638
        %v1645 = vadd.f32 %v1460, %v1641
        %v1646 = vadd.f32 %v590, %v1644
        %v1647 = vadd.f32 %v591, %v1645
        %v1648 = vld [vmem:[%s8] sm:$0x1]
        %v1649 = vmul.f32 %v1646, %v1646
        %v1650 = vmul.f32 %v1647, %v1647
        %1651 = vadd.xlane.f32.xlu0 %v1649
        %v1652 = vpop.xlane.xlu0 %1651
        %1653 = vadd.xlane.f32.xlu0 %v1650
        %v1654 = vpop.xlane.xlu0 %1653
        %v1655 = vmul.f32 %v1652, %v606
        %v1656 = vmul.f32 %v1654, %v606
        %v1657 = vadd.f32 %v1655, 1e-06
        %v1658 = vadd.f32 %v1656, 1e-06
        %v1659 = vrsqrt.pop %v1657
        %v1660 = vrsqrt.pop %v1658
        %v1661 = vmul.f32 %v1646, %v1659
        %v1662 = vmul.f32 %v1647, %v1660
        %v1664 = vlaneseq
        %v1665 = vshrl.u32 %v1664, 7
        %v1666 = vsub.s32 0, %v1665
        %v1667 = vrot.slane %v1648, %v1666
        %v1669 = vmul.f32 %v1661, %v1667
        %v1670 = vmul.f32 %v1662, %v1667
        %v1671 = vpack.c.bf16 %v1670, %v1669
        %v1672 = vld [vmem:[#allocation13] sm:$0xff]
        %v1673 = vld [vmem:[#allocation13 + $0x8] sm:$0xff]
        %v1674 = vld [vmem:[#allocation13 + $0x10] sm:$0xff]
        %v1675 = vld [vmem:[#allocation13 + $0x18] sm:$0xff]
        %v1676 = vld [vmem:[#allocation13 + $0x20] sm:$0xff]
        %v1677 = vld [vmem:[#allocation13 + $0x28] sm:$0xff]
        %v1678 = vld [vmem:[#allocation13 + $0x30] sm:$0xff]
        %v1679 = vld [vmem:[#allocation13 + $0x38] sm:$0xff]
        %v1680 = vld [vmem:[#allocation13 + $0x40] sm:$0xff]
        %v1681 = vld [vmem:[#allocation13 + $0x48] sm:$0xff]
        %v1682 = vld [vmem:[#allocation13 + $0x50] sm:$0xff]
        %v1683 = vld [vmem:[#allocation13 + $0x58] sm:$0xff]
        %v1684 = vld [vmem:[#allocation13 + $0x60] sm:$0xff]
        %v1685 = vld [vmem:[#allocation13 + $0x68] sm:$0xff]
        %v1686 = vld [vmem:[#allocation13 + $0x70] sm:$0xff]
        %v1687 = vld [vmem:[#allocation13 + $0x78] sm:$0xff]
        %v1688 = vld [vmem:[#allocation13 + $0x80] sm:$0xff]
        %v1689 = vld [vmem:[#allocation13 + $0x88] sm:$0xff]
        %v1690 = vld [vmem:[#allocation13 + $0x90] sm:$0xff]
        %v1691 = vld [vmem:[#allocation13 + $0x98] sm:$0xff]
        %v1692 = vld [vmem:[#allocation13 + $0xa0] sm:$0xff]
        %v1693 = vld [vmem:[#allocation13 + $0xa8] sm:$0xff]
        %v1694 = vld [vmem:[#allocation13 + $0xb0] sm:$0xff]
        %v1695 = vld [vmem:[#allocation13 + $0xb8] sm:$0xff]
        %v1696 = vld [vmem:[#allocation13 + $0xc0] sm:$0xff]
        %v1697 = vld [vmem:[#allocation13 + $0xc8] sm:$0xff]
        %v1698 = vld [vmem:[#allocation13 + $0xd0] sm:$0xff]
        %v1699 = vld [vmem:[#allocation13 + $0xd8] sm:$0xff]
        %v1700 = vld [vmem:[#allocation13 + $0xe0] sm:$0xff]
        %v1701 = vld [vmem:[#allocation13 + $0xe8] sm:$0xff]
        %v1702 = vld [vmem:[#allocation13 + $0xf0] sm:$0xff]
        %v1703 = vld [vmem:[#allocation13 + $0xf8] sm:$0xff]
        %v1736 = vunpack.c.l.b16 %v1672
        %v1737 = vunpack.c.h.b16 %v1672
        %v1738 = vunpack.c.l.b16 %v1673
        %v1739 = vunpack.c.h.b16 %v1673
        %v1740 = vunpack.c.l.b16 %v1674
        %v1741 = vunpack.c.h.b16 %v1674
        %v1742 = vunpack.c.l.b16 %v1675
        %v1743 = vunpack.c.h.b16 %v1675
        %v1744 = vunpack.c.l.b16 %v1676
        %v1745 = vunpack.c.h.b16 %v1676
        %v1746 = vunpack.c.l.b16 %v1677
        %v1747 = vunpack.c.h.b16 %v1677
        %v1748 = vunpack.c.l.b16 %v1678
        %v1749 = vunpack.c.h.b16 %v1678
        %v1750 = vunpack.c.l.b16 %v1679
        %v1751 = vunpack.c.h.b16 %v1679
        %v1752 = vunpack.c.l.b16 %v1680
        %v1753 = vunpack.c.h.b16 %v1680
        %v1754 = vunpack.c.l.b16 %v1681
        %v1755 = vunpack.c.h.b16 %v1681
        %v1756 = vunpack.c.l.b16 %v1682
        %v1757 = vunpack.c.h.b16 %v1682
        %v1758 = vunpack.c.l.b16 %v1683
        %v1759 = vunpack.c.h.b16 %v1683
        %v1760 = vunpack.c.l.b16 %v1684
        %v1761 = vunpack.c.h.b16 %v1684
        %v1762 = vunpack.c.l.b16 %v1685
        %v1763 = vunpack.c.h.b16 %v1685
        %v1764 = vunpack.c.l.b16 %v1686
        %v1765 = vunpack.c.h.b16 %v1686
        %v1766 = vunpack.c.l.b16 %v1687
        %v1767 = vunpack.c.h.b16 %v1687
        %v1768 = vunpack.c.l.b16 %v1688
        %v1769 = vunpack.c.h.b16 %v1688
        %v1770 = vunpack.c.l.b16 %v1689
        %v1771 = vunpack.c.h.b16 %v1689
        %v1772 = vunpack.c.l.b16 %v1690
        %v1773 = vunpack.c.h.b16 %v1690
        %v1774 = vunpack.c.l.b16 %v1691
        %v1775 = vunpack.c.h.b16 %v1691
        %v1776 = vunpack.c.l.b16 %v1692
        %v1777 = vunpack.c.h.b16 %v1692
        %v1778 = vunpack.c.l.b16 %v1693
        %v1779 = vunpack.c.h.b16 %v1693
        %v1780 = vunpack.c.l.b16 %v1694
        %v1781 = vunpack.c.h.b16 %v1694
        %v1782 = vunpack.c.l.b16 %v1695
        %v1783 = vunpack.c.h.b16 %v1695
        %v1784 = vunpack.c.l.b16 %v1696
        %v1785 = vunpack.c.h.b16 %v1696
        %v1786 = vunpack.c.l.b16 %v1697
        %v1787 = vunpack.c.h.b16 %v1697
        %v1788 = vunpack.c.l.b16 %v1698
        %v1789 = vunpack.c.h.b16 %v1698
        %v1790 = vunpack.c.l.b16 %v1699
        %v1791 = vunpack.c.h.b16 %v1699
        %v1792 = vunpack.c.l.b16 %v1700
        %v1793 = vunpack.c.h.b16 %v1700
        %v1794 = vunpack.c.l.b16 %v1701
        %v1795 = vunpack.c.h.b16 %v1701
        %v1796 = vunpack.c.l.b16 %v1702
        %v1797 = vunpack.c.h.b16 %v1702
        %v1798 = vunpack.c.l.b16 %v1703
        %v1799 = vunpack.c.h.b16 %v1703
        %v1800 = vpack.c.b16 %v1740, %v1736
        %v1801 = vpack.c.b16 %v1741, %v1737
        %v1802 = vpack.c.b16 %v1742, %v1738
        %v1803 = vpack.c.b16 %v1743, %v1739
        %v1804 = vpack.c.b16 %v1748, %v1744
        %v1805 = vpack.c.b16 %v1749, %v1745
        %v1806 = vpack.c.b16 %v1750, %v1746
        %v1807 = vpack.c.b16 %v1751, %v1747
        %v1808 = vpack.c.b16 %v1756, %v1752
        %v1809 = vpack.c.b16 %v1757, %v1753
        %v1810 = vpack.c.b16 %v1758, %v1754
        %v1811 = vpack.c.b16 %v1759, %v1755
        %v1812 = vpack.c.b16 %v1764, %v1760
        %v1813 = vpack.c.b16 %v1765, %v1761
        %v1814 = vpack.c.b16 %v1766, %v1762
        %v1815 = vpack.c.b16 %v1767, %v1763
        %v1816 = vpack.c.b16 %v1772, %v1768
        %v1817 = vpack.c.b16 %v1773, %v1769
        %v1818 = vpack.c.b16 %v1774, %v1770
        %v1819 = vpack.c.b16 %v1775, %v1771
        %v1820 = vpack.c.b16 %v1780, %v1776
        %v1821 = vpack.c.b16 %v1781, %v1777
        %v1822 = vpack.c.b16 %v1782, %v1778
        %v1823 = vpack.c.b16 %v1783, %v1779
        %v1824 = vpack.c.b16 %v1788, %v1784
        %v1825 = vpack.c.b16 %v1789, %v1785
        %v1826 = vpack.c.b16 %v1790, %v1786
        %v1827 = vpack.c.b16 %v1791, %v1787
        %v1828 = vpack.c.b16 %v1796, %v1792
        %v1829 = vpack.c.b16 %v1797, %v1793
        %v1830 = vpack.c.b16 %v1798, %v1794
        %v1831 = vpack.c.b16 %v1799, %v1795
        %1864 = vmatprep.subr.bf16.mxu0 %v1801
        %1865 = vmatpush1.bf16.msra.mxu0 %v1800
        %1866 = vmatprep.subr.bf16.mxu0 %v1805
        %1867 = vmatpush1.bf16.msra.mxu0 %v1804
        %1868 = vmatprep.subr.bf16.mxu0 %v1809
        %1869 = vmatpush1.bf16.msra.mxu0 %v1808
        %1870 = vmatprep.subr.bf16.mxu0 %v1813
        %1871 = vmatpush1.bf16.msra.mxu0 %v1812
        %1872 = vmatprep.subr.bf16.mxu0 %v1817
        %1873 = vmatpush1.bf16.msra.mxu0 %v1816
        %1874 = vmatprep.subr.bf16.mxu0 %v1821
        %1875 = vmatpush1.bf16.msra.mxu0 %v1820
        %1876 = vmatprep.subr.bf16.mxu0 %v1825
        %1877 = vmatpush1.bf16.msra.mxu0 %v1824
        %1878 = vmatprep.subr.bf16.mxu0 %v1829
        %1879 = vmatpush1.bf16.msra.mxu0 %v1828
        %1880 = vmatprep.subr.bf16.mxu0 0
        %1881 = vmatpush1.bf16.msra.mxu0 0
        %1882 = vmatprep.subr.bf16.mxu0 0
        %1883 = vmatpush1.bf16.msra.mxu0 0
        %1884 = vmatprep.subr.bf16.mxu0 0
        %1885 = vmatpush1.bf16.msra.mxu0 0
        %1886 = vmatprep.subr.bf16.mxu0 0
        %1887 = vmatpush1.bf16.msra.mxu0 0
        %1888 = vmatprep.subr.bf16.mxu0 0
        %1889 = vmatpush1.bf16.msra.mxu0 0
        %1890 = vmatprep.subr.bf16.mxu0 0
        %1891 = vmatpush1.bf16.msra.mxu0 0
        %1892 = vmatprep.subr.bf16.mxu0 0
        %1893 = vmatpush1.bf16.msra.mxu0 0
        %1894 = vmatprep.subr.bf16.mxu0 0
        %1895 = vmatpush1.bf16.msra.mxu0 0
        %1896 = vmatprep.mubr.bf16.mxu0 0
        %1897 = vmatmul.mubr.bf16.gmra.mrb[0].mxu0 %v1671
        %v1898 = vpop.f32.mrb[0].mxu0
        %v1899 = vadd.f32 0.0, %v1898
        %v1900 = vpop.f32.mrb[0].mxu0
        %v1901 = vadd.f32 0.0, %v1900
        %v1902 = vpop.f32.mrb[0].mxu0
        %v1903 = vadd.f32 0.0, %v1902
        %v1904 = vpop.f32.mrb[0].mxu0
        %v1905 = vadd.f32 0.0, %v1904
        %1906 = vdwg.mxu0
        %1907 = vmatprep.subr.bf16.mxu0 %v1803
        %1908 = vmatpush1.bf16.msra.mxu0 %v1802
        %1909 = vmatprep.subr.bf16.mxu0 %v1807
        %1910 = vmatpush1.bf16.msra.mxu0 %v1806
        %1911 = vmatprep.subr.bf16.mxu0 %v1811
        %1912 = vmatpush1.bf16.msra.mxu0 %v1810
        %1913 = vmatprep.subr.bf16.mxu0 %v1815
        %1914 = vmatpush1.bf16.msra.mxu0 %v1814
        %1915 = vmatprep.subr.bf16.mxu0 %v1819
        %1916 = vmatpush1.bf16.msra.mxu0 %v1818
        %1917 = vmatprep.subr.bf16.mxu0 %v1823
        %1918 = vmatpush1.bf16.msra.mxu0 %v1822
        %1919 = vmatprep.subr.bf16.mxu0 %v1827
        %1920 = vmatpush1.bf16.msra.mxu0 %v1826
        %1921 = vmatprep.subr.bf16.mxu0 %v1831
        %1922 = vmatpush1.bf16.msra.mxu0 %v1830
        %1923 = vmatprep.subr.bf16.mxu0 0
        %1924 = vmatpush1.bf16.msra.mxu0 0
        %1925 = vmatprep.subr.bf16.mxu0 0
        %1926 = vmatpush1.bf16.msra.mxu0 0
        %1927 = vmatprep.subr.bf16.mxu0 0
        %1928 = vmatpush1.bf16.msra.mxu0 0
        %1929 = vmatprep.subr.bf16.mxu0 0
        %1930 = vmatpush1.bf16.msra.mxu0 0
        %1931 = vmatprep.subr.bf16.mxu0 0
        %1932 = vmatpush1.bf16.msra.mxu0 0
        %1933 = vmatprep.subr.bf16.mxu0 0
        %1934 = vmatpush1.bf16.msra.mxu0 0
        %1935 = vmatprep.subr.bf16.mxu0 0
        %1936 = vmatpush1.bf16.msra.mxu0 0
        %1937 = vmatprep.subr.bf16.mxu0 0
        %1938 = vmatpush1.bf16.msra.mxu0 0
        %1939 = vmatprep.mubr.bf16.mxu0 0
        %1940 = vmatmul.mubr.bf16.gmra.mrb[0].mxu0 %v1671
        %v1941 = vpop.f32.mrb[0].mxu0
        %v1942 = vadd.f32 0.0, %v1941
        %v1943 = vpop.f32.mrb[0].mxu0
        %v1944 = vadd.f32 0.0, %v1943
        %v1945 = vpop.f32.mrb[0].mxu0
        %v1946 = vadd.f32 0.0, %v1945
        %v1947 = vpop.f32.mrb[0].mxu0
        %v1948 = vadd.f32 0.0, %v1947
        %1949 = vdwg.mxu0
        %v1950 = vxor.u32 %v1899, 2147483648
        %v1951 = vxor.u32 %v1901, 2147483648
        %v1952 = vxor.u32 %v1903, 2147483648
        %v1953 = vxor.u32 %v1905, 2147483648
        %v1954 = vmul.f32 %v1950, 1.442695
        %v1955 = vpow.pop %v1954
        %v1956 = vmul.f32 %v1951, 1.442695
        %v1957 = vpow.pop %v1956
        %v1958 = vmul.f32 %v1952, 1.442695
        %v1959 = vpow.pop %v1958
        %v1960 = vmul.f32 %v1953, 1.442695
        %v1961 = vpow.pop %v1960
        %v1962 = vadd.f32 %v1955, 1.0
        %v1963 = vadd.f32 %v1957, 1.0
        %v1964 = vadd.f32 %v1959, 1.0
        %v1965 = vadd.f32 %v1961, 1.0
        %v1966 = vrcp.pop %v1962
        %v1967 = vmul.f32 1.0, %v1966
        %v1968 = vrcp.pop %v1963
        %v1969 = vmul.f32 1.0, %v1968
        %v1970 = vrcp.pop %v1964
        %v1971 = vmul.f32 1.0, %v1970
        %v1972 = vrcp.pop %v1965
        %v1973 = vmul.f32 1.0, %v1972
        %v1974 = vmul.f32 %v1899, %v1967
        %v1975 = vmul.f32 %v1901, %v1969
        %v1976 = vmul.f32 %v1903, %v1971
        %v1977 = vmul.f32 %v1905, %v1973
        %v1978 = vmul.f32 %v1974, %v1942
        %v1979 = vmul.f32 %v1975, %v1944
        %v1980 = vmul.f32 %v1976, %v1946
        %v1981 = vmul.f32 %v1977, %v1948
        %v1982 = vpack.c.bf16 %v1980, %v1978
        %v1983 = vpack.c.bf16 %v1981, %v1979
        %v1984 = vld [vmem:[#allocation14] sm:$0xf]
        %v1985 = vld [vmem:[#allocation14 + $0x4] sm:$0xf]
        %v1986 = vld [vmem:[#allocation14 + $0x8] sm:$0xf]
        %v1987 = vld [vmem:[#allocation14 + $0xc] sm:$0xf]
        %v1988 = vld [vmem:[#allocation14 + $0x10] sm:$0xf]
        %v1989 = vld [vmem:[#allocation14 + $0x14] sm:$0xf]
        %v1990 = vld [vmem:[#allocation14 + $0x18] sm:$0xf]
        %v1991 = vld [vmem:[#allocation14 + $0x1c] sm:$0xf]
        %v1992 = vld [vmem:[#allocation14 + $0x20] sm:$0xf]
        %v1993 = vld [vmem:[#allocation14 + $0x24] sm:$0xf]
        %v1994 = vld [vmem:[#allocation14 + $0x28] sm:$0xf]
        %v1995 = vld [vmem:[#allocation14 + $0x2c] sm:$0xf]
        %v1996 = vld [vmem:[#allocation14 + $0x30] sm:$0xf]
        %v1997 = vld [vmem:[#allocation14 + $0x34] sm:$0xf]
        %v1998 = vld [vmem:[#allocation14 + $0x38] sm:$0xf]
        %v1999 = vld [vmem:[#allocation14 + $0x3c] sm:$0xf]
        %v2000 = vld [vmem:[#allocation14 + $0x40] sm:$0xf]
        %v2001 = vld [vmem:[#allocation14 + $0x44] sm:$0xf]
        %v2002 = vld [vmem:[#allocation14 + $0x48] sm:$0xf]
        %v2003 = vld [vmem:[#allocation14 + $0x4c] sm:$0xf]
        %v2004 = vld [vmem:[#allocation14 + $0x50] sm:$0xf]
        %v2005 = vld [vmem:[#allocation14 + $0x54] sm:$0xf]
        %v2006 = vld [vmem:[#allocation14 + $0x58] sm:$0xf]
        %v2007 = vld [vmem:[#allocation14 + $0x5c] sm:$0xf]
        %v2008 = vld [vmem:[#allocation14 + $0x60] sm:$0xf]
        %v2009 = vld [vmem:[#allocation14 + $0x64] sm:$0xf]
        %v2010 = vld [vmem:[#allocation14 + $0x68] sm:$0xf]
        %v2011 = vld [vmem:[#allocation14 + $0x6c] sm:$0xf]
        %v2012 = vld [vmem:[#allocation14 + $0x70] sm:$0xf]
        %v2013 = vld [vmem:[#allocation14 + $0x74] sm:$0xf]
        %v2014 = vld [vmem:[#allocation14 + $0x78] sm:$0xf]
        %v2015 = vld [vmem:[#allocation14 + $0x7c] sm:$0xf]
        %v2048 = vunpack.c.l.b16 %v1984
        %v2049 = vunpack.c.l.b16 %v1985
        %v2050 = vunpack.c.l.b16 %v1986
        %v2051 = vunpack.c.l.b16 %v1987
        %v2052 = vunpack.c.l.b16 %v1988
        %v2053 = vunpack.c.l.b16 %v1989
        %v2054 = vunpack.c.l.b16 %v1990
        %v2055 = vunpack.c.l.b16 %v1991
        %v2056 = vunpack.c.l.b16 %v1992
        %v2057 = vunpack.c.l.b16 %v1993
        %v2058 = vunpack.c.l.b16 %v1994
        %v2059 = vunpack.c.l.b16 %v1995
        %v2060 = vunpack.c.l.b16 %v1996
        %v2061 = vunpack.c.l.b16 %v1997
        %v2062 = vunpack.c.l.b16 %v1998
        %v2063 = vunpack.c.l.b16 %v1999
        %v2064 = vunpack.c.l.b16 %v2000
        %v2065 = vunpack.c.l.b16 %v2001
        %v2066 = vunpack.c.l.b16 %v2002
        %v2067 = vunpack.c.l.b16 %v2003
        %v2068 = vunpack.c.l.b16 %v2004
        %v2069 = vunpack.c.l.b16 %v2005
        %v2070 = vunpack.c.l.b16 %v2006
        %v2071 = vunpack.c.l.b16 %v2007
        %v2072 = vunpack.c.l.b16 %v2008
        %v2073 = vunpack.c.l.b16 %v2009
        %v2074 = vunpack.c.l.b16 %v2010
        %v2075 = vunpack.c.l.b16 %v2011
        %v2076 = vunpack.c.l.b16 %v2012
        %v2077 = vunpack.c.l.b16 %v2013
        %v2078 = vunpack.c.l.b16 %v2014
        %v2079 = vunpack.c.l.b16 %v2015
        %v2080 = vpack.c.b16 %v2049, %v2048
        %v2081 = vpack.c.b16 %v2051, %v2050
        %v2082 = vpack.c.b16 %v2053, %v2052
        %v2083 = vpack.c.b16 %v2055, %v2054
        %v2084 = vpack.c.b16 %v2057, %v2056
        %v2085 = vpack.c.b16 %v2059, %v2058
        %v2086 = vpack.c.b16 %v2061, %v2060
        %v2087 = vpack.c.b16 %v2063, %v2062
        %v2088 = vpack.c.b16 %v2065, %v2064
        %v2089 = vpack.c.b16 %v2067, %v2066
        %v2090 = vpack.c.b16 %v2069, %v2068
        %v2091 = vpack.c.b16 %v2071, %v2070
        %v2092 = vpack.c.b16 %v2073, %v2072
        %v2093 = vpack.c.b16 %v2075, %v2074
        %v2094 = vpack.c.b16 %v2077, %v2076
        %v2095 = vpack.c.b16 %v2079, %v2078
        %2112 = vmatprep.subr.bf16.mxu0 0
        %2113 = vmatpush1.bf16.msra.mxu0 %v2080
        %2114 = vmatprep.subr.bf16.mxu0 0
        %2115 = vmatpush1.bf16.msra.mxu0 %v2081
        %2116 = vmatprep.subr.bf16.mxu0 0
        %2117 = vmatpush1.bf16.msra.mxu0 %v2082
        %2118 = vmatprep.subr.bf16.mxu0 0
        %2119 = vmatpush1.bf16.msra.mxu0 %v2083
        %2120 = vmatprep.subr.bf16.mxu0 0
        %2121 = vmatpush1.bf16.msra.mxu0 %v2084
        %2122 = vmatprep.subr.bf16.mxu0 0
        %2123 = vmatpush1.bf16.msra.mxu0 %v2085
        %2124 = vmatprep.subr.bf16.mxu0 0
        %2125 = vmatpush1.bf16.msra.mxu0 %v2086
        %2126 = vmatprep.subr.bf16.mxu0 0
        %2127 = vmatpush1.bf16.msra.mxu0 %v2087
        %2128 = vmatprep.subr.bf16.mxu0 0
        %2129 = vmatpush1.bf16.msra.mxu0 %v2088
        %2130 = vmatprep.subr.bf16.mxu0 0
        %2131 = vmatpush1.bf16.msra.mxu0 %v2089
        %2132 = vmatprep.subr.bf16.mxu0 0
        %2133 = vmatpush1.bf16.msra.mxu0 %v2090
        %2134 = vmatprep.subr.bf16.mxu0 0
        %2135 = vmatpush1.bf16.msra.mxu0 %v2091
        %2136 = vmatprep.subr.bf16.mxu0 0
        %2137 = vmatpush1.bf16.msra.mxu0 %v2092
        %2138 = vmatprep.subr.bf16.mxu0 0
        %2139 = vmatpush1.bf16.msra.mxu0 %v2093
        %2140 = vmatprep.subr.bf16.mxu0 0
        %2141 = vmatpush1.bf16.msra.mxu0 %v2094
        %2142 = vmatprep.subr.bf16.mxu0 0
        %2143 = vmatpush1.bf16.msra.mxu0 %v2095
        %2144 = vmatprep.mubr.bf16.mxu0 %v1983
        %2145 = vmatmul.mubr.bf16.gmra.mrb[0].mxu0 %v1982
        %v2146 = vpop.f32.mrb[0].mxu0
        %v2147 = vadd.f32 0.0, %v2146
        %v2148 = vpop.f32.mrb[0].mxu0
        %v2149 = vpop.f32.mrb[0].mxu0
        %v2150 = vadd.f32 0.0, %v2149
        %v2151 = vpop.f32.mrb[0].mxu0
        %2152 = vdwg.mxu0
        %v2153 = vadd.f32 %v1646, %v2147
        %v2154 = vadd.f32 %v1647, %v2150
        %s2155 = scalar_lea.vmem %s5, 1
        %v2156 = vld [vmem:[%s2155] sm:$0x1]
        %v2157 = vmul.f32 %v2153, %v2153
        %v2158 = vmul.f32 %v2154, %v2154
        %2159 = vadd.xlane.f32.xlu0 %v2157
        %v2160 = vpop.xlane.xlu0 %2159
        %2161 = vadd.xlane.f32.xlu0 %v2158
        %v2162 = vpop.xlane.xlu0 %2161
        %v2163 = vmul.f32 %v2160, %v606
        %v2164 = vmul.f32 %v2162, %v606
        %v2165 = vadd.f32 %v2163, 1e-06
        %v2166 = vadd.f32 %v2164, 1e-06
        %v2167 = vrsqrt.pop %v2165
        %v2168 = vrsqrt.pop %v2166
        %v2169 = vmul.f32 %v2153, %v2167
        %v2170 = vmul.f32 %v2154, %v2168
        %v2172 = vlaneseq
        %v2173 = vshrl.u32 %v2172, 7
        %v2174 = vsub.s32 0, %v2173
        %v2175 = vrot.slane %v2156, %v2174
        %v2177 = vmul.f32 %v2169, %v2175
        %v2178 = vmul.f32 %v2170, %v2175
        %v2179 = vpack.c.bf16 %v2178, %v2177
        %s2180 = scalar_lea.vmem [#allocation10], 192
        %v2181 = vld [vmem:[%s2180] sm:$0xff]
        %v2182 = vld [vmem:[%s2180 + $0x8] sm:$0xf]
        %v2183 = vld [vmem:[%s2180 + $0xc] sm:$0xff]
        %v2184 = vld [vmem:[%s2180 + $0x14] sm:$0xf]
        %v2185 = vld [vmem:[%s2180 + $0x18] sm:$0xff]
        %v2186 = vld [vmem:[%s2180 + $0x20] sm:$0xf]
        %v2187 = vld [vmem:[%s2180 + $0x24] sm:$0xff]
        %v2188 = vld [vmem:[%s2180 + $0x2c] sm:$0xf]
        %v2189 = vld [vmem:[%s2180 + $0x30] sm:$0xff]
        %v2190 = vld [vmem:[%s2180 + $0x38] sm:$0xf]
        %v2191 = vld [vmem:[%s2180 + $0x3c] sm:$0xff]
        %v2192 = vld [vmem:[%s2180 + $0x44] sm:$0xf]
        %v2193 = vld [vmem:[%s2180 + $0x48] sm:$0xff]
        %v2194 = vld [vmem:[%s2180 + $0x50] sm:$0xf]
        %v2195 = vld [vmem:[%s2180 + $0x54] sm:$0xff]
        %v2196 = vld [vmem:[%s2180 + $0x5c] sm:$0xf]
        %v2197 = vld [vmem:[%s2180 + $0x60] sm:$0xff]
        %v2198 = vld [vmem:[%s2180 + $0x68] sm:$0xf]
        %v2199 = vld [vmem:[%s2180 + $0x6c] sm:$0xff]
        %v2200 = vld [vmem:[%s2180 + $0x74] sm:$0xf]
        %v2201 = vld [vmem:[%s2180 + $0x78] sm:$0xff]
        %v2202 = vld [vmem:[%s2180 + $0x80] sm:$0xf]
        %v2203 = vld [vmem:[%s2180 + $0x84] sm:$0xff]
        %v2204 = vld [vmem:[%s2180 + $0x8c] sm:$0xf]
        %v2205 = vld [vmem:[%s2180 + $0x90] sm:$0xff]
        %v2206 = vld [vmem:[%s2180 + $0x98] sm:$0xf]
        %v2207 = vld [vmem:[%s2180 + $0x9c] sm:$0xff]
        %v2208 = vld [vmem:[%s2180 + $0xa4] sm:$0xf]
        %v2209 = vld [vmem:[%s2180 + $0xa8] sm:$0xff]
        %v2210 = vld [vmem:[%s2180 + $0xb0] sm:$0xf]
        %v2211 = vld [vmem:[%s2180 + $0xb4] sm:$0xff]
        %v2212 = vld [vmem:[%s2180 + $0xbc] sm:$0xf]
        %v2245 = vunpack.c.l.b16 %v2181
        %v2246 = vunpack.c.h.b16 %v2181
        %v2247 = vunpack.c.l.b16 %v2182
        %v2248 = vunpack.c.l.b16 %v2183
        %v2249 = vunpack.c.h.b16 %v2183
        %v2250 = vunpack.c.l.b16 %v2184
        %v2251 = vunpack.c.l.b16 %v2185
        %v2252 = vunpack.c.h.b16 %v2185
        %v2253 = vunpack.c.l.b16 %v2186
        %v2254 = vunpack.c.l.b16 %v2187
        %v2255 = vunpack.c.h.b16 %v2187
        %v2256 = vunpack.c.l.b16 %v2188
        %v2257 = vunpack.c.l.b16 %v2189
        %v2258 = vunpack.c.h.b16 %v2189
        %v2259 = vunpack.c.l.b16 %v2190
        %v2260 = vunpack.c.l.b16 %v2191
        %v2261 = vunpack.c.h.b16 %v2191
        %v2262 = vunpack.c.l.b16 %v2192
        %v2263 = vunpack.c.l.b16 %v2193
        %v2264 = vunpack.c.h.b16 %v2193
        %v2265 = vunpack.c.l.b16 %v2194
        %v2266 = vunpack.c.l.b16 %v2195
        %v2267 = vunpack.c.h.b16 %v2195
        %v2268 = vunpack.c.l.b16 %v2196
        %v2269 = vunpack.c.l.b16 %v2197
        %v2270 = vunpack.c.h.b16 %v2197
        %v2271 = vunpack.c.l.b16 %v2198
        %v2272 = vunpack.c.l.b16 %v2199
        %v2273 = vunpack.c.h.b16 %v2199
        %v2274 = vunpack.c.l.b16 %v2200
        %v2275 = vunpack.c.l.b16 %v2201
        %v2276 = vunpack.c.h.b16 %v2201
        %v2277 = vunpack.c.l.b16 %v2202
        %v2278 = vunpack.c.l.b16 %v2203
        %v2279 = vunpack.c.h.b16 %v2203
        %v2280 = vunpack.c.l.b16 %v2204
        %v2281 = vunpack.c.l.b16 %v2205
        %v2282 = vunpack.c.h.b16 %v2205
        %v2283 = vunpack.c.l.b16 %v2206
        %v2284 = vunpack.c.l.b16 %v2207
        %v2285 = vunpack.c.h.b16 %v2207
        %v2286 = vunpack.c.l.b16 %v2208
        %v2287 = vunpack.c.l.b16 %v2209
        %v2288 = vunpack.c.h.b16 %v2209
        %v2289 = vunpack.c.l.b16 %v2210
        %v2290 = vunpack.c.l.b16 %v2211
        %v2291 = vunpack.c.h.b16 %v2211
        %v2292 = vunpack.c.l.b16 %v2212
        %v2293 = vpack.c.b16 %v2248, %v2245
        %v2294 = vpack.c.b16 %v2249, %v2246
        %v2295 = vpack.c.b16 %v2250, %v2247
        %v2296 = vpack.c.b16 %v2254, %v2251
        %v2297 = vpack.c.b16 %v2255, %v2252
        %v2298 = vpack.c.b16 %v2256, %v2253
        %v2299 = vpack.c.b16 %v2260, %v2257
        %v2300 = vpack.c.b16 %v2261, %v2258
        %v2301 = vpack.c.b16 %v2262, %v2259
        %v2302 = vpack.c.b16 %v2266, %v2263
        %v2303 = vpack.c.b16 %v2267, %v2264
        %v2304 = vpack.c.b16 %v2268, %v2265
        %v2305 = vpack.c.b16 %v2272, %v2269
        %v2306 = vpack.c.b16 %v2273, %v2270
        %v2307 = vpack.c.b16 %v2274, %v2271
        %v2308 = vpack.c.b16 %v2278, %v2275
        %v2309 = vpack.c.b16 %v2279, %v2276
        %v2310 = vpack.c.b16 %v2280, %v2277
        %v2311 = vpack.c.b16 %v2284, %v2281
        %v2312 = vpack.c.b16 %v2285, %v2282
        %v2313 = vpack.c.b16 %v2286, %v2283
        %v2314 = vpack.c.b16 %v2290, %v2287
        %v2315 = vpack.c.b16 %v2291, %v2288
        %v2316 = vpack.c.b16 %v2292, %v2289
        %2341 = vmatprep.subr.bf16.mxu0 %v2294
        %2342 = vmatpush1.bf16.msra.mxu0 %v2293
        %2343 = vmatprep.subr.bf16.mxu0 %v2297
        %2344 = vmatpush1.bf16.msra.mxu0 %v2296
        %2345 = vmatprep.subr.bf16.mxu0 %v2300
        %2346 = vmatpush1.bf16.msra.mxu0 %v2299
        %2347 = vmatprep.subr.bf16.mxu0 %v2303
        %2348 = vmatpush1.bf16.msra.mxu0 %v2302
        %2349 = vmatprep.subr.bf16.mxu0 %v2306
        %2350 = vmatpush1.bf16.msra.mxu0 %v2305
        %2351 = vmatprep.subr.bf16.mxu0 %v2309
        %2352 = vmatpush1.bf16.msra.mxu0 %v2308
        %2353 = vmatprep.subr.bf16.mxu0 %v2312
        %2354 = vmatpush1.bf16.msra.mxu0 %v2311
        %2355 = vmatprep.subr.bf16.mxu0 %v2315
        %2356 = vmatpush1.bf16.msra.mxu0 %v2314
        %2357 = vmatprep.subr.bf16.mxu0 0
        %2358 = vmatpush1.bf16.msra.mxu0 0
        %2359 = vmatprep.subr.bf16.mxu0 0
        %2360 = vmatpush1.bf16.msra.mxu0 0
        %2361 = vmatprep.subr.bf16.mxu0 0
        %2362 = vmatpush1.bf16.msra.mxu0 0
        %2363 = vmatprep.subr.bf16.mxu0 0
        %2364 = vmatpush1.bf16.msra.mxu0 0
        %2365 = vmatprep.subr.bf16.mxu0 0
        %2366 = vmatpush1.bf16.msra.mxu0 0
        %2367 = vmatprep.subr.bf16.mxu0 0
        %2368 = vmatpush1.bf16.msra.mxu0 0
        %2369 = vmatprep.subr.bf16.mxu0 0
        %2370 = vmatpush1.bf16.msra.mxu0 0
        %2371 = vmatprep.subr.bf16.mxu0 0
        %2372 = vmatpush1.bf16.msra.mxu0 0
        %2373 = vmatprep.mubr.bf16.mxu0 0
        %2374 = vmatmul.mubr.bf16.gmra.mrb[0].mxu0 %v2179
        %v2375 = vpop.f32.mrb[0].mxu0
        %v2376 = vadd.f32 0.0, %v2375
        %v2377 = vpop.f32.mrb[0].mxu0
        %v2378 = vadd.f32 0.0, %v2377
        %v2379 = vpop.f32.mrb[0].mxu0
        %v2380 = vadd.f32 0.0, %v2379
        %v2381 = vpop.f32.mrb[0].mxu0
        %v2382 = vadd.f32 0.0, %v2381
        %2383 = vdwg.mxu0
        %2384 = vmatprep.subr.bf16.mxu0 0
        %2385 = vmatpush1.bf16.msra.mxu0 %v2295
        %2386 = vmatprep.subr.bf16.mxu0 0
        %2387 = vmatpush1.bf16.msra.mxu0 %v2298
        %2388 = vmatprep.subr.bf16.mxu0 0
        %2389 = vmatpush1.bf16.msra.mxu0 %v2301
        %2390 = vmatprep.subr.bf16.mxu0 0
        %2391 = vmatpush1.bf16.msra.mxu0 %v2304
        %2392 = vmatprep.subr.bf16.mxu0 0
        %2393 = vmatpush1.bf16.msra.mxu0 %v2307
        %2394 = vmatprep.subr.bf16.mxu0 0
        %2395 = vmatpush1.bf16.msra.mxu0 %v2310
        %2396 = vmatprep.subr.bf16.mxu0 0
        %2397 = vmatpush1.bf16.msra.mxu0 %v2313
        %2398 = vmatprep.subr.bf16.mxu0 0
        %2399 = vmatpush1.bf16.msra.mxu0 %v2316
        %2400 = vmatprep.subr.bf16.mxu0 0
        %2401 = vmatpush1.bf16.msra.mxu0 0
        %2402 = vmatprep.subr.bf16.mxu0 0
        %2403 = vmatpush1.bf16.msra.mxu0 0
        %2404 = vmatprep.subr.bf16.mxu0 0
        %2405 = vmatpush1.bf16.msra.mxu0 0
        %2406 = vmatprep.subr.bf16.mxu0 0
        %2407 = vmatpush1.bf16.msra.mxu0 0
        %2408 = vmatprep.subr.bf16.mxu0 0
        %2409 = vmatpush1.bf16.msra.mxu0 0
        %2410 = vmatprep.subr.bf16.mxu0 0
        %2411 = vmatpush1.bf16.msra.mxu0 0
        %2412 = vmatprep.subr.bf16.mxu0 0
        %2413 = vmatpush1.bf16.msra.mxu0 0
        %2414 = vmatprep.subr.bf16.mxu0 0
        %2415 = vmatpush1.bf16.msra.mxu0 0
        %2416 = vmatprep.mubr.bf16.mxu0 0
        %2417 = vmatmul.mubr.bf16.gmra.mrb[0].mxu0 %v2179
        %v2418 = vpop.f32.mrb[0].mxu0
        %v2419 = vadd.f32 0.0, %v2418
        %v2420 = vpop.f32.mrb[0].mxu0
        %v2421 = vpop.f32.mrb[0].mxu0
        %v2422 = vadd.f32 0.0, %v2421
        %v2423 = vpop.f32.mrb[0].mxu0
        %2424 = vdwg.mxu0
        %2425 = vrot.lane.b32.xlu0 %v2376, 16
        %v2426 = vpop.permute.xlu0 %2425
        %2427 = vrot.lane.b32.xlu0 %v2380, 16
        %v2428 = vpop.permute.xlu0 %2427
        %2429 = vrot.lane.b32.xlu0 %v2376, 112
        %v2430 = vpop.permute.xlu0 %2429
        %2431 = vrot.lane.b32.xlu0 %v2380, 112
        %v2432 = vpop.permute.xlu0 %2431
        %v2433 = vmul.f32 %v2376, %v593
        %v2434 = vmul.f32 %v2380, %v594
        %v2435 = vmul.f32 %v2426, %v595
        %v2436 = vmul.f32 %v2428, %v596
        %v2437 = vadd.f32 %v2433, %v2435
        %v2438 = vadd.f32 %v2434, %v2436
        %v2439 = vmul.f32 %v2430, %v597
        %v2440 = vmul.f32 %v2432, %v598
        %v2441 = vadd.f32 %v2437, %v2439
        %v2442 = vadd.f32 %v2438, %v2440
        %2443 = vrot.lane.b32.xlu0 %v2378, 16
        %v2444 = vpop.permute.xlu0 %2443
        %2445 = vrot.lane.b32.xlu0 %v2382, 16
        %v2446 = vpop.permute.xlu0 %2445
        %2447 = vrot.lane.b32.xlu0 %v2378, 112
        %v2448 = vpop.permute.xlu0 %2447
        %2449 = vrot.lane.b32.xlu0 %v2382, 112
        %v2450 = vpop.permute.xlu0 %2449
        %v2451 = vmul.f32 %v2378, %v593
        %v2452 = vmul.f32 %v2382, %v594
        %v2453 = vmul.f32 %v2444, %v595
        %v2454 = vmul.f32 %v2446, %v596
        %v2455 = vadd.f32 %v2451, %v2453
        %v2456 = vadd.f32 %v2452, %v2454
        %v2457 = vmul.f32 %v2448, %v597
        %v2458 = vmul.f32 %v2450, %v598
        %v2459 = vadd.f32 %v2455, %v2457
        %v2460 = vadd.f32 %v2456, %v2458
        %v2461 = vpack.c.bf16 %v2442, %v2441
        %v2462 = vpack.c.bf16 %v2460, %v2459
        %v2464 = vsel %vm912, %v2461, 0
        %v2467 = vsel %vm912, %v2462, 0
        %2469 = vmatprep.subr.bf16.mxu0 0
        %2470 = vmatpush1.bf16.xpose.msra.mxu0 %v2467
        %2471 = vmatprep.subr.bf16.mxu0 0
        %2472 = vmatpush1.bf16.xpose.msra.mxu0 0
        %2473 = vmatprep.subr.bf16.mxu0 0
        %2474 = vmatpush1.bf16.xpose.msra.mxu0 0
        %2475 = vmatprep.subr.bf16.mxu0 0
        %2476 = vmatpush1.bf16.xpose.msra.mxu0 0
        %2477 = vmatprep.subr.bf16.mxu0 0
        %2478 = vmatpush1.bf16.xpose.msra.mxu0 0
        %2479 = vmatprep.subr.bf16.mxu0 0
        %2480 = vmatpush1.bf16.xpose.msra.mxu0 0
        %2481 = vmatprep.subr.bf16.mxu0 0
        %2482 = vmatpush1.bf16.xpose.msra.mxu0 0
        %2483 = vmatprep.subr.bf16.mxu0 0
        %2484 = vmatpush1.bf16.xpose.msra.mxu0 0
        %2485 = vmatprep.subr.bf16.mxu0 0
        %2486 = vmatpush1.bf16.xpose.msra.mxu0 0
        %2487 = vmatprep.subr.bf16.mxu0 0
        %2488 = vmatpush1.bf16.xpose.msra.mxu0 0
        %2489 = vmatprep.subr.bf16.mxu0 0
        %2490 = vmatpush1.bf16.xpose.msra.mxu0 0
        %2491 = vmatprep.subr.bf16.mxu0 0
        %2492 = vmatpush1.bf16.xpose.msra.mxu0 0
        %2493 = vmatprep.subr.bf16.mxu0 0
        %2494 = vmatpush1.bf16.xpose.msra.mxu0 0
        %2495 = vmatprep.subr.bf16.mxu0 0
        %2496 = vmatpush1.bf16.xpose.msra.mxu0 0
        %2497 = vmatprep.subr.bf16.mxu0 0
        %2498 = vmatpush1.bf16.xpose.msra.mxu0 0
        %2499 = vmatprep.subr.bf16.mxu0 0
        %2500 = vmatpush1.bf16.xpose.msra.mxu0 0
        %2501 = vmatprep.mubr.bf16.mxu0 0
        %2502 = vmatmul.mubr.bf16.gmra.mrb[0].mxu0 %v2464
        %v2503 = vpop.f32.mrb[0].mxu0
        %v2504 = vadd.f32 %v910, %v2503
        %v2505 = vpop.f32.mrb[0].mxu0
        %v2506 = vpop.f32.mrb[0].mxu0
        %v2507 = vadd.f32 %v910, %v2506
        %v2508 = vpop.f32.mrb[0].mxu0
        %2509 = vdwg.mxu0
        %v2510 = vsel %vm960, %v2504, -inf
        %2511 = vmax.xlane.f32.xlu0 %v2510
        %v2512 = vpop.xlane.xlu0 %2511
        %v2513 = vsel %vm960, %v2507, -inf
        %2514 = vmax.xlane.f32.xlu0 %v2513
        %v2515 = vpop.xlane.xlu0 %2514
        %v2516 = vsub.f32 %v2504, %v2512
        %v2517 = vsub.f32 %v2507, %v2515
        %v2518 = vmul.f32 %v2516, 1.442695
        %v2519 = vpow.pop %v2518
        %v2520 = vmul.f32 %v2517, 1.442695
        %v2521 = vpow.pop %v2520
        %v2522 = vsel %vm960, %v2519, 0.0
        %2523 = vadd.xlane.f32.xlu0 %v2522
        %v2524 = vpop.xlane.xlu0 %2523
        %v2525 = vsel %vm960, %v2521, 0.0
        %2526 = vadd.xlane.f32.xlu0 %v2525
        %v2527 = vpop.xlane.xlu0 %2526
        %v2528 = vrcp.pop %v2524
        %v2529 = vrcp.pop %v2527
        %v2530 = vmul.f32 %v2519, %v2528
        %v2531 = vmul.f32 %v2521, %v2529
        %v2532 = vpack.c.bf16 %v2531, %v2530
        %v2533 = vpack.c.bf16 %v2422, %v2419
        %v2535 = vsel %vm960, %v2532, 0
        %2537 = vmatprep.subr.bf16.mxu0 0
        %2538 = vmatpush1.bf16.msra.mxu0 %v2533
        %2539 = vmatprep.subr.bf16.mxu0 0
        %2540 = vmatpush1.bf16.msra.mxu0 0
        %2541 = vmatprep.subr.bf16.mxu0 0
        %2542 = vmatpush1.bf16.msra.mxu0 0
        %2543 = vmatprep.subr.bf16.mxu0 0
        %2544 = vmatpush1.bf16.msra.mxu0 0
        %2545 = vmatprep.subr.bf16.mxu0 0
        %2546 = vmatpush1.bf16.msra.mxu0 0
        %2547 = vmatprep.subr.bf16.mxu0 0
        %2548 = vmatpush1.bf16.msra.mxu0 0
        %2549 = vmatprep.subr.bf16.mxu0 0
        %2550 = vmatpush1.bf16.msra.mxu0 0
        %2551 = vmatprep.subr.bf16.mxu0 0
        %2552 = vmatpush1.bf16.msra.mxu0 0
        %2553 = vmatprep.subr.bf16.mxu0 0
        %2554 = vmatpush1.bf16.msra.mxu0 0
        %2555 = vmatprep.subr.bf16.mxu0 0
        %2556 = vmatpush1.bf16.msra.mxu0 0
        %2557 = vmatprep.subr.bf16.mxu0 0
        %2558 = vmatpush1.bf16.msra.mxu0 0
        %2559 = vmatprep.subr.bf16.mxu0 0
        %2560 = vmatpush1.bf16.msra.mxu0 0
        %2561 = vmatprep.subr.bf16.mxu0 0
        %2562 = vmatpush1.bf16.msra.mxu0 0
        %2563 = vmatprep.subr.bf16.mxu0 0
        %2564 = vmatpush1.bf16.msra.mxu0 0
        %2565 = vmatprep.subr.bf16.mxu0 0
        %2566 = vmatpush1.bf16.msra.mxu0 0
        %2567 = vmatprep.subr.bf16.mxu0 0
        %2568 = vmatpush1.bf16.msra.mxu0 0
        %2569 = vmatprep.mubr.bf16.mxu0 0
        %2570 = vmatmul.mubr.bf16.gmra.mrb[0].mxu0 %v2535
        %v2571 = vpop.f32.mrb[0].mxu0
        %v2572 = vadd.f32 0.0, %v2571
        %v2573 = vpop.f32.mrb[0].mxu0
        %v2574 = vpop.f32.mrb[0].mxu0
        %v2575 = vadd.f32 0.0, %v2574
        %v2576 = vpop.f32.mrb[0].mxu0
        %2577 = vdwg.mxu0
        %v2578 = vpack.c.bf16 %v2575, %v2572
        %s2579 = scalar_lea.vmem [#allocation11], 64
        %v2580 = vld [vmem:[%s2579] sm:$0xf]
        %v2581 = vld [vmem:[%s2579 + $0x4] sm:$0xf]
        %v2582 = vld [vmem:[%s2579 + $0x8] sm:$0xf]
        %v2583 = vld [vmem:[%s2579 + $0xc] sm:$0xf]
        %2585 = vrot.lane.b32.xlu0 %v2461, 96
        %v2586 = vpop.permute.xlu0 %2585
        %2588 = vrot.lane.b32.xlu0 %v2462, 96
        %v2589 = vpop.permute.xlu0 %2588
        %v2591 = vsel %vm912, %v2586, 0
        %v2594 = vsel %vm912, %v2589, 0
        %2596 = vmatprep.subr.bf16.mxu0 0
        %2597 = vmatpush1.bf16.xpose.msra.mxu0 %v2594
        %2598 = vmatprep.subr.bf16.mxu0 0
        %2599 = vmatpush1.bf16.xpose.msra.mxu0 0
        %2600 = vmatprep.subr.bf16.mxu0 0
        %2601 = vmatpush1.bf16.xpose.msra.mxu0 0
        %2602 = vmatprep.subr.bf16.mxu0 0
        %2603 = vmatpush1.bf16.xpose.msra.mxu0 0
        %2604 = vmatprep.subr.bf16.mxu0 0
        %2605 = vmatpush1.bf16.xpose.msra.mxu0 0
        %2606 = vmatprep.subr.bf16.mxu0 0
        %2607 = vmatpush1.bf16.xpose.msra.mxu0 0
        %2608 = vmatprep.subr.bf16.mxu0 0
        %2609 = vmatpush1.bf16.xpose.msra.mxu0 0
        %2610 = vmatprep.subr.bf16.mxu0 0
        %2611 = vmatpush1.bf16.xpose.msra.mxu0 0
        %2612 = vmatprep.subr.bf16.mxu0 0
        %2613 = vmatpush1.bf16.xpose.msra.mxu0 0
        %2614 = vmatprep.subr.bf16.mxu0 0
        %2615 = vmatpush1.bf16.xpose.msra.mxu0 0
        %2616 = vmatprep.subr.bf16.mxu0 0
        %2617 = vmatpush1.bf16.xpose.msra.mxu0 0
        %2618 = vmatprep.subr.bf16.mxu0 0
        %2619 = vmatpush1.bf16.xpose.msra.mxu0 0
        %2620 = vmatprep.subr.bf16.mxu0 0
        %2621 = vmatpush1.bf16.xpose.msra.mxu0 0
        %2622 = vmatprep.subr.bf16.mxu0 0
        %2623 = vmatpush1.bf16.xpose.msra.mxu0 0
        %2624 = vmatprep.subr.bf16.mxu0 0
        %2625 = vmatpush1.bf16.xpose.msra.mxu0 0
        %2626 = vmatprep.subr.bf16.mxu0 0
        %2627 = vmatpush1.bf16.xpose.msra.mxu0 0
        %2628 = vmatprep.mubr.bf16.mxu0 0
        %2629 = vmatmul.mubr.bf16.gmra.mrb[0].mxu0 %v2591
        %v2630 = vpop.f32.mrb[0].mxu0
        %v2631 = vadd.f32 %v910, %v2630
        %v2632 = vpop.f32.mrb[0].mxu0
        %v2633 = vpop.f32.mrb[0].mxu0
        %v2634 = vadd.f32 %v910, %v2633
        %v2635 = vpop.f32.mrb[0].mxu0
        %2636 = vdwg.mxu0
        %v2637 = vsel %vm960, %v2631, -inf
        %2638 = vmax.xlane.f32.xlu0 %v2637
        %v2639 = vpop.xlane.xlu0 %2638
        %v2640 = vsel %vm960, %v2634, -inf
        %2641 = vmax.xlane.f32.xlu0 %v2640
        %v2642 = vpop.xlane.xlu0 %2641
        %v2643 = vsub.f32 %v2631, %v2639
        %v2644 = vsub.f32 %v2634, %v2642
        %v2645 = vmul.f32 %v2643, 1.442695
        %v2646 = vpow.pop %v2645
        %v2647 = vmul.f32 %v2644, 1.442695
        %v2648 = vpow.pop %v2647
        %v2649 = vsel %vm960, %v2646, 0.0
        %2650 = vadd.xlane.f32.xlu0 %v2649
        %v2651 = vpop.xlane.xlu0 %2650
        %v2652 = vsel %vm960, %v2648, 0.0
        %2653 = vadd.xlane.f32.xlu0 %v2652
        %v2654 = vpop.xlane.xlu0 %2653
        %v2655 = vrcp.pop %v2651
        %v2656 = vrcp.pop %v2654
        %v2657 = vmul.f32 %v2646, %v2655
        %v2658 = vmul.f32 %v2648, %v2656
        %v2659 = vpack.c.bf16 %v2658, %v2657
        %2661 = vrot.lane.b32.xlu0 %v2533, 96
        %v2662 = vpop.permute.xlu0 %2661
        %v2665 = vsel %vm960, %v2659, 0
        %2667 = vmatprep.subr.bf16.mxu0 0
        %2668 = vmatpush1.bf16.msra.mxu0 %v2662
        %2669 = vmatprep.subr.bf16.mxu0 0
        %2670 = vmatpush1.bf16.msra.mxu0 0
        %2671 = vmatprep.subr.bf16.mxu0 0
        %2672 = vmatpush1.bf16.msra.mxu0 0
        %2673 = vmatprep.subr.bf16.mxu0 0
        %2674 = vmatpush1.bf16.msra.mxu0 0
        %2675 = vmatprep.subr.bf16.mxu0 0
        %2676 = vmatpush1.bf16.msra.mxu0 0
        %2677 = vmatprep.subr.bf16.mxu0 0
        %2678 = vmatpush1.bf16.msra.mxu0 0
        %2679 = vmatprep.subr.bf16.mxu0 0
        %2680 = vmatpush1.bf16.msra.mxu0 0
        %2681 = vmatprep.subr.bf16.mxu0 0
        %2682 = vmatpush1.bf16.msra.mxu0 0
        %2683 = vmatprep.subr.bf16.mxu0 0
        %2684 = vmatpush1.bf16.msra.mxu0 0
        %2685 = vmatprep.subr.bf16.mxu0 0
        %2686 = vmatpush1.bf16.msra.mxu0 0
        %2687 = vmatprep.subr.bf16.mxu0 0
        %2688 = vmatpush1.bf16.msra.mxu0 0
        %2689 = vmatprep.subr.bf16.mxu0 0
        %2690 = vmatpush1.bf16.msra.mxu0 0
        %2691 = vmatprep.subr.bf16.mxu0 0
        %2692 = vmatpush1.bf16.msra.mxu0 0
        %2693 = vmatprep.subr.bf16.mxu0 0
        %2694 = vmatpush1.bf16.msra.mxu0 0
        %2695 = vmatprep.subr.bf16.mxu0 0
        %2696 = vmatpush1.bf16.msra.mxu0 0
        %2697 = vmatprep.subr.bf16.mxu0 0
        %2698 = vmatpush1.bf16.msra.mxu0 0
        %2699 = vmatprep.mubr.bf16.mxu0 0
        %2700 = vmatmul.mubr.bf16.gmra.mrb[0].mxu0 %v2665
        %v2701 = vpop.f32.mrb[0].mxu0
        %v2702 = vadd.f32 0.0, %v2701
        %v2703 = vpop.f32.mrb[0].mxu0
        %v2704 = vpop.f32.mrb[0].mxu0
        %v2705 = vadd.f32 0.0, %v2704
        %v2706 = vpop.f32.mrb[0].mxu0
        %2707 = vdwg.mxu0
        %v2708 = vpack.c.bf16 %v2705, %v2702
        %s2709 = scalar_lea.vmem [#allocation11], 80
        %v2710 = vld [vmem:[%s2709] sm:$0xf]
        %v2711 = vld [vmem:[%s2709 + $0x4] sm:$0xf]
        %v2712 = vld [vmem:[%s2709 + $0x8] sm:$0xf]
        %v2713 = vld [vmem:[%s2709 + $0xc] sm:$0xf]
        %v2718 = vunpack.c.l.b16 %v2710
        %v2719 = vunpack.c.l.b16 %v2711
        %v2720 = vunpack.c.l.b16 %v2712
        %v2721 = vunpack.c.l.b16 %v2713
        %v2722 = vpack.c.b16 %v2719, %v2718
        %v2723 = vpack.c.b16 %v2721, %v2720
        %v2727 = vsel %vm912, %v2708, 0
        %2729 = vmatprep.subr.bf16.mxu0 0
        %2730 = vmatpush1.bf16.msra.mxu0 %v2722
        %2731 = vmatprep.subr.bf16.mxu0 0
        %2732 = vmatpush1.bf16.msra.mxu0 %v2723
        %2733 = vmatprep.subr.bf16.mxu0 0
        %2734 = vmatpush1.bf16.msra.mxu0 0
        %2735 = vmatprep.subr.bf16.mxu0 0
        %2736 = vmatpush1.bf16.msra.mxu0 0
        %2737 = vmatprep.subr.bf16.mxu0 0
        %2738 = vmatpush1.bf16.msra.mxu0 0
        %2739 = vmatprep.subr.bf16.mxu0 0
        %2740 = vmatpush1.bf16.msra.mxu0 0
        %2741 = vmatprep.subr.bf16.mxu0 0
        %2742 = vmatpush1.bf16.msra.mxu0 0
        %2743 = vmatprep.subr.bf16.mxu0 0
        %2744 = vmatpush1.bf16.msra.mxu0 0
        %2745 = vmatprep.subr.bf16.mxu0 0
        %2746 = vmatpush1.bf16.msra.mxu0 0
        %2747 = vmatprep.subr.bf16.mxu0 0
        %2748 = vmatpush1.bf16.msra.mxu0 0
        %2749 = vmatprep.subr.bf16.mxu0 0
        %2750 = vmatpush1.bf16.msra.mxu0 0
        %2751 = vmatprep.subr.bf16.mxu0 0
        %2752 = vmatpush1.bf16.msra.mxu0 0
        %2753 = vmatprep.subr.bf16.mxu0 0
        %2754 = vmatpush1.bf16.msra.mxu0 0
        %2755 = vmatprep.subr.bf16.mxu0 0
        %2756 = vmatpush1.bf16.msra.mxu0 0
        %2757 = vmatprep.subr.bf16.mxu0 0
        %2758 = vmatpush1.bf16.msra.mxu0 0
        %2759 = vmatprep.subr.bf16.mxu0 0
        %2760 = vmatpush1.bf16.msra.mxu0 0
        %2761 = vmatprep.mubr.bf16.mxu0 0
        %2762 = vmatmul.mubr.bf16.gmra.mrb[0].mxu0 %v2727
        %v2763 = vpop.f32.mrb[0].mxu0
        %v2764 = vadd.f32 0.0, %v2763
        %v2765 = vpop.f32.mrb[0].mxu0
        %v2766 = vpop.f32.mrb[0].mxu0
        %v2767 = vadd.f32 0.0, %v2766
        %v2768 = vpop.f32.mrb[0].mxu0
        %2769 = vdwg.mxu0
        %v2774 = vunpack.c.l.b16 %v2580
        %v2775 = vunpack.c.l.b16 %v2581
        %v2776 = vunpack.c.l.b16 %v2582
        %v2777 = vunpack.c.l.b16 %v2583
        %v2778 = vpack.c.b16 %v2775, %v2774
        %v2779 = vpack.c.b16 %v2777, %v2776
        %v2783 = vsel %vm912, %v2578, 0
        %2785 = vmatprep.subr.bf16.mxu0 0
        %2786 = vmatpush1.bf16.msra.mxu0 %v2778
        %2787 = vmatprep.subr.bf16.mxu0 0
        %2788 = vmatpush1.bf16.msra.mxu0 %v2779
        %2789 = vmatprep.subr.bf16.mxu0 0
        %2790 = vmatpush1.bf16.msra.mxu0 0
        %2791 = vmatprep.subr.bf16.mxu0 0
        %2792 = vmatpush1.bf16.msra.mxu0 0
        %2793 = vmatprep.subr.bf16.mxu0 0
        %2794 = vmatpush1.bf16.msra.mxu0 0
        %2795 = vmatprep.subr.bf16.mxu0 0
        %2796 = vmatpush1.bf16.msra.mxu0 0
        %2797 = vmatprep.subr.bf16.mxu0 0
        %2798 = vmatpush1.bf16.msra.mxu0 0
        %2799 = vmatprep.subr.bf16.mxu0 0
        %2800 = vmatpush1.bf16.msra.mxu0 0
        %2801 = vmatprep.subr.bf16.mxu0 0
        %2802 = vmatpush1.bf16.msra.mxu0 0
        %2803 = vmatprep.subr.bf16.mxu0 0
        %2804 = vmatpush1.bf16.msra.mxu0 0
        %2805 = vmatprep.subr.bf16.mxu0 0
        %2806 = vmatpush1.bf16.msra.mxu0 0
        %2807 = vmatprep.subr.bf16.mxu0 0
        %2808 = vmatpush1.bf16.msra.mxu0 0
        %2809 = vmatprep.subr.bf16.mxu0 0
        %2810 = vmatpush1.bf16.msra.mxu0 0
        %2811 = vmatprep.subr.bf16.mxu0 0
        %2812 = vmatpush1.bf16.msra.mxu0 0
        %2813 = vmatprep.subr.bf16.mxu0 0
        %2814 = vmatpush1.bf16.msra.mxu0 0
        %2815 = vmatprep.subr.bf16.mxu0 0
        %2816 = vmatpush1.bf16.msra.mxu0 0
        %2817 = vmatprep.mubr.bf16.mxu0 0
        %2818 = vmatmul.mubr.bf16.gmra.mrb[0].mxu0 %v2783
        %v2819 = vpop.f32.mrb[0].mxu0
        %v2820 = vadd.f32 %v2764, %v2819
        %v2821 = vpop.f32.mrb[0].mxu0
        %v2822 = vpop.f32.mrb[0].mxu0
        %v2823 = vadd.f32 %v2767, %v2822
        %v2824 = vpop.f32.mrb[0].mxu0
        %2825 = vdwg.mxu0
        %2826 = vrot.lane.b32.xlu0 %v2461, 64
        %v2827 = vpop.permute.xlu0 %2826
        %2828 = vrot.lane.b32.xlu0 %v2462, 64
        %v2829 = vpop.permute.xlu0 %2828
        %v2831 = vsel %vm912, %v2827, 0
        %v2834 = vsel %vm912, %v2829, 0
        %2836 = vmatprep.subr.bf16.mxu0 0
        %2837 = vmatpush1.bf16.xpose.msra.mxu0 %v2834
        %2838 = vmatprep.subr.bf16.mxu0 0
        %2839 = vmatpush1.bf16.xpose.msra.mxu0 0
        %2840 = vmatprep.subr.bf16.mxu0 0
        %2841 = vmatpush1.bf16.xpose.msra.mxu0 0
        %2842 = vmatprep.subr.bf16.mxu0 0
        %2843 = vmatpush1.bf16.xpose.msra.mxu0 0
        %2844 = vmatprep.subr.bf16.mxu0 0
        %2845 = vmatpush1.bf16.xpose.msra.mxu0 0
        %2846 = vmatprep.subr.bf16.mxu0 0
        %2847 = vmatpush1.bf16.xpose.msra.mxu0 0
        %2848 = vmatprep.subr.bf16.mxu0 0
        %2849 = vmatpush1.bf16.xpose.msra.mxu0 0
        %2850 = vmatprep.subr.bf16.mxu0 0
        %2851 = vmatpush1.bf16.xpose.msra.mxu0 0
        %2852 = vmatprep.subr.bf16.mxu0 0
        %2853 = vmatpush1.bf16.xpose.msra.mxu0 0
        %2854 = vmatprep.subr.bf16.mxu0 0
        %2855 = vmatpush1.bf16.xpose.msra.mxu0 0
        %2856 = vmatprep.subr.bf16.mxu0 0
        %2857 = vmatpush1.bf16.xpose.msra.mxu0 0
        %2858 = vmatprep.subr.bf16.mxu0 0
        %2859 = vmatpush1.bf16.xpose.msra.mxu0 0
        %2860 = vmatprep.subr.bf16.mxu0 0
        %2861 = vmatpush1.bf16.xpose.msra.mxu0 0
        %2862 = vmatprep.subr.bf16.mxu0 0
        %2863 = vmatpush1.bf16.xpose.msra.mxu0 0
        %2864 = vmatprep.subr.bf16.mxu0 0
        %2865 = vmatpush1.bf16.xpose.msra.mxu0 0
        %2866 = vmatprep.subr.bf16.mxu0 0
        %2867 = vmatpush1.bf16.xpose.msra.mxu0 0
        %2868 = vmatprep.mubr.bf16.mxu0 0
        %2869 = vmatmul.mubr.bf16.gmra.mrb[0].mxu0 %v2831
        %v2870 = vpop.f32.mrb[0].mxu0
        %v2871 = vadd.f32 %v910, %v2870
        %v2872 = vpop.f32.mrb[0].mxu0
        %v2873 = vpop.f32.mrb[0].mxu0
        %v2874 = vadd.f32 %v910, %v2873
        %v2875 = vpop.f32.mrb[0].mxu0
        %2876 = vdwg.mxu0
        %v2877 = vsel %vm960, %v2871, -inf
        %2878 = vmax.xlane.f32.xlu0 %v2877
        %v2879 = vpop.xlane.xlu0 %2878
        %v2880 = vsel %vm960, %v2874, -inf
        %2881 = vmax.xlane.f32.xlu0 %v2880
        %v2882 = vpop.xlane.xlu0 %2881
        %v2883 = vsub.f32 %v2871, %v2879
        %v2884 = vsub.f32 %v2874, %v2882
        %v2885 = vmul.f32 %v2883, 1.442695
        %v2886 = vpow.pop %v2885
        %v2887 = vmul.f32 %v2884, 1.442695
        %v2888 = vpow.pop %v2887
        %v2889 = vsel %vm960, %v2886, 0.0
        %2890 = vadd.xlane.f32.xlu0 %v2889
        %v2891 = vpop.xlane.xlu0 %2890
        %v2892 = vsel %vm960, %v2888, 0.0
        %2893 = vadd.xlane.f32.xlu0 %v2892
        %v2894 = vpop.xlane.xlu0 %2893
        %v2895 = vrcp.pop %v2891
        %v2896 = vrcp.pop %v2894
        %v2897 = vmul.f32 %v2886, %v2895
        %v2898 = vmul.f32 %v2888, %v2896
        %v2899 = vpack.c.bf16 %v2898, %v2897
        %2900 = vrot.lane.b32.xlu0 %v2533, 64
        %v2901 = vpop.permute.xlu0 %2900
        %v2904 = vsel %vm960, %v2899, 0
        %2906 = vmatprep.subr.bf16.mxu0 0
        %2907 = vmatpush1.bf16.msra.mxu0 %v2901
        %2908 = vmatprep.subr.bf16.mxu0 0
        %2909 = vmatpush1.bf16.msra.mxu0 0
        %2910 = vmatprep.subr.bf16.mxu0 0
        %2911 = vmatpush1.bf16.msra.mxu0 0
        %2912 = vmatprep.subr.bf16.mxu0 0
        %2913 = vmatpush1.bf16.msra.mxu0 0
        %2914 = vmatprep.subr.bf16.mxu0 0
        %2915 = vmatpush1.bf16.msra.mxu0 0
        %2916 = vmatprep.subr.bf16.mxu0 0
        %2917 = vmatpush1.bf16.msra.mxu0 0
        %2918 = vmatprep.subr.bf16.mxu0 0
        %2919 = vmatpush1.bf16.msra.mxu0 0
        %2920 = vmatprep.subr.bf16.mxu0 0
        %2921 = vmatpush1.bf16.msra.mxu0 0
        %2922 = vmatprep.subr.bf16.mxu0 0
        %2923 = vmatpush1.bf16.msra.mxu0 0
        %2924 = vmatprep.subr.bf16.mxu0 0
        %2925 = vmatpush1.bf16.msra.mxu0 0
        %2926 = vmatprep.subr.bf16.mxu0 0
        %2927 = vmatpush1.bf16.msra.mxu0 0
        %2928 = vmatprep.subr.bf16.mxu0 0
        %2929 = vmatpush1.bf16.msra.mxu0 0
        %2930 = vmatprep.subr.bf16.mxu0 0
        %2931 = vmatpush1.bf16.msra.mxu0 0
        %2932 = vmatprep.subr.bf16.mxu0 0
        %2933 = vmatpush1.bf16.msra.mxu0 0
        %2934 = vmatprep.subr.bf16.mxu0 0
        %2935 = vmatpush1.bf16.msra.mxu0 0
        %2936 = vmatprep.subr.bf16.mxu0 0
        %2937 = vmatpush1.bf16.msra.mxu0 0
        %2938 = vmatprep.mubr.bf16.mxu0 0
        %2939 = vmatmul.mubr.bf16.gmra.mrb[0].mxu0 %v2904
        %v2940 = vpop.f32.mrb[0].mxu0
        %v2941 = vadd.f32 0.0, %v2940
        %v2942 = vpop.f32.mrb[0].mxu0
        %v2943 = vpop.f32.mrb[0].mxu0
        %v2944 = vadd.f32 0.0, %v2943
        %v2945 = vpop.f32.mrb[0].mxu0
        %2946 = vdwg.mxu0
        %v2947 = vpack.c.bf16 %v2944, %v2941
        %s2948 = scalar_lea.vmem [#allocation11], 96
        %v2949 = vld [vmem:[%s2948] sm:$0xf]
        %v2950 = vld [vmem:[%s2948 + $0x4] sm:$0xf]
        %v2951 = vld [vmem:[%s2948 + $0x8] sm:$0xf]
        %v2952 = vld [vmem:[%s2948 + $0xc] sm:$0xf]
        %v2957 = vunpack.c.l.b16 %v2949
        %v2958 = vunpack.c.l.b16 %v2950
        %v2959 = vunpack.c.l.b16 %v2951
        %v2960 = vunpack.c.l.b16 %v2952
        %v2961 = vpack.c.b16 %v2958, %v2957
        %v2962 = vpack.c.b16 %v2960, %v2959
        %v2966 = vsel %vm912, %v2947, 0
        %2968 = vmatprep.subr.bf16.mxu0 0
        %2969 = vmatpush1.bf16.msra.mxu0 %v2961
        %2970 = vmatprep.subr.bf16.mxu0 0
        %2971 = vmatpush1.bf16.msra.mxu0 %v2962
        %2972 = vmatprep.subr.bf16.mxu0 0
        %2973 = vmatpush1.bf16.msra.mxu0 0
        %2974 = vmatprep.subr.bf16.mxu0 0
        %2975 = vmatpush1.bf16.msra.mxu0 0
        %2976 = vmatprep.subr.bf16.mxu0 0
        %2977 = vmatpush1.bf16.msra.mxu0 0
        %2978 = vmatprep.subr.bf16.mxu0 0
        %2979 = vmatpush1.bf16.msra.mxu0 0
        %2980 = vmatprep.subr.bf16.mxu0 0
        %2981 = vmatpush1.bf16.msra.mxu0 0
        %2982 = vmatprep.subr.bf16.mxu0 0
        %2983 = vmatpush1.bf16.msra.mxu0 0
        %2984 = vmatprep.subr.bf16.mxu0 0
        %2985 = vmatpush1.bf16.msra.mxu0 0
        %2986 = vmatprep.subr.bf16.mxu0 0
        %2987 = vmatpush1.bf16.msra.mxu0 0
        %2988 = vmatprep.subr.bf16.mxu0 0
        %2989 = vmatpush1.bf16.msra.mxu0 0
        %2990 = vmatprep.subr.bf16.mxu0 0
        %2991 = vmatpush1.bf16.msra.mxu0 0
        %2992 = vmatprep.subr.bf16.mxu0 0
        %2993 = vmatpush1.bf16.msra.mxu0 0
        %2994 = vmatprep.subr.bf16.mxu0 0
        %2995 = vmatpush1.bf16.msra.mxu0 0
        %2996 = vmatprep.subr.bf16.mxu0 0
        %2997 = vmatpush1.bf16.msra.mxu0 0
        %2998 = vmatprep.subr.bf16.mxu0 0
        %2999 = vmatpush1.bf16.msra.mxu0 0
        %3000 = vmatprep.mubr.bf16.mxu0 0
        %3001 = vmatmul.mubr.bf16.gmra.mrb[0].mxu0 %v2966
        %v3002 = vpop.f32.mrb[0].mxu0
        %v3003 = vadd.f32 0.0, %v3002
        %v3004 = vpop.f32.mrb[0].mxu0
        %v3005 = vpop.f32.mrb[0].mxu0
        %v3006 = vadd.f32 0.0, %v3005
        %v3007 = vpop.f32.mrb[0].mxu0
        %3008 = vdwg.mxu0
        %v3009 = vadd.f32 %v2820, %v3003
        %v3010 = vadd.f32 %v2823, %v3006
        %3011 = vrot.lane.b32.xlu0 %v2461, 32
        %v3012 = vpop.permute.xlu0 %3011
        %3013 = vrot.lane.b32.xlu0 %v2462, 32
        %v3014 = vpop.permute.xlu0 %3013
        %v3016 = vsel %vm912, %v3012, 0
        %v3019 = vsel %vm912, %v3014, 0
        %3021 = vmatprep.subr.bf16.mxu0 0
        %3022 = vmatpush1.bf16.xpose.msra.mxu0 %v3019
        %3023 = vmatprep.subr.bf16.mxu0 0
        %3024 = vmatpush1.bf16.xpose.msra.mxu0 0
        %3025 = vmatprep.subr.bf16.mxu0 0
        %3026 = vmatpush1.bf16.xpose.msra.mxu0 0
        %3027 = vmatprep.subr.bf16.mxu0 0
        %3028 = vmatpush1.bf16.xpose.msra.mxu0 0
        %3029 = vmatprep.subr.bf16.mxu0 0
        %3030 = vmatpush1.bf16.xpose.msra.mxu0 0
        %3031 = vmatprep.subr.bf16.mxu0 0
        %3032 = vmatpush1.bf16.xpose.msra.mxu0 0
        %3033 = vmatprep.subr.bf16.mxu0 0
        %3034 = vmatpush1.bf16.xpose.msra.mxu0 0
        %3035 = vmatprep.subr.bf16.mxu0 0
        %3036 = vmatpush1.bf16.xpose.msra.mxu0 0
        %3037 = vmatprep.subr.bf16.mxu0 0
        %3038 = vmatpush1.bf16.xpose.msra.mxu0 0
        %3039 = vmatprep.subr.bf16.mxu0 0
        %3040 = vmatpush1.bf16.xpose.msra.mxu0 0
        %3041 = vmatprep.subr.bf16.mxu0 0
        %3042 = vmatpush1.bf16.xpose.msra.mxu0 0
        %3043 = vmatprep.subr.bf16.mxu0 0
        %3044 = vmatpush1.bf16.xpose.msra.mxu0 0
        %3045 = vmatprep.subr.bf16.mxu0 0
        %3046 = vmatpush1.bf16.xpose.msra.mxu0 0
        %3047 = vmatprep.subr.bf16.mxu0 0
        %3048 = vmatpush1.bf16.xpose.msra.mxu0 0
        %3049 = vmatprep.subr.bf16.mxu0 0
        %3050 = vmatpush1.bf16.xpose.msra.mxu0 0
        %3051 = vmatprep.subr.bf16.mxu0 0
        %3052 = vmatpush1.bf16.xpose.msra.mxu0 0
        %3053 = vmatprep.mubr.bf16.mxu0 0
        %3054 = vmatmul.mubr.bf16.gmra.mrb[0].mxu0 %v3016
        %v3055 = vpop.f32.mrb[0].mxu0
        %v3056 = vadd.f32 %v910, %v3055
        %v3057 = vpop.f32.mrb[0].mxu0
        %v3058 = vpop.f32.mrb[0].mxu0
        %v3059 = vadd.f32 %v910, %v3058
        %v3060 = vpop.f32.mrb[0].mxu0
        %3061 = vdwg.mxu0
        %v3062 = vsel %vm960, %v3056, -inf
        %3063 = vmax.xlane.f32.xlu0 %v3062
        %v3064 = vpop.xlane.xlu0 %3063
        %v3065 = vsel %vm960, %v3059, -inf
        %3066 = vmax.xlane.f32.xlu0 %v3065
        %v3067 = vpop.xlane.xlu0 %3066
        %v3068 = vsub.f32 %v3056, %v3064
        %v3069 = vsub.f32 %v3059, %v3067
        %v3070 = vmul.f32 %v3068, 1.442695
        %v3071 = vpow.pop %v3070
        %v3072 = vmul.f32 %v3069, 1.442695
        %v3073 = vpow.pop %v3072
        %v3074 = vsel %vm960, %v3071, 0.0
        %3075 = vadd.xlane.f32.xlu0 %v3074
        %v3076 = vpop.xlane.xlu0 %3075
        %v3077 = vsel %vm960, %v3073, 0.0
        %3078 = vadd.xlane.f32.xlu0 %v3077
        %v3079 = vpop.xlane.xlu0 %3078
        %v3080 = vrcp.pop %v3076
        %v3081 = vrcp.pop %v3079
        %v3082 = vmul.f32 %v3071, %v3080
        %v3083 = vmul.f32 %v3073, %v3081
        %v3084 = vpack.c.bf16 %v3083, %v3082
        %3085 = vrot.lane.b32.xlu0 %v2533, 32
        %v3086 = vpop.permute.xlu0 %3085
        %v3089 = vsel %vm960, %v3084, 0
        %3091 = vmatprep.subr.bf16.mxu0 0
        %3092 = vmatpush1.bf16.msra.mxu0 %v3086
        %3093 = vmatprep.subr.bf16.mxu0 0
        %3094 = vmatpush1.bf16.msra.mxu0 0
        %3095 = vmatprep.subr.bf16.mxu0 0
        %3096 = vmatpush1.bf16.msra.mxu0 0
        %3097 = vmatprep.subr.bf16.mxu0 0
        %3098 = vmatpush1.bf16.msra.mxu0 0
        %3099 = vmatprep.subr.bf16.mxu0 0
        %3100 = vmatpush1.bf16.msra.mxu0 0
        %3101 = vmatprep.subr.bf16.mxu0 0
        %3102 = vmatpush1.bf16.msra.mxu0 0
        %3103 = vmatprep.subr.bf16.mxu0 0
        %3104 = vmatpush1.bf16.msra.mxu0 0
        %3105 = vmatprep.subr.bf16.mxu0 0
        %3106 = vmatpush1.bf16.msra.mxu0 0
        %3107 = vmatprep.subr.bf16.mxu0 0
        %3108 = vmatpush1.bf16.msra.mxu0 0
        %3109 = vmatprep.subr.bf16.mxu0 0
        %3110 = vmatpush1.bf16.msra.mxu0 0
        %3111 = vmatprep.subr.bf16.mxu0 0
        %3112 = vmatpush1.bf16.msra.mxu0 0
        %3113 = vmatprep.subr.bf16.mxu0 0
        %3114 = vmatpush1.bf16.msra.mxu0 0
        %3115 = vmatprep.subr.bf16.mxu0 0
        %3116 = vmatpush1.bf16.msra.mxu0 0
        %3117 = vmatprep.subr.bf16.mxu0 0
        %3118 = vmatpush1.bf16.msra.mxu0 0
        %3119 = vmatprep.subr.bf16.mxu0 0
        %3120 = vmatpush1.bf16.msra.mxu0 0
        %3121 = vmatprep.subr.bf16.mxu0 0
        %3122 = vmatpush1.bf16.msra.mxu0 0
        %3123 = vmatprep.mubr.bf16.mxu0 0
        %3124 = vmatmul.mubr.bf16.gmra.mrb[0].mxu0 %v3089
        %v3125 = vpop.f32.mrb[0].mxu0
        %v3126 = vadd.f32 0.0, %v3125
        %v3127 = vpop.f32.mrb[0].mxu0
        %v3128 = vpop.f32.mrb[0].mxu0
        %v3129 = vadd.f32 0.0, %v3128
        %v3130 = vpop.f32.mrb[0].mxu0
        %3131 = vdwg.mxu0
        %v3132 = vpack.c.bf16 %v3129, %v3126
        %s3133 = scalar_lea.vmem [#allocation11], 112
        %v3134 = vld [vmem:[%s3133] sm:$0xf]
        %v3135 = vld [vmem:[%s3133 + $0x4] sm:$0xf]
        %v3136 = vld [vmem:[%s3133 + $0x8] sm:$0xf]
        %v3137 = vld [vmem:[%s3133 + $0xc] sm:$0xf]
        %v3142 = vunpack.c.l.b16 %v3134
        %v3143 = vunpack.c.l.b16 %v3135
        %v3144 = vunpack.c.l.b16 %v3136
        %v3145 = vunpack.c.l.b16 %v3137
        %v3146 = vpack.c.b16 %v3143, %v3142
        %v3147 = vpack.c.b16 %v3145, %v3144
        %v3151 = vsel %vm912, %v3132, 0
        %3153 = vmatprep.subr.bf16.mxu0 0
        %3154 = vmatpush1.bf16.msra.mxu0 %v3146
        %3155 = vmatprep.subr.bf16.mxu0 0
        %3156 = vmatpush1.bf16.msra.mxu0 %v3147
        %3157 = vmatprep.subr.bf16.mxu0 0
        %3158 = vmatpush1.bf16.msra.mxu0 0
        %3159 = vmatprep.subr.bf16.mxu0 0
        %3160 = vmatpush1.bf16.msra.mxu0 0
        %3161 = vmatprep.subr.bf16.mxu0 0
        %3162 = vmatpush1.bf16.msra.mxu0 0
        %3163 = vmatprep.subr.bf16.mxu0 0
        %3164 = vmatpush1.bf16.msra.mxu0 0
        %3165 = vmatprep.subr.bf16.mxu0 0
        %3166 = vmatpush1.bf16.msra.mxu0 0
        %3167 = vmatprep.subr.bf16.mxu0 0
        %3168 = vmatpush1.bf16.msra.mxu0 0
        %3169 = vmatprep.subr.bf16.mxu0 0
        %3170 = vmatpush1.bf16.msra.mxu0 0
        %3171 = vmatprep.subr.bf16.mxu0 0
        %3172 = vmatpush1.bf16.msra.mxu0 0
        %3173 = vmatprep.subr.bf16.mxu0 0
        %3174 = vmatpush1.bf16.msra.mxu0 0
        %3175 = vmatprep.subr.bf16.mxu0 0
        %3176 = vmatpush1.bf16.msra.mxu0 0
        %3177 = vmatprep.subr.bf16.mxu0 0
        %3178 = vmatpush1.bf16.msra.mxu0 0
        %3179 = vmatprep.subr.bf16.mxu0 0
        %3180 = vmatpush1.bf16.msra.mxu0 0
        %3181 = vmatprep.subr.bf16.mxu0 0
        %3182 = vmatpush1.bf16.msra.mxu0 0
        %3183 = vmatprep.subr.bf16.mxu0 0
        %3184 = vmatpush1.bf16.msra.mxu0 0
        %3185 = vmatprep.mubr.bf16.mxu0 0
        %3186 = vmatmul.mubr.bf16.gmra.mrb[0].mxu0 %v3151
        %v3187 = vpop.f32.mrb[0].mxu0
        %v3188 = vadd.f32 0.0, %v3187
        %v3189 = vpop.f32.mrb[0].mxu0
        %v3190 = vpop.f32.mrb[0].mxu0
        %v3191 = vadd.f32 0.0, %v3190
        %v3192 = vpop.f32.mrb[0].mxu0
        %3193 = vdwg.mxu0
        %v3194 = vadd.f32 %v3009, %v3188
        %v3195 = vadd.f32 %v3010, %v3191
        %v3196 = vadd.f32 %v2153, %v3194
        %v3197 = vadd.f32 %v2154, %v3195
        %s3198 = scalar_lea.vmem %s8, 1
        %v3199 = vld [vmem:[%s3198] sm:$0x1]
        %v3200 = vmul.f32 %v3196, %v3196
        %v3201 = vmul.f32 %v3197, %v3197
        %3202 = vadd.xlane.f32.xlu0 %v3200
        %v3203 = vpop.xlane.xlu0 %3202
        %3204 = vadd.xlane.f32.xlu0 %v3201
        %v3205 = vpop.xlane.xlu0 %3204
        %v3206 = vmul.f32 %v3203, %v606
        %v3207 = vmul.f32 %v3205, %v606
        %v3208 = vadd.f32 %v3206, 1e-06
        %v3209 = vadd.f32 %v3207, 1e-06
        %v3210 = vrsqrt.pop %v3208
        %v3211 = vrsqrt.pop %v3209
        %v3212 = vmul.f32 %v3196, %v3210
        %v3213 = vmul.f32 %v3197, %v3211
        %v3215 = vlaneseq
        %v3216 = vshrl.u32 %v3215, 7
        %v3217 = vsub.s32 0, %v3216
        %v3218 = vrot.slane %v3199, %v3217
        %v3220 = vmul.f32 %v3212, %v3218
        %v3221 = vmul.f32 %v3213, %v3218
        %v3222 = vpack.c.bf16 %v3221, %v3220
        %s3223 = scalar_lea.vmem [#allocation13], 256
        %v3224 = vld [vmem:[%s3223] sm:$0xff]
        %v3225 = vld [vmem:[%s3223 + $0x8] sm:$0xff]
        %v3226 = vld [vmem:[%s3223 + $0x10] sm:$0xff]
        %v3227 = vld [vmem:[%s3223 + $0x18] sm:$0xff]
        %v3228 = vld [vmem:[%s3223 + $0x20] sm:$0xff]
        %v3229 = vld [vmem:[%s3223 + $0x28] sm:$0xff]
        %v3230 = vld [vmem:[%s3223 + $0x30] sm:$0xff]
        %v3231 = vld [vmem:[%s3223 + $0x38] sm:$0xff]
        %v3232 = vld [vmem:[%s3223 + $0x40] sm:$0xff]
        %v3233 = vld [vmem:[%s3223 + $0x48] sm:$0xff]
        %v3234 = vld [vmem:[%s3223 + $0x50] sm:$0xff]
        %v3235 = vld [vmem:[%s3223 + $0x58] sm:$0xff]
        %v3236 = vld [vmem:[%s3223 + $0x60] sm:$0xff]
        %v3237 = vld [vmem:[%s3223 + $0x68] sm:$0xff]
        %v3238 = vld [vmem:[%s3223 + $0x70] sm:$0xff]
        %v3239 = vld [vmem:[%s3223 + $0x78] sm:$0xff]
        %v3240 = vld [vmem:[%s3223 + $0x80] sm:$0xff]
        %v3241 = vld [vmem:[%s3223 + $0x88] sm:$0xff]
        %v3242 = vld [vmem:[%s3223 + $0x90] sm:$0xff]
        %v3243 = vld [vmem:[%s3223 + $0x98] sm:$0xff]
        %v3244 = vld [vmem:[%s3223 + $0xa0] sm:$0xff]
        %v3245 = vld [vmem:[%s3223 + $0xa8] sm:$0xff]
        %v3246 = vld [vmem:[%s3223 + $0xb0] sm:$0xff]
        %v3247 = vld [vmem:[%s3223 + $0xb8] sm:$0xff]
        %v3248 = vld [vmem:[%s3223 + $0xc0] sm:$0xff]
        %v3249 = vld [vmem:[%s3223 + $0xc8] sm:$0xff]
        %v3250 = vld [vmem:[%s3223 + $0xd0] sm:$0xff]
        %v3251 = vld [vmem:[%s3223 + $0xd8] sm:$0xff]
        %v3252 = vld [vmem:[%s3223 + $0xe0] sm:$0xff]
        %v3253 = vld [vmem:[%s3223 + $0xe8] sm:$0xff]
        %v3254 = vld [vmem:[%s3223 + $0xf0] sm:$0xff]
        %v3255 = vld [vmem:[%s3223 + $0xf8] sm:$0xff]
        %v3288 = vunpack.c.l.b16 %v3224
        %v3289 = vunpack.c.h.b16 %v3224
        %v3290 = vunpack.c.l.b16 %v3225
        %v3291 = vunpack.c.h.b16 %v3225
        %v3292 = vunpack.c.l.b16 %v3226
        %v3293 = vunpack.c.h.b16 %v3226
        %v3294 = vunpack.c.l.b16 %v3227
        %v3295 = vunpack.c.h.b16 %v3227
        %v3296 = vunpack.c.l.b16 %v3228
        %v3297 = vunpack.c.h.b16 %v3228
        %v3298 = vunpack.c.l.b16 %v3229
        %v3299 = vunpack.c.h.b16 %v3229
        %v3300 = vunpack.c.l.b16 %v3230
        %v3301 = vunpack.c.h.b16 %v3230
        %v3302 = vunpack.c.l.b16 %v3231
        %v3303 = vunpack.c.h.b16 %v3231
        %v3304 = vunpack.c.l.b16 %v3232
        %v3305 = vunpack.c.h.b16 %v3232
        %v3306 = vunpack.c.l.b16 %v3233
        %v3307 = vunpack.c.h.b16 %v3233
        %v3308 = vunpack.c.l.b16 %v3234
        %v3309 = vunpack.c.h.b16 %v3234
        %v3310 = vunpack.c.l.b16 %v3235
        %v3311 = vunpack.c.h.b16 %v3235
        %v3312 = vunpack.c.l.b16 %v3236
        %v3313 = vunpack.c.h.b16 %v3236
        %v3314 = vunpack.c.l.b16 %v3237
        %v3315 = vunpack.c.h.b16 %v3237
        %v3316 = vunpack.c.l.b16 %v3238
        %v3317 = vunpack.c.h.b16 %v3238
        %v3318 = vunpack.c.l.b16 %v3239
        %v3319 = vunpack.c.h.b16 %v3239
        %v3320 = vunpack.c.l.b16 %v3240
        %v3321 = vunpack.c.h.b16 %v3240
        %v3322 = vunpack.c.l.b16 %v3241
        %v3323 = vunpack.c.h.b16 %v3241
        %v3324 = vunpack.c.l.b16 %v3242
        %v3325 = vunpack.c.h.b16 %v3242
        %v3326 = vunpack.c.l.b16 %v3243
        %v3327 = vunpack.c.h.b16 %v3243
        %v3328 = vunpack.c.l.b16 %v3244
        %v3329 = vunpack.c.h.b16 %v3244
        %v3330 = vunpack.c.l.b16 %v3245
        %v3331 = vunpack.c.h.b16 %v3245
        %v3332 = vunpack.c.l.b16 %v3246
        %v3333 = vunpack.c.h.b16 %v3246
        %v3334 = vunpack.c.l.b16 %v3247
        %v3335 = vunpack.c.h.b16 %v3247
        %v3336 = vunpack.c.l.b16 %v3248
        %v3337 = vunpack.c.h.b16 %v3248
        %v3338 = vunpack.c.l.b16 %v3249
        %v3339 = vunpack.c.h.b16 %v3249
        %v3340 = vunpack.c.l.b16 %v3250
        %v3341 = vunpack.c.h.b16 %v3250
        %v3342 = vunpack.c.l.b16 %v3251
        %v3343 = vunpack.c.h.b16 %v3251
        %v3344 = vunpack.c.l.b16 %v3252
        %v3345 = vunpack.c.h.b16 %v3252
        %v3346 = vunpack.c.l.b16 %v3253
        %v3347 = vunpack.c.h.b16 %v3253
        %v3348 = vunpack.c.l.b16 %v3254
        %v3349 = vunpack.c.h.b16 %v3254
        %v3350 = vunpack.c.l.b16 %v3255
        %v3351 = vunpack.c.h.b16 %v3255
        %v3352 = vpack.c.b16 %v3292, %v3288
        %v3353 = vpack.c.b16 %v3293, %v3289
        %v3354 = vpack.c.b16 %v3294, %v3290
        %v3355 = vpack.c.b16 %v3295, %v3291
        %v3356 = vpack.c.b16 %v3300, %v3296
        %v3357 = vpack.c.b16 %v3301, %v3297
        %v3358 = vpack.c.b16 %v3302, %v3298
        %v3359 = vpack.c.b16 %v3303, %v3299
        %v3360 = vpack.c.b16 %v3308, %v3304
        %v3361 = vpack.c.b16 %v3309, %v3305
        %v3362 = vpack.c.b16 %v3310, %v3306
        %v3363 = vpack.c.b16 %v3311, %v3307
        %v3364 = vpack.c.b16 %v3316, %v3312
        %v3365 = vpack.c.b16 %v3317, %v3313
        %v3366 = vpack.c.b16 %v3318, %v3314
        %v3367 = vpack.c.b16 %v3319, %v3315
        %v3368 = vpack.c.b16 %v3324, %v3320
        %v3369 = vpack.c.b16 %v3325, %v3321
        %v3370 = vpack.c.b16 %v3326, %v3322
        %v3371 = vpack.c.b16 %v3327, %v3323
        %v3372 = vpack.c.b16 %v3332, %v3328
        %v3373 = vpack.c.b16 %v3333, %v3329
        %v3374 = vpack.c.b16 %v3334, %v3330
        %v3375 = vpack.c.b16 %v3335, %v3331
        %v3376 = vpack.c.b16 %v3340, %v3336
        %v3377 = vpack.c.b16 %v3341, %v3337
        %v3378 = vpack.c.b16 %v3342, %v3338
        %v3379 = vpack.c.b16 %v3343, %v3339
        %v3380 = vpack.c.b16 %v3348, %v3344
        %v3381 = vpack.c.b16 %v3349, %v3345
        %v3382 = vpack.c.b16 %v3350, %v3346
        %v3383 = vpack.c.b16 %v3351, %v3347
        %3416 = vmatprep.subr.bf16.mxu0 %v3353
        %3417 = vmatpush1.bf16.msra.mxu0 %v3352
        %3418 = vmatprep.subr.bf16.mxu0 %v3357
        %3419 = vmatpush1.bf16.msra.mxu0 %v3356
        %3420 = vmatprep.subr.bf16.mxu0 %v3361
        %3421 = vmatpush1.bf16.msra.mxu0 %v3360
        %3422 = vmatprep.subr.bf16.mxu0 %v3365
        %3423 = vmatpush1.bf16.msra.mxu0 %v3364
        %3424 = vmatprep.subr.bf16.mxu0 %v3369
        %3425 = vmatpush1.bf16.msra.mxu0 %v3368
        %3426 = vmatprep.subr.bf16.mxu0 %v3373
        %3427 = vmatpush1.bf16.msra.mxu0 %v3372
        %3428 = vmatprep.subr.bf16.mxu0 %v3377
        %3429 = vmatpush1.bf16.msra.mxu0 %v3376
        %3430 = vmatprep.subr.bf16.mxu0 %v3381
        %3431 = vmatpush1.bf16.msra.mxu0 %v3380
        %3432 = vmatprep.subr.bf16.mxu0 0
        %3433 = vmatpush1.bf16.msra.mxu0 0
        %3434 = vmatprep.subr.bf16.mxu0 0
        %3435 = vmatpush1.bf16.msra.mxu0 0
        %3436 = vmatprep.subr.bf16.mxu0 0
        %3437 = vmatpush1.bf16.msra.mxu0 0
        %3438 = vmatprep.subr.bf16.mxu0 0
        %3439 = vmatpush1.bf16.msra.mxu0 0
        %3440 = vmatprep.subr.bf16.mxu0 0
        %3441 = vmatpush1.bf16.msra.mxu0 0
        %3442 = vmatprep.subr.bf16.mxu0 0
        %3443 = vmatpush1.bf16.msra.mxu0 0
        %3444 = vmatprep.subr.bf16.mxu0 0
        %3445 = vmatpush1.bf16.msra.mxu0 0
        %3446 = vmatprep.subr.bf16.mxu0 0
        %3447 = vmatpush1.bf16.msra.mxu0 0
        %3448 = vmatprep.mubr.bf16.mxu0 0
        %3449 = vmatmul.mubr.bf16.gmra.mrb[0].mxu0 %v3222
        %v3450 = vpop.f32.mrb[0].mxu0
        %v3451 = vadd.f32 0.0, %v3450
        %v3452 = vpop.f32.mrb[0].mxu0
        %v3453 = vadd.f32 0.0, %v3452
        %v3454 = vpop.f32.mrb[0].mxu0
        %v3455 = vadd.f32 0.0, %v3454
        %v3456 = vpop.f32.mrb[0].mxu0
        %v3457 = vadd.f32 0.0, %v3456
        %3458 = vdwg.mxu0
        %3459 = vmatprep.subr.bf16.mxu0 %v3355
        %3460 = vmatpush1.bf16.msra.mxu0 %v3354
        %3461 = vmatprep.subr.bf16.mxu0 %v3359
        %3462 = vmatpush1.bf16.msra.mxu0 %v3358
        %3463 = vmatprep.subr.bf16.mxu0 %v3363
        %3464 = vmatpush1.bf16.msra.mxu0 %v3362
        %3465 = vmatprep.subr.bf16.mxu0 %v3367
        %3466 = vmatpush1.bf16.msra.mxu0 %v3366
        %3467 = vmatprep.subr.bf16.mxu0 %v3371
        %3468 = vmatpush1.bf16.msra.mxu0 %v3370
        %3469 = vmatprep.subr.bf16.mxu0 %v3375
        %3470 = vmatpush1.bf16.msra.mxu0 %v3374
        %3471 = vmatprep.subr.bf16.mxu0 %v3379
        %3472 = vmatpush1.bf16.msra.mxu0 %v3378
        %3473 = vmatprep.subr.bf16.mxu0 %v3383
        %3474 = vmatpush1.bf16.msra.mxu0 %v3382
        %3475 = vmatprep.subr.bf16.mxu0 0
        %3476 = vmatpush1.bf16.msra.mxu0 0
        %3477 = vmatprep.subr.bf16.mxu0 0
        %3478 = vmatpush1.bf16.msra.mxu0 0
        %3479 = vmatprep.subr.bf16.mxu0 0
        %3480 = vmatpush1.bf16.msra.mxu0 0
        %3481 = vmatprep.subr.bf16.mxu0 0
        %3482 = vmatpush1.bf16.msra.mxu0 0
        %3483 = vmatprep.subr.bf16.mxu0 0
        %3484 = vmatpush1.bf16.msra.mxu0 0
        %3485 = vmatprep.subr.bf16.mxu0 0
        %3486 = vmatpush1.bf16.msra.mxu0 0
        %3487 = vmatprep.subr.bf16.mxu0 0
        %3488 = vmatpush1.bf16.msra.mxu0 0
        %3489 = vmatprep.subr.bf16.mxu0 0
        %3490 = vmatpush1.bf16.msra.mxu0 0
        %3491 = vmatprep.mubr.bf16.mxu0 0
        %3492 = vmatmul.mubr.bf16.gmra.mrb[0].mxu0 %v3222
        %v3493 = vpop.f32.mrb[0].mxu0
        %v3494 = vadd.f32 0.0, %v3493
        %v3495 = vpop.f32.mrb[0].mxu0
        %v3496 = vadd.f32 0.0, %v3495
        %v3497 = vpop.f32.mrb[0].mxu0
        %v3498 = vadd.f32 0.0, %v3497
        %v3499 = vpop.f32.mrb[0].mxu0
        %v3500 = vadd.f32 0.0, %v3499
        %3501 = vdwg.mxu0
        %v3502 = vxor.u32 %v3451, 2147483648
        %v3503 = vxor.u32 %v3453, 2147483648
        %v3504 = vxor.u32 %v3455, 2147483648
        %v3505 = vxor.u32 %v3457, 2147483648
        %v3506 = vmul.f32 %v3502, 1.442695
        %v3507 = vpow.pop %v3506
        %v3508 = vmul.f32 %v3503, 1.442695
        %v3509 = vpow.pop %v3508
        %v3510 = vmul.f32 %v3504, 1.442695
        %v3511 = vpow.pop %v3510
        %v3512 = vmul.f32 %v3505, 1.442695
        %v3513 = vpow.pop %v3512
        %v3514 = vadd.f32 %v3507, 1.0
        %v3515 = vadd.f32 %v3509, 1.0
        %v3516 = vadd.f32 %v3511, 1.0
        %v3517 = vadd.f32 %v3513, 1.0
        %v3518 = vrcp.pop %v3514
        %v3519 = vmul.f32 1.0, %v3518
        %v3520 = vrcp.pop %v3515
        %v3521 = vmul.f32 1.0, %v3520
        %v3522 = vrcp.pop %v3516
        %v3523 = vmul.f32 1.0, %v3522
        %v3524 = vrcp.pop %v3517
        %v3525 = vmul.f32 1.0, %v3524
        %v3526 = vmul.f32 %v3451, %v3519
        %v3527 = vmul.f32 %v3453, %v3521
        %v3528 = vmul.f32 %v3455, %v3523
        %v3529 = vmul.f32 %v3457, %v3525
        %v3530 = vmul.f32 %v3526, %v3494
        %v3531 = vmul.f32 %v3527, %v3496
        %v3532 = vmul.f32 %v3528, %v3498
        %v3533 = vmul.f32 %v3529, %v3500
        %v3534 = vpack.c.bf16 %v3532, %v3530
        %v3535 = vpack.c.bf16 %v3533, %v3531
        %s3536 = scalar_lea.vmem [#allocation14], 128
        %v3537 = vld [vmem:[%s3536] sm:$0xf]
        %v3538 = vld [vmem:[%s3536 + $0x4] sm:$0xf]
        %v3539 = vld [vmem:[%s3536 + $0x8] sm:$0xf]
        %v3540 = vld [vmem:[%s3536 + $0xc] sm:$0xf]
        %v3541 = vld [vmem:[%s3536 + $0x10] sm:$0xf]
        %v3542 = vld [vmem:[%s3536 + $0x14] sm:$0xf]
        %v3543 = vld [vmem:[%s3536 + $0x18] sm:$0xf]
        %v3544 = vld [vmem:[%s3536 + $0x1c] sm:$0xf]
        %v3545 = vld [vmem:[%s3536 + $0x20] sm:$0xf]
        %v3546 = vld [vmem:[%s3536 + $0x24] sm:$0xf]
        %v3547 = vld [vmem:[%s3536 + $0x28] sm:$0xf]
        %v3548 = vld [vmem:[%s3536 + $0x2c] sm:$0xf]
        %v3549 = vld [vmem:[%s3536 + $0x30] sm:$0xf]
        %v3550 = vld [vmem:[%s3536 + $0x34] sm:$0xf]
        %v3551 = vld [vmem:[%s3536 + $0x38] sm:$0xf]
        %v3552 = vld [vmem:[%s3536 + $0x3c] sm:$0xf]
        %v3553 = vld [vmem:[%s3536 + $0x40] sm:$0xf]
        %v3554 = vld [vmem:[%s3536 + $0x44] sm:$0xf]
        %v3555 = vld [vmem:[%s3536 + $0x48] sm:$0xf]
        %v3556 = vld [vmem:[%s3536 + $0x4c] sm:$0xf]
        %v3557 = vld [vmem:[%s3536 + $0x50] sm:$0xf]
        %v3558 = vld [vmem:[%s3536 + $0x54] sm:$0xf]
        %v3559 = vld [vmem:[%s3536 + $0x58] sm:$0xf]
        %v3560 = vld [vmem:[%s3536 + $0x5c] sm:$0xf]
        %v3561 = vld [vmem:[%s3536 + $0x60] sm:$0xf]
        %v3562 = vld [vmem:[%s3536 + $0x64] sm:$0xf]
        %v3563 = vld [vmem:[%s3536 + $0x68] sm:$0xf]
        %v3564 = vld [vmem:[%s3536 + $0x6c] sm:$0xf]
        %v3565 = vld [vmem:[%s3536 + $0x70] sm:$0xf]
        %v3566 = vld [vmem:[%s3536 + $0x74] sm:$0xf]
        %v3567 = vld [vmem:[%s3536 + $0x78] sm:$0xf]
        %v3568 = vld [vmem:[%s3536 + $0x7c] sm:$0xf]
        %v3601 = vunpack.c.l.b16 %v3537
        %v3602 = vunpack.c.l.b16 %v3538
        %v3603 = vunpack.c.l.b16 %v3539
        %v3604 = vunpack.c.l.b16 %v3540
        %v3605 = vunpack.c.l.b16 %v3541
        %v3606 = vunpack.c.l.b16 %v3542
        %v3607 = vunpack.c.l.b16 %v3543
        %v3608 = vunpack.c.l.b16 %v3544
        %v3609 = vunpack.c.l.b16 %v3545
        %v3610 = vunpack.c.l.b16 %v3546
        %v3611 = vunpack.c.l.b16 %v3547
        %v3612 = vunpack.c.l.b16 %v3548
        %v3613 = vunpack.c.l.b16 %v3549
        %v3614 = vunpack.c.l.b16 %v3550
        %v3615 = vunpack.c.l.b16 %v3551
        %v3616 = vunpack.c.l.b16 %v3552
        %v3617 = vunpack.c.l.b16 %v3553
        %v3618 = vunpack.c.l.b16 %v3554
        %v3619 = vunpack.c.l.b16 %v3555
        %v3620 = vunpack.c.l.b16 %v3556
        %v3621 = vunpack.c.l.b16 %v3557
        %v3622 = vunpack.c.l.b16 %v3558
        %v3623 = vunpack.c.l.b16 %v3559
        %v3624 = vunpack.c.l.b16 %v3560
        %v3625 = vunpack.c.l.b16 %v3561
        %v3626 = vunpack.c.l.b16 %v3562
        %v3627 = vunpack.c.l.b16 %v3563
        %v3628 = vunpack.c.l.b16 %v3564
        %v3629 = vunpack.c.l.b16 %v3565
        %v3630 = vunpack.c.l.b16 %v3566
        %v3631 = vunpack.c.l.b16 %v3567
        %v3632 = vunpack.c.l.b16 %v3568
        %v3633 = vpack.c.b16 %v3602, %v3601
        %v3634 = vpack.c.b16 %v3604, %v3603
        %v3635 = vpack.c.b16 %v3606, %v3605
        %v3636 = vpack.c.b16 %v3608, %v3607
        %v3637 = vpack.c.b16 %v3610, %v3609
        %v3638 = vpack.c.b16 %v3612, %v3611
        %v3639 = vpack.c.b16 %v3614, %v3613
        %v3640 = vpack.c.b16 %v3616, %v3615
        %v3641 = vpack.c.b16 %v3618, %v3617
        %v3642 = vpack.c.b16 %v3620, %v3619
        %v3643 = vpack.c.b16 %v3622, %v3621
        %v3644 = vpack.c.b16 %v3624, %v3623
        %v3645 = vpack.c.b16 %v3626, %v3625
        %v3646 = vpack.c.b16 %v3628, %v3627
        %v3647 = vpack.c.b16 %v3630, %v3629
        %v3648 = vpack.c.b16 %v3632, %v3631
        %3665 = vmatprep.subr.bf16.mxu0 0
        %3666 = vmatpush1.bf16.msra.mxu0 %v3633
        %3667 = vmatprep.subr.bf16.mxu0 0
        %3668 = vmatpush1.bf16.msra.mxu0 %v3634
        %3669 = vmatprep.subr.bf16.mxu0 0
        %3670 = vmatpush1.bf16.msra.mxu0 %v3635
        %3671 = vmatprep.subr.bf16.mxu0 0
        %3672 = vmatpush1.bf16.msra.mxu0 %v3636
        %3673 = vmatprep.subr.bf16.mxu0 0
        %3674 = vmatpush1.bf16.msra.mxu0 %v3637
        %3675 = vmatprep.subr.bf16.mxu0 0
        %3676 = vmatpush1.bf16.msra.mxu0 %v3638
        %3677 = vmatprep.subr.bf16.mxu0 0
        %3678 = vmatpush1.bf16.msra.mxu0 %v3639
        %3679 = vmatprep.subr.bf16.mxu0 0
        %3680 = vmatpush1.bf16.msra.mxu0 %v3640
        %3681 = vmatprep.subr.bf16.mxu0 0
        %3682 = vmatpush1.bf16.msra.mxu0 %v3641
        %3683 = vmatprep.subr.bf16.mxu0 0
        %3684 = vmatpush1.bf16.msra.mxu0 %v3642
        %3685 = vmatprep.subr.bf16.mxu0 0
        %3686 = vmatpush1.bf16.msra.mxu0 %v3643
        %3687 = vmatprep.subr.bf16.mxu0 0
        %3688 = vmatpush1.bf16.msra.mxu0 %v3644
        %3689 = vmatprep.subr.bf16.mxu0 0
        %3690 = vmatpush1.bf16.msra.mxu0 %v3645
        %3691 = vmatprep.subr.bf16.mxu0 0
        %3692 = vmatpush1.bf16.msra.mxu0 %v3646
        %3693 = vmatprep.subr.bf16.mxu0 0
        %3694 = vmatpush1.bf16.msra.mxu0 %v3647
        %3695 = vmatprep.subr.bf16.mxu0 0
        %3696 = vmatpush1.bf16.msra.mxu0 %v3648
        %3697 = vmatprep.mubr.bf16.mxu0 %v3535
        %3698 = vmatmul.mubr.bf16.gmra.mrb[0].mxu0 %v3534
        %v3699 = vpop.f32.mrb[0].mxu0
        %v3700 = vadd.f32 0.0, %v3699
        %v3701 = vpop.f32.mrb[0].mxu0
        %v3702 = vpop.f32.mrb[0].mxu0
        %v3703 = vadd.f32 0.0, %v3702
        %v3704 = vpop.f32.mrb[0].mxu0
        %3705 = vdwg.mxu0
        %v3706 = vadd.f32 %v3196, %v3700
        %v3707 = vadd.f32 %v3197, %v3703
        %v3708 = vld [vmem:[%s11] sm:$0x1]
        %v3709 = vmul.f32 %v3706, %v3706
        %v3710 = vmul.f32 %v3707, %v3707
        %3711 = vadd.xlane.f32.xlu0 %v3709
        %v3712 = vpop.xlane.xlu0 %3711
        %3713 = vadd.xlane.f32.xlu0 %v3710
        %v3714 = vpop.xlane.xlu0 %3713
        %v3715 = vmul.f32 %v3712, %v606
        %v3716 = vmul.f32 %v3714, %v606
        %v3717 = vadd.f32 %v3715, 1e-06
        %v3718 = vadd.f32 %v3716, 1e-06
        %v3719 = vrsqrt.pop %v3717
        %v3720 = vrsqrt.pop %v3718
        %v3721 = vmul.f32 %v3706, %v3719
        %v3722 = vmul.f32 %v3707, %v3720
        %v3724 = vlaneseq
        %v3725 = vshrl.u32 %v3724, 7
        %v3726 = vsub.s32 0, %v3725
        %v3727 = vrot.slane %v3708, %v3726
        %v3729 = vmul.f32 %v3721, %v3727
        %v3730 = vmul.f32 %v3722, %v3727
        %v3731 = vpack.c.bf16 %v3730, %v3729
        %v3732 = vld [vmem:[#allocation16] sm:$0xff]
        %v3733 = vld [vmem:[#allocation16 + $0x8] sm:$0xff]
        %v3734 = vld [vmem:[#allocation16 + $0x10] sm:$0xff]
        %v3735 = vld [vmem:[#allocation16 + $0x18] sm:$0xff]
        %v3736 = vld [vmem:[#allocation16 + $0x20] sm:$0xff]
        %v3737 = vld [vmem:[#allocation16 + $0x28] sm:$0xff]
        %v3738 = vld [vmem:[#allocation16 + $0x30] sm:$0xff]
        %v3739 = vld [vmem:[#allocation16 + $0x38] sm:$0xff]
        %v3740 = vld [vmem:[#allocation16 + $0x40] sm:$0xff]
        %v3741 = vld [vmem:[#allocation16 + $0x48] sm:$0xff]
        %v3742 = vld [vmem:[#allocation16 + $0x50] sm:$0xff]
        %v3743 = vld [vmem:[#allocation16 + $0x58] sm:$0xff]
        %v3744 = vld [vmem:[#allocation16 + $0x60] sm:$0xff]
        %v3745 = vld [vmem:[#allocation16 + $0x68] sm:$0xff]
        %v3746 = vld [vmem:[#allocation16 + $0x70] sm:$0xff]
        %v3747 = vld [vmem:[#allocation16 + $0x78] sm:$0xff]
        %v3764 = vunpack.c.l.b16 %v3732
        %v3765 = vunpack.c.h.b16 %v3732
        %v3766 = vunpack.c.l.b16 %v3733
        %v3767 = vunpack.c.h.b16 %v3733
        %v3768 = vunpack.c.l.b16 %v3734
        %v3769 = vunpack.c.h.b16 %v3734
        %v3770 = vunpack.c.l.b16 %v3735
        %v3771 = vunpack.c.h.b16 %v3735
        %v3772 = vunpack.c.l.b16 %v3736
        %v3773 = vunpack.c.h.b16 %v3736
        %v3774 = vunpack.c.l.b16 %v3737
        %v3775 = vunpack.c.h.b16 %v3737
        %v3776 = vunpack.c.l.b16 %v3738
        %v3777 = vunpack.c.h.b16 %v3738
        %v3778 = vunpack.c.l.b16 %v3739
        %v3779 = vunpack.c.h.b16 %v3739
        %v3780 = vunpack.c.l.b16 %v3740
        %v3781 = vunpack.c.h.b16 %v3740
        %v3782 = vunpack.c.l.b16 %v3741
        %v3783 = vunpack.c.h.b16 %v3741
        %v3784 = vunpack.c.l.b16 %v3742
        %v3785 = vunpack.c.h.b16 %v3742
        %v3786 = vunpack.c.l.b16 %v3743
        %v3787 = vunpack.c.h.b16 %v3743
        %v3788 = vunpack.c.l.b16 %v3744
        %v3789 = vunpack.c.h.b16 %v3744
        %v3790 = vunpack.c.l.b16 %v3745
        %v3791 = vunpack.c.h.b16 %v3745
        %v3792 = vunpack.c.l.b16 %v3746
        %v3793 = vunpack.c.h.b16 %v3746
        %v3794 = vunpack.c.l.b16 %v3747
        %v3795 = vunpack.c.h.b16 %v3747
        %v3796 = vpack.c.b16 %v3766, %v3764
        %v3797 = vpack.c.b16 %v3767, %v3765
        %v3798 = vpack.c.b16 %v3770, %v3768
        %v3799 = vpack.c.b16 %v3771, %v3769
        %v3800 = vpack.c.b16 %v3774, %v3772
        %v3801 = vpack.c.b16 %v3775, %v3773
        %v3802 = vpack.c.b16 %v3778, %v3776
        %v3803 = vpack.c.b16 %v3779, %v3777
        %v3804 = vpack.c.b16 %v3782, %v3780
        %v3805 = vpack.c.b16 %v3783, %v3781
        %v3806 = vpack.c.b16 %v3786, %v3784
        %v3807 = vpack.c.b16 %v3787, %v3785
        %v3808 = vpack.c.b16 %v3790, %v3788
        %v3809 = vpack.c.b16 %v3791, %v3789
        %v3810 = vpack.c.b16 %v3794, %v3792
        %v3811 = vpack.c.b16 %v3795, %v3793
        %3828 = vmatprep.subr.bf16.mxu0 %v3797
        %3829 = vmatpush1.bf16.msra.mxu0 %v3796
        %3830 = vmatprep.subr.bf16.mxu0 %v3799
        %3831 = vmatpush1.bf16.msra.mxu0 %v3798
        %3832 = vmatprep.subr.bf16.mxu0 %v3801
        %3833 = vmatpush1.bf16.msra.mxu0 %v3800
        %3834 = vmatprep.subr.bf16.mxu0 %v3803
        %3835 = vmatpush1.bf16.msra.mxu0 %v3802
        %3836 = vmatprep.subr.bf16.mxu0 %v3805
        %3837 = vmatpush1.bf16.msra.mxu0 %v3804
        %3838 = vmatprep.subr.bf16.mxu0 %v3807
        %3839 = vmatpush1.bf16.msra.mxu0 %v3806
        %3840 = vmatprep.subr.bf16.mxu0 %v3809
        %3841 = vmatpush1.bf16.msra.mxu0 %v3808
        %3842 = vmatprep.subr.bf16.mxu0 %v3811
        %3843 = vmatpush1.bf16.msra.mxu0 %v3810
        %3844 = vmatprep.subr.bf16.mxu0 0
        %3845 = vmatpush1.bf16.msra.mxu0 0
        %3846 = vmatprep.subr.bf16.mxu0 0
        %3847 = vmatpush1.bf16.msra.mxu0 0
        %3848 = vmatprep.subr.bf16.mxu0 0
        %3849 = vmatpush1.bf16.msra.mxu0 0
        %3850 = vmatprep.subr.bf16.mxu0 0
        %3851 = vmatpush1.bf16.msra.mxu0 0
        %3852 = vmatprep.subr.bf16.mxu0 0
        %3853 = vmatpush1.bf16.msra.mxu0 0
        %3854 = vmatprep.subr.bf16.mxu0 0
        %3855 = vmatpush1.bf16.msra.mxu0 0
        %3856 = vmatprep.subr.bf16.mxu0 0
        %3857 = vmatpush1.bf16.msra.mxu0 0
        %3858 = vmatprep.subr.bf16.mxu0 0
        %3859 = vmatpush1.bf16.msra.mxu0 0
        %3860 = vmatprep.mubr.bf16.mxu0 0
        %3861 = vmatmul.mubr.bf16.gmra.mrb[0].mxu0 %v3731
        %v3862 = vpop.f32.mrb[0].mxu0
        %v3863 = vadd.f32 0.0, %v3862
        %v3864 = vpop.f32.mrb[0].mxu0
        %v3865 = vadd.f32 0.0, %v3864
        %v3866 = vpop.f32.mrb[0].mxu0
        %v3867 = vadd.f32 0.0, %v3866
        %v3868 = vpop.f32.mrb[0].mxu0
        %v3869 = vadd.f32 0.0, %v3868
        %3870 = vdwg.mxu0
        %3871 = vst [vmem:[%s585] sm:$0xff] %v3863
        %3872 = vst [vmem:[%s585 + $0x8] sm:$0xff] %v3865
        %3873 = vst [vmem:[%s585 + $0x10] sm:$0xff] %v3867
        %3874 = vst [vmem:[%s585 + $0x18] sm:$0xff] %v3869
        %s3875 = sand.u32 %s325, 1
        %s3876 = scalar_lea.sflag [#allocation4], %s3875
        %s3877 = sand.u32 %s325, 1
        %s3878 = smul.addr %s3877, 32
        %s3879 = scalar_lea.vmem [#allocation17], %s3878
        // Predicated region
        $region109: #{tpu_custom_call.1} parent=71 // pred_check
          %p3880 = pneg %p335
        $region110: #{tpu_custom_call.1} parent=71 // pred_check_branch
          %3882 = sbr.rel (%p3880) target = $region112
        $region111: #{tpu_custom_call.1} parent=71 // pred_region
          %s3884 = ssub.s32 512, 512
          %3885 = vsyncadd %s3876, %s3884
          %s3886 = smul.addr %s34, 4
          %s3887 = smul.addr %s3886, 128
          %s3888 = scalar_lea.hbm %s13, %s3887
          %s3889 = sshll.u32 %s3879, 4
          %s3890 = int_to_ptr.vmem [resolvable:$true] %s3889
          %3895 = dma.vmem_to_hbm [thread:$0]  %s3890, 512, %s3888, %s3876, 256, 256, 16
        $region112: #{tpu_custom_call.1} parent=71 // pred_fallthru
          _
      $region72: #{tpu_custom_call.1} parent=5 // pred_fallthru
        _
      %p3896 = scmp.le.s32.totalorder 2, %s29
      // Predicated region
      $region113: #{tpu_custom_call.1} parent=5 // pred_check
        %p3897 = pneg %p3896
      $region114: #{tpu_custom_call.1} parent=5 // pred_check_branch
        %3899 = sbr.rel (%p3897) target = $region116
      $region115: #{tpu_custom_call.1} parent=5 // pred_region
        %s3900 = ssub.s32 %s29, 2
        // Predicated region
        $region117: #{tpu_custom_call.1} parent=115 // pred_check
          %p3901 = pneg %p341
        $region118: #{tpu_custom_call.1} parent=115 // pred_check_branch
          %3903 = sbr.rel (%p3901) target = $region120
        $region119: #{tpu_custom_call.1} parent=115 // pred_region
          %s3904 = sand.u32 %s326, 1
          %s3905 = scalar_lea.sflag [#allocation4], %s3904
          %s3906 = sand.u32 %s326, 1
          %s3907 = smul.addr %s3906, 32
          %s3908 = scalar_lea.vmem [#allocation17], %s3907
          %3909 = dma.done %s3905, 512
        $region120: #{tpu_custom_call.1} parent=115 // pred_fallthru
          _
      $region116: #{tpu_custom_call.1} parent=5 // pred_fallthru
        _
    $region6: #{tpu_custom_call.1} parent=1 // loop_footer
      %s33 = sadd.s32 1, %s29
    $region7: #{tpu_custom_call.1} parent=1 // loop_footer_branch
      %28 = sbr.rel target = $region3
    $region8: #{tpu_custom_call.1} parent=1 // loop_exit
      _
    %3910 = vsyncpa [#allocation3], 1
    %s3911 = scalar_lea.sflag [#allocation3], 1
    %3912 = vsyncpa %s3911, 1
    %3913 = vsyncpa [#allocation6], 1
    %3914 = vsyncpa [#allocation9], 1
    %3915 = vsyncpa [#allocation12], 1
    %3916 = vsyncpa [#allocation15], 1
    %3917 = vsyncpa [#allocation4], 1
    %s3918 = scalar_lea.sflag [#allocation4], 1
    %3919 = vsyncpa %s3918, 1

</llo_original>
